<compile_context>
chip_gen: v6e
topology: v6e:2x2x1
jax: 0.10.0
libtpu: 0.0.40
codegen_flags: <defaults>
</compile_context>

<pallas_src>
import functools
import numpy as np
import jax
import jax.numpy as jnp
from jax.experimental import pallas as pl
from jax.experimental.pallas import tpu as pltpu

_VMEM_LIMIT = 48 * 1024 * 1024


def _cp(dims):
    return pltpu.CompilerParams(dimension_semantics=dims,
                                vmem_limit_bytes=_VMEM_LIMIT)


def _round_up(n, m):
    return ((n + m - 1) // m) * m


def _pick_tile(n, target):
    """Largest divisor of n that is <= target (prefer multiples of 8)."""
    if n <= target:
        return n
    best = 1
    for t in range(8, target + 1, 8):
        if n % t == 0:
            best = t
    if best > 1:
        return best
    for t in range(target, 0, -1):
        if n % t == 0:
            return t
    return n


# ----------------------------- in-kernel helpers -----------------------------
def _gelu(x):
    # tanh-approx GELU: tanh lowers to the EUP slot instead of a long VPU polynomial.
    # TODO(synk): torch F.gelu / nn.GELU default is exact erf; tanh approx differs <~1e-3.
    c = 0.7978845608028654
    return 0.5 * x * (1.0 + jnp.tanh(c * (x + 0.044715 * x * x * x)))


def _layernorm(x, w, b, eps=1e-5):
    mu = jnp.mean(x, axis=-1, keepdims=True)
    xc = x - mu
    var = jnp.mean(xc * xc, axis=-1, keepdims=True)
    return xc * jax.lax.rsqrt(var + eps) * w + b


# ----------------------------- conv1 (stride 1) + GELU -----------------------------
def _conv_s1_kernel(xp_ref, w_ref, b_ref, o_ref, *, tt):
    # xp_ref: (1, L+2, Cin) padded sequence for this batch (resident, bf16)
    # w_ref : (3, Cin, Cout) bf16 ; b_ref: (1, Cout) f32 ; o_ref: (1, tt, Cout)
    j = pl.program_id(1)
    base = pl.multiple_of(j * tt, tt)
    a = xp_ref[0, pl.ds(base, tt + 2), :]                      # (tt+2, Cin) bf16
    acc = jnp.dot(a[0:tt], w_ref[0], preferred_element_type=jnp.float32)
    acc = acc + jnp.dot(a[1:tt + 1], w_ref[1], preferred_element_type=jnp.float32)
    acc = acc + jnp.dot(a[2:tt + 2], w_ref[2], preferred_element_type=jnp.float32)
    o_ref[0] = _gelu(acc + b_ref[...]).astype(o_ref.dtype)


def _conv1_gelu(xp, w, b):
    B, Lp2, cin = xp.shape
    L = Lp2 - 2
    cout = w.shape[2]
    tt = _pick_tile(L, 512)
    return pl.pallas_call(
        functools.partial(_conv_s1_kernel, tt=tt),
        out_shape=jax.ShapeDtypeStruct((B, L, cout), jnp.bfloat16),
        grid=(B, L // tt),
        in_specs=[
            pl.BlockSpec((1, Lp2, cin), lambda bi, j: (bi, 0, 0)),
            pl.BlockSpec(w.shape, lambda bi, j: (0, 0, 0)),
            pl.BlockSpec(b.shape, lambda bi, j: (0, 0)),
        ],
        out_specs=pl.BlockSpec((1, tt, cout), lambda bi, j: (bi, j, 0)),
        compiler_params=_cp(("parallel", "arbitrary")),
    )(xp, w, b)


# ----------------------------- conv2 (stride 2) + GELU -----------------------------
def _conv_s2_kernel(xe_ref, xo_ref, w_ref, b_ref, o_ref, *, tt):
    # xe_ref/xo_ref: (1, T+1, Cin) even / odd rows of the padded sequence (bf16).
    # out[t] = gelu(b + yp[2t] @ w0 + yp[2t+1] @ w1 + yp[2t+2] @ w2)
    j = pl.program_id(1)
    base = pl.multiple_of(j * tt, tt)
    e = xe_ref[0, pl.ds(base, tt + 1), :]                      # (tt+1, Cin)
    t1 = xo_ref[0, pl.ds(base, tt), :]                         # (tt, Cin)
    acc = jnp.dot(e[:tt], w_ref[0], preferred_element_type=jnp.float32)
    acc = acc + jnp.dot(t1, w_ref[1], preferred_element_type=jnp.float32)
    acc = acc + jnp.dot(e[1:], w_ref[2], preferred_element_type=jnp.float32)
    o_ref[0] = _gelu(acc + b_ref[...]).astype(o_ref.dtype)


def _conv2_gelu(y1, w, b):
    B, L, cin = y1.shape
    T = L // 2
    cout = w.shape[2]
    yp = jnp.pad(y1, ((0, 0), (1, 1), (0, 0)))                 # (B, L+2, Cin) bf16
    ye = yp[:, 0::2, :]                                        # (B, T+1, Cin)
    yo = yp[:, 1::2, :]                                        # (B, T+1, Cin)
    tt = _pick_tile(T, 512)
    return pl.pallas_call(
        functools.partial(_conv_s2_kernel, tt=tt),
        out_shape=jax.ShapeDtypeStruct((B, T, cout), jnp.float32),
        grid=(B, T // tt),
        in_specs=[
            pl.BlockSpec((1, T + 1, cin), lambda bi, j: (bi, 0, 0)),
            pl.BlockSpec((1, T + 1, cin), lambda bi, j: (bi, 0, 0)),
            pl.BlockSpec(w.shape, lambda bi, j: (0, 0, 0)),
            pl.BlockSpec(b.shape, lambda bi, j: (0, 0)),
        ],
        out_specs=pl.BlockSpec((1, tt, cout), lambda bi, j: (bi, j, 0)),
        compiler_params=_cp(("parallel", "arbitrary")),
    )(ye, yo, w, b)


# ----------------------------- LN + QKV projection -----------------------------
def _ln_qkv_kernel(x_ref, lnw_ref, lnb_ref, wq_ref, bq_ref, wk_ref, wv_ref, bv_ref,
                   q_ref, k_ref, v_ref):
    xn = _layernorm(x_ref[...], lnw_ref[...], lnb_ref[...])    # f32
    xnb = xn.astype(jnp.bfloat16)
    q = jnp.dot(xnb, wq_ref[...], preferred_element_type=jnp.float32) + bq_ref[...]
    k = jnp.dot(xnb, wk_ref[...], preferred_element_type=jnp.float32)
    v = jnp.dot(xnb, wv_ref[...], preferred_element_type=jnp.float32) + bv_ref[...]
    q_ref[...] = q.astype(q_ref.dtype)
    k_ref[...] = k.astype(k_ref.dtype)
    v_ref[...] = v.astype(v_ref.dtype)


def _ln_qkv(x2d, p):
    R, D = x2d.shape
    tr = _pick_tile(R, 256)

    def wspec(shape):
        return pl.BlockSpec(shape, lambda i: (0,) * len(shape))

    return pl.pallas_call(
        _ln_qkv_kernel,
        out_shape=(jax.ShapeDtypeStruct((R, D), jnp.bfloat16),
                   jax.ShapeDtypeStruct((R, D), jnp.bfloat16),
                   jax.ShapeDtypeStruct((R, D), jnp.bfloat16)),
        grid=(R // tr,),
        in_specs=[
            pl.BlockSpec((tr, D), lambda i: (i, 0)),
            wspec(p['aln_w'].shape), wspec(p['aln_b'].shape),
            wspec(p['wq'].shape), wspec(p['bq'].shape),
            wspec(p['wk'].shape),
            wspec(p['wv'].shape), wspec(p['bv'].shape),
        ],
        out_specs=(pl.BlockSpec((tr, D), lambda i: (i, 0)),
                   pl.BlockSpec((tr, D), lambda i: (i, 0)),
                   pl.BlockSpec((tr, D), lambda i: (i, 0))),
        compiler_params=_cp(("parallel",)),
    )(x2d, p['aln_w'], p['aln_b'], p['wq'], p['bq'], p['wk'], p['wv'], p['bv'])


# ----------------------------- flash attention -----------------------------
def _flash_kernel(q_ref, k_ref, v_ref, o_ref, m_sc, l_sc, acc_sc):
    ki = pl.program_id(2)

    @pl.when(ki == 0)
    def _():
        m_sc[...] = jnp.full_like(m_sc, -jnp.inf)
        l_sc[...] = jnp.zeros_like(l_sc)
        acc_sc[...] = jnp.zeros_like(acc_sc)

    q = q_ref[0]                                               # (tq, dh) bf16, scale baked in
    k = k_ref[0]
    v = v_ref[0]
    s = jnp.dot(q, k.T, preferred_element_type=jnp.float32)    # (tq, tk) f32
    m_prev = m_sc[...]
    m_new = jnp.maximum(m_prev, s.max(axis=-1, keepdims=True))
    alpha = jnp.exp(m_prev - m_new)
    p = jnp.exp(s - m_new)
    l_sc[...] = alpha * l_sc[...] + p.sum(axis=-1, keepdims=True)
    acc_sc[...] = alpha * acc_sc[...] + jnp.dot(
        p.astype(v.dtype), v, preferred_element_type=jnp.float32)
    m_sc[...] = m_new

    @pl.when(ki == pl.num_programs(2) - 1)
    def _():
        inv_l = pl.reciprocal(l_sc[...], approx=True)
        o_ref[0] = (acc_sc[...] * inv_l).astype(o_ref.dtype)


def _flash_attention(q, k, v):
    BH, T, dh = q.shape
    tq = _pick_tile(T, 256)
    tk = _pick_tile(T, 256)
    return pl.pallas_call(
        _flash_kernel,
        out_shape=jax.ShapeDtypeStruct((BH, T, dh), jnp.bfloat16),
        grid=(BH, T // tq, T // tk),
        in_specs=[
            pl.BlockSpec((1, tq, dh), lambda b, qi, ki: (b, qi, 0)),
            pl.BlockSpec((1, tk, dh), lambda b, qi, ki: (b, ki, 0)),
            pl.BlockSpec((1, tk, dh), lambda b, qi, ki: (b, ki, 0)),
        ],
        out_specs=pl.BlockSpec((1, tq, dh), lambda b, qi, ki: (b, qi, 0)),
        scratch_shapes=[pltpu.VMEM((tq, 1), jnp.float32),
                        pltpu.VMEM((tq, 1), jnp.float32),
                        pltpu.VMEM((tq, dh), jnp.float32)],
        compiler_params=_cp(("parallel", "parallel", "arbitrary")),
    )(q, k, v)


# ------------------- out-projection + residual + MLP (fused) -------------------
def _attn_out_mlp_kernel(a_ref, x_ref, wo_ref, bo_ref, lnw_ref, lnb_ref,
                         w1_ref, b1_ref, w2_ref, b2_ref, o_ref,
                         xb_sc, xn_sc, acc_sc):
    j = pl.program_id(1)

    @pl.when(j == 0)
    def _():
        xb = x_ref[...] + jnp.dot(a_ref[...], wo_ref[...],
                                  preferred_element_type=jnp.float32) + bo_ref[...]
        xb_sc[...] = xb
        xn_sc[...] = _layernorm(xb, lnw_ref[...], lnb_ref[...]).astype(jnp.bfloat16)
        acc_sc[...] = jnp.zeros_like(acc_sc)

    h = _gelu(jnp.dot(xn_sc[...], w1_ref[...],
                      preferred_element_type=jnp.float32) + b1_ref[...])
    acc_sc[...] += jnp.dot(h.astype(jnp.bfloat16), w2_ref[...],
                           preferred_element_type=jnp.float32)

    @pl.when(j == pl.num_programs(1) - 1)
    def _():
        o_ref[...] = xb_sc[...] + acc_sc[...] + b2_ref[...]


def _attn_out_mlp(a2d, x2d, p):
    R, D = x2d.shape
    H4 = p['w1'].shape[1]
    tr = _pick_tile(R, 256)
    th = _pick_tile(H4, 512)

    def wspec(shape):
        return pl.BlockSpec(shape, lambda i, j: (0,) * len(shape))

    return pl.pallas_call(
        _attn_out_mlp_kernel,
        out_shape=jax.ShapeDtypeStruct((R, D), jnp.float32),
        grid=(R // tr, H4 // th),
        in_specs=[
            pl.BlockSpec((tr, D), lambda i, j: (i, 0)),        # attention output
            pl.BlockSpec((tr, D), lambda i, j: (i, 0)),        # residual stream
            wspec(p['wo'].shape), wspec(p['bo'].shape),
            wspec(p['mln_w'].shape), wspec(p['mln_b'].shape),
            pl.BlockSpec((D, th), lambda i, j: (0, j)),        # w1 tile
            pl.BlockSpec((1, th), lambda i, j: (0, j)),        # b1 tile
            pl.BlockSpec((th, D), lambda i, j: (j, 0)),        # w2 tile
            wspec(p['b2'].shape),
        ],
        out_specs=pl.BlockSpec((tr, D), lambda i, j: (i, 0)),
        scratch_shapes=[pltpu.VMEM((tr, D), jnp.float32),
                        pltpu.VMEM((tr, D), jnp.bfloat16),
                        pltpu.VMEM((tr, D), jnp.float32)],
        compiler_params=_cp(("parallel", "arbitrary")),
    )(a2d, x2d, p['wo'], p['bo'], p['mln_w'], p['mln_b'],
      p['w1'], p['b1'], p['w2'], p['b2'])


# ----------------------------- parameters / buffers -----------------------------
def sinusoids(length, channels, max_timescale=10000):
    assert channels % 2 == 0
    inc = np.log(max_timescale) / (channels // 2 - 1)
    inv = np.exp(-inc * np.arange(channels // 2))
    t = np.arange(length)[:, None] * inv[None, :]
    return jnp.asarray(np.concatenate([np.sin(t), np.cos(t)], axis=1),
                       dtype=jnp.float32)


def init_params(key, n_mels, n_ctx, n_state, n_head, n_layer):
    scale = 0.02
    dh = n_state // n_head
    cin_p = _round_up(n_mels, 128)       # lane-dense conv1 input channels

    def nrm(k, shape):
        return jax.random.normal(k, shape, jnp.float32) * scale

    def conv_w(k, cin, cout):
        # torch conv weight (Cout, Cin, K) -> kernel layout (K, Cin, Cout)
        return jnp.transpose(nrm(k, (cout, cin, 3)), (2, 1, 0))

    keys = jax.random.split(key, 4 + max(n_layer, 1))
    c1 = conv_w(keys[0], n_mels, n_state)
    c1 = jnp.pad(c1, ((0, 0), (0, cin_p - n_mels), (0, 0)))
    params = {
        'conv1_w': c1.astype(jnp.bfloat16),
        'conv1_b': nrm(keys[1], (1, n_state)),
        'conv2_w': conv_w(keys[2], n_state, n_state).astype(jnp.bfloat16),
        'conv2_b': nrm(keys[3], (1, n_state)),
        'pos_emb': sinusoids(n_ctx, n_state),
        'blocks': [],
    }
    qscale = float(dh) ** -0.5           # dh^-0.25 on q and on k each == dh^-0.5 on q
    for li in range(n_layer):
        bk = jax.random.split(keys[4 + li], 9)
        blk = dict(
            # torch Linear weight (out, in) -> kernel layout (in, out); bf16 for MXU
            wq=(jnp.transpose(nrm(bk[0], (n_state, n_state))) * qscale).astype(jnp.bfloat16),
            bq=nrm(bk[1], (1, n_state)) * qscale,
            wk=jnp.transpose(nrm(bk[2], (n_state, n_state))).astype(jnp.bfloat16),
            wv=jnp.transpose(nrm(bk[3], (n_state, n_state))).astype(jnp.bfloat16),
            bv=nrm(bk[4], (1, n_state)),
            wo=jnp.transpose(nrm(bk[5], (n_state, n_state))).astype(jnp.bfloat16),
            bo=nrm(bk[6], (1, n_state)),
            aln_w=jnp.ones((1, n_state), jnp.float32),
            aln_b=jnp.zeros((1, n_state), jnp.float32),
            w1=jnp.transpose(nrm(bk[7], (4 * n_state, n_state))).astype(jnp.bfloat16),
            b1=jnp.zeros((1, 4 * n_state), jnp.float32),
            w2=jnp.transpose(nrm(bk[8], (n_state, 4 * n_state))).astype(jnp.bfloat16),
            b2=jnp.zeros((1, n_state), jnp.float32),
            mln_w=jnp.ones((1, n_state), jnp.float32),
            mln_b=jnp.zeros((1, n_state), jnp.float32),
        )
        params['blocks'].append(blk)
    return params


# ----------------------------- full forward pass -----------------------------
def audio_encoder_forward(x, params, *, n_head, n_layer, o_layer='all_nopool'):
    """x: (B, n_mels, L) float32 — PyTorch NCL layout at the API boundary."""
    B, n_mels, L = x.shape
    assert L % 2 == 0  # TODO(synk): odd-length inputs would need an extra pad row for conv2.
    cin_p = params['conv1_w'].shape[1]
    D = params['conv1_w'].shape[2]
    H = n_head
    dh = D // H

    xc = jnp.transpose(x, (0, 2, 1))                            # (B, L, n_mels)
    if cin_p > n_mels:
        xc = jnp.pad(xc, ((0, 0), (0, 0), (0, cin_p - n_mels)))
    xp = jnp.pad(xc, ((0, 0), (1, 1), (0, 0))).astype(jnp.bfloat16)

    y1 = _conv1_gelu(xp, params['conv1_w'], params['conv1_b'])  # (B, L, D) bf16
    y2 = _conv2_gelu(y1, params['conv2_w'], params['conv2_b'])  # (B, T, D) f32
    T = y2.shape[1]

    if n_layer == 0:
        return y2

    x_seq = y2 + params['pos_emb'][:T, :]
    x2d = x_seq.reshape(B * T, D)                               # residual stream, f32

    def to_heads(t):
        return t.reshape(B, T, H, dh).transpose(0, 2, 1, 3).reshape(B * H, T, dh)

    def from_heads(t):
        return t.reshape(B, H, T, dh).transpose(0, 2, 1, 3).reshape(B * T, D)

    if o_layer == 'all_nopool':
        all_x = [x2d]
        for li in range(n_layer):
            p = params['blocks'][li]
            q, k, v = _ln_qkv(x2d, p)
            ah = _flash_attention(to_heads(q), to_heads(k), to_heads(v))
            x2d = _attn_out_mlp(from_heads(ah), x2d, p)
            all_x.append(x2d)
        all_x = [a.reshape(B, T, D) for a in all_x]
        return jnp.stack(all_x, axis=3)                         # (B, T, D, n_layer+1)

    # TODO(synk): the reference forward has no return statement for o_layer='last'
    # (implicitly returns None); we mirror that behaviour.
    return None


# ----------------------------------- main -----------------------------------
if __name__ == "__main__":
    B, n_mels, L = 2, 16, 32
    n_state, n_head, n_layer = 32, 4, 2
    T = L // 2                                                  # post-conv2 length = n_ctx

    key = jax.random.PRNGKey(0)
    kx, kp = jax.random.split(key)
    x = jax.random.normal(kx, (B, n_mels, L), jnp.float32)
    params = init_params(kp, n_mels, T, n_state, n_head, n_layer)

    fwd = jax.jit(functools.partial(audio_encoder_forward, n_head=n_head,
                                    n_layer=n_layer, o_layer='all_nopool'))
    out = fwd(x, params)
    jax.block_until_ready(out)
    assert out.shape == (B, T, n_state, n_layer + 1), out.shape
    assert bool(jnp.all(jnp.isfinite(out)))
    print("KERNEL_OK")
</pallas_src>

<mosaic_0001>
module attributes {stable_mosaic.version = 11 : i64} {
  func.func @_conv_s1_kernel(%arg0: i32, %arg1: i32, %arg2: memref<1x34x128xbf16, #tpu.memory_space<vmem>>, %arg3: memref<3x128x32xbf16, #tpu.memory_space<vmem>>, %arg4: memref<1x32xf32, #tpu.memory_space<vmem>>, %arg5: memref<1x32x32xbf16, #tpu.memory_space<vmem>>) attributes {dimension_semantics = [#tpu.dimension_semantics<parallel>, #tpu.dimension_semantics<arbitrary>], iteration_bounds = array<i64: 2, 1>, scalar_prefetch = 0 : i64, scratch_operands = 0 : i64, tpu.core_type = #tpu.core_type<tc>, window_params = [{transform_indices = @transform_0, window_bounds = array<i64: 1, 34, 128>}, {pipeline_mode = #tpu.pipeline_mode<synchronous>, transform_indices = @transform_1, window_bounds = array<i64: 3, 128, 32>}, {pipeline_mode = #tpu.pipeline_mode<synchronous>, transform_indices = @transform_2, window_bounds = array<i64: 1, 32>}, {transform_indices = @transform_3, window_bounds = array<i64: 1, 32, 32>}]} {
    %c32_i32 = arith.constant 32 : i32
    %0 = arith.muli %arg1, %c32_i32 : i32
    %1 = tpu.assume_multiple %0, 32 : i32
    %c0 = arith.constant 0 : index
    %2 = arith.index_cast %1 : i32 to index
    %c0_0 = arith.constant 0 : index
    %3 = vector.load %arg2[%c0, %2, %c0_0] : memref<1x34x128xbf16, #tpu.memory_space<vmem>>, vector<1x34x128xbf16>
    %4 = vector.shape_cast %3 : vector<1x34x128xbf16> to vector<34x128xbf16>
    %5 = vector.extract_strided_slice %4 {offsets = [0, 0], sizes = [32, 128], strides = [1, 1]} : vector<34x128xbf16> to vector<32x128xbf16>
    %c0_1 = arith.constant 0 : index
    %c0_2 = arith.constant 0 : index
    %c0_3 = arith.constant 0 : index
    %6 = vector.load %arg3[%c0_1, %c0_2, %c0_3] : memref<3x128x32xbf16, #tpu.memory_space<vmem>>, vector<1x128x32xbf16>
    %7 = vector.shape_cast %6 : vector<1x128x32xbf16> to vector<128x32xbf16>
    %cst = arith.constant dense<0.000000e+00> : vector<32x32xf32>
    %8 = tpu.matmul %5, %7, %cst {dimension_numbers = #tpu.dot_dimension_numbers<[1], [0], [0], [1], [0, 0, 1, 1], [], []>} : vector<32x128xbf16>, vector<128x32xbf16>, vector<32x32xf32> -> vector<32x32xf32>
    %9 = vector.extract_strided_slice %4 {offsets = [1, 0], sizes = [32, 128], strides = [1, 1]} : vector<34x128xbf16> to vector<32x128xbf16>
    %c1 = arith.constant 1 : index
    %c0_4 = arith.constant 0 : index
    %c0_5 = arith.constant 0 : index
    %10 = vector.load %arg3[%c1, %c0_4, %c0_5] : memref<3x128x32xbf16, #tpu.memory_space<vmem>>, vector<1x128x32xbf16>
    %11 = vector.shape_cast %10 : vector<1x128x32xbf16> to vector<128x32xbf16>
    %cst_6 = arith.constant dense<0.000000e+00> : vector<32x32xf32>
    %12 = tpu.matmul %9, %11, %cst_6 {dimension_numbers = #tpu.dot_dimension_numbers<[1], [0], [0], [1], [0, 0, 1, 1], [], []>} : vector<32x128xbf16>, vector<128x32xbf16>, vector<32x32xf32> -> vector<32x32xf32>
    %13 = arith.addf %8, %12 : vector<32x32xf32>
    %14 = vector.extract_strided_slice %4 {offsets = [2, 0], sizes = [32, 128], strides = [1, 1]} : vector<34x128xbf16> to vector<32x128xbf16>
    %c2 = arith.constant 2 : index
    %c0_7 = arith.constant 0 : index
    %c0_8 = arith.constant 0 : index
    %15 = vector.load %arg3[%c2, %c0_7, %c0_8] : memref<3x128x32xbf16, #tpu.memory_space<vmem>>, vector<1x128x32xbf16>
    %16 = vector.shape_cast %15 : vector<1x128x32xbf16> to vector<128x32xbf16>
    %cst_9 = arith.constant dense<0.000000e+00> : vector<32x32xf32>
    %17 = tpu.matmul %14, %16, %cst_9 {dimension_numbers = #tpu.dot_dimension_numbers<[1], [0], [0], [1], [0, 0, 1, 1], [], []>} : vector<32x128xbf16>, vector<128x32xbf16>, vector<32x32xf32> -> vector<32x32xf32>
    %18 = arith.addf %13, %17 : vector<32x32xf32>
    %c0_10 = arith.constant 0 : index
    %c0_11 = arith.constant 0 : index
    %19 = vector.load %arg4[%c0_10, %c0_11] : memref<1x32xf32, #tpu.memory_space<vmem>>, vector<1x32xf32>
    %20 = vector.broadcast %19 : vector<1x32xf32> to vector<32x32xf32>
    %21 = arith.addf %18, %20 : vector<32x32xf32>
    %cst_12 = arith.constant 5.000000e-01 : f32
    %22 = vector.broadcast %cst_12 : f32 to vector<32x32xf32>
    %23 = arith.mulf %22, %21 : vector<32x32xf32>
    %cst_13 = arith.constant 4.471500e-02 : f32
    %24 = vector.broadcast %cst_13 : f32 to vector<32x32xf32>
    %25 = arith.mulf %24, %21 : vector<32x32xf32>
    %26 = arith.mulf %25, %21 : vector<32x32xf32>
    %27 = arith.mulf %26, %21 : vector<32x32xf32>
    %28 = arith.addf %21, %27 : vector<32x32xf32>
    %cst_14 = arith.constant 0.797884583 : f32
    %29 = vector.broadcast %cst_14 : f32 to vector<32x32xf32>
    %30 = arith.mulf %29, %28 : vector<32x32xf32>
    %31 = math.tanh %30 : vector<32x32xf32>
    %cst_15 = arith.constant 1.000000e+00 : f32
    %32 = vector.broadcast %cst_15 : f32 to vector<32x32xf32>
    %33 = arith.addf %32, %31 : vector<32x32xf32>
    %34 = arith.mulf %23, %33 : vector<32x32xf32>
    %35 = arith.truncf %34 : vector<32x32xf32> to vector<32x32xbf16>
    %c0_16 = arith.constant 0 : index
    %c0_17 = arith.constant 0 : index
    %c0_18 = arith.constant 0 : index
    %36 = vector.load %arg5[%c0_16, %c0_17, %c0_18] : memref<1x32x32xbf16, #tpu.memory_space<vmem>>, vector<1x32x32xbf16>
    %37 = vector.shape_cast %36 : vector<1x32x32xbf16> to vector<32x32xbf16>
    %38 = vector.shape_cast %35 : vector<32x32xbf16> to vector<1x32x32xbf16>
    tpu.vector_store %arg5[%c0_16, %c0_17, %c0_18], %38 {strides = array<i32>} : memref<1x32x32xbf16, #tpu.memory_space<vmem>>, vector<1x32x32xbf16>,
    return
  }
  func.func @transform_0(%arg0: i32, %arg1: i32) -> (i32, i32, i32) {
    %c0_i32 = arith.constant 0 : i32
    %c0_i32_0 = arith.constant 0 : i32
    %c0_i32_1 = arith.constant 0 : i32
    return %arg0, %c0_i32, %c0_i32_0 : i32, i32, i32
  }
  func.func @transform_1(%arg0: i32, %arg1: i32) -> (i32, i32, i32) {
    %c0_i32 = arith.constant 0 : i32
    %c0_i32_0 = arith.constant 0 : i32
    %c0_i32_1 = arith.constant 0 : i32
    %c0_i32_2 = arith.constant 0 : i32
    return %c0_i32, %c0_i32_0, %c0_i32_1 : i32, i32, i32
  }
  func.func @transform_2(%arg0: i32, %arg1: i32) -> (i32, i32) {
    %c0_i32 = arith.constant 0 : i32
    %c0_i32_0 = arith.constant 0 : i32
    %c0_i32_1 = arith.constant 0 : i32
    return %c0_i32, %c0_i32_0 : i32, i32
  }
  func.func @transform_3(%arg0: i32, %arg1: i32) -> (i32, i32, i32) {
    %c0_i32 = arith.constant 0 : i32
    %c0_i32_0 = arith.constant 0 : i32
    return %arg0, %arg1, %c0_i32 : i32, i32, i32
  }
}

module attributes {stable_mosaic.version = 11 : i64} {
  func.func @_ln_qkv_kernel(%arg0: i32, %arg1: memref<32x32xf32, #tpu.memory_space<vmem>>, %arg2: memref<1x32xf32, #tpu.memory_space<vmem>>, %arg3: memref<1x32xf32, #tpu.memory_space<vmem>>, %arg4: memref<32x32xbf16, #tpu.memory_space<vmem>>, %arg5: memref<1x32xf32, #tpu.memory_space<vmem>>, %arg6: memref<32x32xbf16, #tpu.memory_space<vmem>>, %arg7: memref<32x32xbf16, #tpu.memory_space<vmem>>, %arg8: memref<1x32xf32, #tpu.memory_space<vmem>>, %arg9: memref<32x32xbf16, #tpu.memory_space<vmem>>, %arg10: memref<32x32xbf16, #tpu.memory_space<vmem>>, %arg11: memref<32x32xbf16, #tpu.memory_space<vmem>>) attributes {dimension_semantics = [#tpu.dimension_semantics<parallel>], iteration_bounds = array<i64: 1>, scalar_prefetch = 0 : i64, scratch_operands = 0 : i64, tpu.core_type = #tpu.core_type<tc>, window_params = [{transform_indices = @transform_0, window_bounds = array<i64: 32, 32>}, {pipeline_mode = #tpu.pipeline_mode<synchronous>, transform_indices = @transform_1, window_bounds = array<i64: 1, 32>}, {pipeline_mode = #tpu.pipeline_mode<synchronous>, transform_indices = @transform_2, window_bounds = array<i64: 1, 32>}, {pipeline_mode = #tpu.pipeline_mode<synchronous>, transform_indices = @transform_3, window_bounds = array<i64: 32, 32>}, {pipeline_mode = #tpu.pipeline_mode<synchronous>, transform_indices = @transform_4, window_bounds = array<i64: 1, 32>}, {pipeline_mode = #tpu.pipeline_mode<synchronous>, transform_indices = @transform_5, window_bounds = array<i64: 32, 32>}, {pipeline_mode = #tpu.pipeline_mode<synchronous>, transform_indices = @transform_6, window_bounds = array<i64: 32, 32>}, {pipeline_mode = #tpu.pipeline_mode<synchronous>, transform_indices = @transform_7, window_bounds = array<i64: 1, 32>}, {transform_indices = @transform_8, window_bounds = array<i64: 32, 32>}, {transform_indices = @transform_9, window_bounds = array<i64: 32, 32>}, {transform_indices = @transform_10, window_bounds = array<i64: 32, 32>}]} {
    %c0 = arith.constant 0 : index
    %c0_0 = arith.constant 0 : index
    %0 = vector.load %arg1[%c0, %c0_0] : memref<32x32xf32, #tpu.memory_space<vmem>>, vector<32x32xf32>
    %c0_1 = arith.constant 0 : index
    %c0_2 = arith.constant 0 : index
    %1 = vector.load %arg2[%c0_1, %c0_2] : memref<1x32xf32, #tpu.memory_space<vmem>>, vector<1x32xf32>
    %c0_3 = arith.constant 0 : index
    %c0_4 = arith.constant 0 : index
    %2 = vector.load %arg3[%c0_3, %c0_4] : memref<1x32xf32, #tpu.memory_space<vmem>>, vector<1x32xf32>
    %cst = arith.constant dense<0.000000e+00> : vector<32xf32>
    %3 = vector.multi_reduction <add>, %0, %cst [1] : vector<32x32xf32> to vector<32xf32>
    %4 = vector.shape_cast %3 : vector<32xf32> to vector<32x1xf32>
    %cst_5 = arith.constant 3.200000e+01 : f32
    %5 = vector.broadcast %cst_5 : f32 to vector<32x1xf32>
    %6 = arith.divf %4, %5 : vector<32x1xf32>
    %7 = vector.broadcast %6 : vector<32x1xf32> to vector<32x32xf32>
    %8 = arith.subf %0, %7 : vector<32x32xf32>
    %9 = arith.mulf %8, %8 : vector<32x32xf32>
    %cst_6 = arith.constant dense<0.000000e+00> : vector<32xf32>
    %10 = vector.multi_reduction <add>, %9, %cst_6 [1] : vector<32x32xf32> to vector<32xf32>
    %11 = vector.shape_cast %10 : vector<32xf32> to vector<32x1xf32>
    %cst_7 = arith.constant 3.200000e+01 : f32
    %12 = vector.broadcast %cst_7 : f32 to vector<32x1xf32>
    %13 = arith.divf %11, %12 : vector<32x1xf32>
    %cst_8 = arith.constant 9.99999974E-6 : f32
    %14 = vector.broadcast %cst_8 : f32 to vector<32x1xf32>
    %15 = arith.addf %13, %14 : vector<32x1xf32>
    %16 = math.rsqrt %15 : vector<32x1xf32>
    %17 = vector.broadcast %16 : vector<32x1xf32> to vector<32x32xf32>
    %18 = arith.mulf %8, %17 : vector<32x32xf32>
    %19 = vector.broadcast %1 : vector<1x32xf32> to vector<32x32xf32>
    %20 = arith.mulf %18, %19 : vector<32x32xf32>
    %21 = vector.broadcast %2 : vector<1x32xf32> to vector<32x32xf32>
    %22 = arith.addf %20, %21 : vector<32x32xf32>
    %23 = arith.truncf %22 : vector<32x32xf32> to vector<32x32xbf16>
    %c0_9 = arith.constant 0 : index
    %c0_10 = arith.constant 0 : index
    %24 = vector.load %arg4[%c0_9, %c0_10] : memref<32x32xbf16, #tpu.memory_space<vmem>>, vector<32x32xbf16>
    %cst_11 = arith.constant dense<0.000000e+00> : vector<32x32xf32>
    %25 = tpu.matmul %23, %24, %cst_11 {dimension_numbers = #tpu.dot_dimension_numbers<[1], [0], [0], [1], [0, 0, 1, 1], [], []>} : vector<32x32xbf16>, vector<32x32xbf16>, vector<32x32xf32> -> vector<32x32xf32>
    %c0_12 = arith.constant 0 : index
    %c0_13 = arith.constant 0 : index
    %26 = vector.load %arg5[%c0_12, %c0_13] : memref<1x32xf32, #tpu.memory_space<vmem>>, vector<1x32xf32>
    %27 = vector.broadcast %26 : vector<1x32xf32> to vector<32x32xf32>
    %28 = arith.addf %25, %27 : vector<32x32xf32>
    %c0_14 = arith.constant 0 : index
    %c0_15 = arith.constant 0 : index
    %29 = vector.load %arg6[%c0_14, %c0_15] : memref<32x32xbf16, #tpu.memory_space<vmem>>, vector<32x32xbf16>
    %cst_16 = arith.constant dense<0.000000e+00> : vector<32x32xf32>
    %30 = tpu.matmul %23, %29, %cst_16 {dimension_numbers = #tpu.dot_dimension_numbers<[1], [0], [0], [1], [0, 0, 1, 1], [], []>} : vector<32x32xbf16>, vector<32x32xbf16>, vector<32x32xf32> -> vector<32x32xf32>
    %c0_17 = arith.constant 0 : index
    %c0_18 = arith.constant 0 : index
    %31 = vector.load %arg7[%c0_17, %c0_18] : memref<32x32xbf16, #tpu.memory_space<vmem>>, vector<32x32xbf16>
    %cst_19 = arith.constant dense<0.000000e+00> : vector<32x32xf32>
    %32 = tpu.matmul %23, %31, %cst_19 {dimension_numbers = #tpu.dot_dimension_numbers<[1], [0], [0], [1], [0, 0, 1, 1], [], []>} : vector<32x32xbf16>, vector<32x32xbf16>, vector<32x32xf32> -> vector<32x32xf32>
    %c0_20 = arith.constant 0 : index
    %c0_21 = arith.constant 0 : index
    %33 = vector.load %arg8[%c0_20, %c0_21] : memref<1x32xf32, #tpu.memory_space<vmem>>, vector<1x32xf32>
    %34 = vector.broadcast %33 : vector<1x32xf32> to vector<32x32xf32>
    %35 = arith.addf %32, %34 : vector<32x32xf32>
    %36 = arith.truncf %28 : vector<32x32xf32> to vector<32x32xbf16>
    %c0_22 = arith.constant 0 : index
    %c0_23 = arith.constant 0 : index
    %37 = vector.load %arg9[%c0_22, %c0_23] : memref<32x32xbf16, #tpu.memory_space<vmem>>, vector<32x32xbf16>
    tpu.vector_store %arg9[%c0_22, %c0_23], %36 {strides = array<i32>} : memref<32x32xbf16, #tpu.memory_space<vmem>>, vector<32x32xbf16>,
    %38 = arith.truncf %30 : vector<32x32xf32> to vector<32x32xbf16>
    %c0_24 = arith.constant 0 : index
    %c0_25 = arith.constant 0 : index
    %39 = vector.load %arg10[%c0_24, %c0_25] : memref<32x32xbf16, #tpu.memory_space<vmem>>, vector<32x32xbf16>
    tpu.vector_store %arg10[%c0_24, %c0_25], %38 {strides = array<i32>} : memref<32x32xbf16, #tpu.memory_space<vmem>>, vector<32x32xbf16>,
    %40 = arith.truncf %35 : vector<32x32xf32> to vector<32x32xbf16>
    %c0_26 = arith.constant 0 : index
    %c0_27 = arith.constant 0 : index
    %41 = vector.load %arg11[%c0_26, %c0_27] : memref<32x32xbf16, #tpu.memory_space<vmem>>, vector<32x32xbf16>
    tpu.vector_store %arg11[%c0_26, %c0_27], %40 {strides = array<i32>} : memref<32x32xbf16, #tpu.memory_space<vmem>>, vector<32x32xbf16>,
    return
  }
  func.func @transform_0(%arg0: i32) -> (i32, i32) {
    %c0_i32 = arith.constant 0 : i32
    %c0_i32_0 = arith.constant 0 : i32
    return %arg0, %c0_i32 : i32, i32
  }
  func.func @transform_1(%arg0: i32) -> (i32, i32) {
    %c0_i32 = arith.constant 0 : i32
    %c0_i32_0 = arith.constant 0 : i32
    %c0_i32_1 = arith.constant 0 : i32
    return %c0_i32, %c0_i32_0 : i32, i32
  }
  func.func @transform_2(%arg0: i32) -> (i32, i32) {
    %c0_i32 = arith.constant 0 : i32
    %c0_i32_0 = arith.constant 0 : i32
    %c0_i32_1 = arith.constant 0 : i32
    return %c0_i32, %c0_i32_0 : i32, i32
  }
  func.func @transform_3(%arg0: i32) -> (i32, i32) {
    %c0_i32 = arith.constant 0 : i32
    %c0_i32_0 = arith.constant 0 : i32
    %c0_i32_1 = arith.constant 0 : i32
    return %c0_i32, %c0_i32_0 : i32, i32
  }
  func.func @transform_4(%arg0: i32) -> (i32, i32) {
    %c0_i32 = arith.constant 0 : i32
    %c0_i32_0 = arith.constant 0 : i32
    %c0_i32_1 = arith.constant 0 : i32
    return %c0_i32, %c0_i32_0 : i32, i32
  }
  func.func @transform_5(%arg0: i32) -> (i32, i32) {
    %c0_i32 = arith.constant 0 : i32
    %c0_i32_0 = arith.constant 0 : i32
    %c0_i32_1 = arith.constant 0 : i32
    return %c0_i32, %c0_i32_0 : i32, i32
  }
  func.func @transform_6(%arg0: i32) -> (i32, i32) {
    %c0_i32 = arith.constant 0 : i32
    %c0_i32_0 = arith.constant 0 : i32
    %c0_i32_1 = arith.constant 0 : i32
    return %c0_i32, %c0_i32_0 : i32, i32
  }
  func.func @transform_7(%arg0: i32) -> (i32, i32) {
    %c0_i32 = arith.constant 0 : i32
    %c0_i32_0 = arith.constant 0 : i32
    %c0_i32_1 = arith.constant 0 : i32
    return %c0_i32, %c0_i32_0 : i32, i32
  }
  func.func @transform_8(%arg0: i32) -> (i32, i32) {
    %c0_i32 = arith.constant 0 : i32
    %c0_i32_0 = arith.constant 0 : i32
    return %arg0, %c0_i32 : i32, i32
  }
  func.func @transform_9(%arg0: i32) -> (i32, i32) {
    %c0_i32 = arith.constant 0 : i32
    %c0_i32_0 = arith.constant 0 : i32
    return %arg0, %c0_i32 : i32, i32
  }
  func.func @transform_10(%arg0: i32) -> (i32, i32) {
    %c0_i32 = arith.constant 0 : i32
    %c0_i32_0 = arith.constant 0 : i32
    return %arg0, %c0_i32 : i32, i32
  }
}

module attributes {stable_mosaic.version = 11 : i64} {
  func.func @_conv_s2_kernel(%arg0: i32, %arg1: i32, %arg2: memref<1x17x32xbf16, #tpu.memory_space<vmem>>, %arg3: memref<1x17x32xbf16, #tpu.memory_space<vmem>>, %arg4: memref<3x32x32xbf16, #tpu.memory_space<vmem>>, %arg5: memref<1x32xf32, #tpu.memory_space<vmem>>, %arg6: memref<1x16x32xf32, #tpu.memory_space<vmem>>) attributes {dimension_semantics = [#tpu.dimension_semantics<parallel>, #tpu.dimension_semantics<arbitrary>], iteration_bounds = array<i64: 2, 1>, scalar_prefetch = 0 : i64, scratch_operands = 0 : i64, tpu.core_type = #tpu.core_type<tc>, window_params = [{transform_indices = @transform_0, window_bounds = array<i64: 1, 17, 32>}, {transform_indices = @transform_1, window_bounds = array<i64: 1, 17, 32>}, {pipeline_mode = #tpu.pipeline_mode<synchronous>, transform_indices = @transform_2, window_bounds = array<i64: 3, 32, 32>}, {pipeline_mode = #tpu.pipeline_mode<synchronous>, transform_indices = @transform_3, window_bounds = array<i64: 1, 32>}, {transform_indices = @transform_4, window_bounds = array<i64: 1, 16, 32>}]} {
    %c16_i32 = arith.constant 16 : i32
    %0 = arith.muli %arg1, %c16_i32 : i32
    %1 = tpu.assume_multiple %0, 16 : i32
    %c0 = arith.constant 0 : index
    %2 = arith.index_cast %1 : i32 to index
    %c0_0 = arith.constant 0 : index
    %3 = vector.load %arg2[%c0, %2, %c0_0] : memref<1x17x32xbf16, #tpu.memory_space<vmem>>, vector<1x17x32xbf16>
    %4 = vector.shape_cast %3 : vector<1x17x32xbf16> to vector<17x32xbf16>
    %c0_1 = arith.constant 0 : index
    %5 = arith.index_cast %1 : i32 to index
    %c0_2 = arith.constant 0 : index
    %6 = vector.load %arg3[%c0_1, %5, %c0_2] : memref<1x17x32xbf16, #tpu.memory_space<vmem>>, vector<1x16x32xbf16>
    %7 = vector.shape_cast %6 : vector<1x16x32xbf16> to vector<16x32xbf16>
    %8 = vector.extract_strided_slice %4 {offsets = [0, 0], sizes = [16, 32], strides = [1, 1]} : vector<17x32xbf16> to vector<16x32xbf16>
    %c0_3 = arith.constant 0 : index
    %c0_4 = arith.constant 0 : index
    %c0_5 = arith.constant 0 : index
    %9 = vector.load %arg4[%c0_3, %c0_4, %c0_5] : memref<3x32x32xbf16, #tpu.memory_space<vmem>>, vector<1x32x32xbf16>
    %10 = vector.shape_cast %9 : vector<1x32x32xbf16> to vector<32x32xbf16>
    %cst = arith.constant dense<0.000000e+00> : vector<16x32xf32>
    %11 = tpu.matmul %8, %10, %cst {dimension_numbers = #tpu.dot_dimension_numbers<[1], [0], [0], [1], [0, 0, 1, 1], [], []>} : vector<16x32xbf16>, vector<32x32xbf16>, vector<16x32xf32> -> vector<16x32xf32>
    %c1 = arith.constant 1 : index
    %c0_6 = arith.constant 0 : index
    %c0_7 = arith.constant 0 : index
    %12 = vector.load %arg4[%c1, %c0_6, %c0_7] : memref<3x32x32xbf16, #tpu.memory_space<vmem>>, vector<1x32x32xbf16>
    %13 = vector.shape_cast %12 : vector<1x32x32xbf16> to vector<32x32xbf16>
    %cst_8 = arith.constant dense<0.000000e+00> : vector<16x32xf32>
    %14 = tpu.matmul %7, %13, %cst_8 {dimension_numbers = #tpu.dot_dimension_numbers<[1], [0], [0], [1], [0, 0, 1, 1], [], []>} : vector<16x32xbf16>, vector<32x32xbf16>, vector<16x32xf32> -> vector<16x32xf32>
    %15 = arith.addf %11, %14 : vector<16x32xf32>
    %16 = vector.extract_strided_slice %4 {offsets = [1, 0], sizes = [16, 32], strides = [1, 1]} : vector<17x32xbf16> to vector<16x32xbf16>
    %c2 = arith.constant 2 : index
    %c0_9 = arith.constant 0 : index
    %c0_10 = arith.constant 0 : index
    %17 = vector.load %arg4[%c2, %c0_9, %c0_10] : memref<3x32x32xbf16, #tpu.memory_space<vmem>>, vector<1x32x32xbf16>
    %18 = vector.shape_cast %17 : vector<1x32x32xbf16> to vector<32x32xbf16>
    %cst_11 = arith.constant dense<0.000000e+00> : vector<16x32xf32>
    %19 = tpu.matmul %16, %18, %cst_11 {dimension_numbers = #tpu.dot_dimension_numbers<[1], [0], [0], [1], [0, 0, 1, 1], [], []>} : vector<16x32xbf16>, vector<32x32xbf16>, vector<16x32xf32> -> vector<16x32xf32>
    %20 = arith.addf %15, %19 : vector<16x32xf32>
    %c0_12 = arith.constant 0 : index
    %c0_13 = arith.constant 0 : index
    %21 = vector.load %arg5[%c0_12, %c0_13] : memref<1x32xf32, #tpu.memory_space<vmem>>, vector<1x32xf32>
    %22 = vector.broadcast %21 : vector<1x32xf32> to vector<16x32xf32>
    %23 = arith.addf %20, %22 : vector<16x32xf32>
    %cst_14 = arith.constant 5.000000e-01 : f32
    %24 = vector.broadcast %cst_14 : f32 to vector<16x32xf32>
    %25 = arith.mulf %24, %23 : vector<16x32xf32>
    %cst_15 = arith.constant 4.471500e-02 : f32
    %26 = vector.broadcast %cst_15 : f32 to vector<16x32xf32>
    %27 = arith.mulf %26, %23 : vector<16x32xf32>
    %28 = arith.mulf %27, %23 : vector<16x32xf32>
    %29 = arith.mulf %28, %23 : vector<16x32xf32>
    %30 = arith.addf %23, %29 : vector<16x32xf32>
    %cst_16 = arith.constant 0.797884583 : f32
    %31 = vector.broadcast %cst_16 : f32 to vector<16x32xf32>
    %32 = arith.mulf %31, %30 : vector<16x32xf32>
    %33 = math.tanh %32 : vector<16x32xf32>
    %cst_17 = arith.constant 1.000000e+00 : f32
    %34 = vector.broadcast %cst_17 : f32 to vector<16x32xf32>
    %35 = arith.addf %34, %33 : vector<16x32xf32>
    %36 = arith.mulf %25, %35 : vector<16x32xf32>
    %c0_18 = arith.constant 0 : index
    %c0_19 = arith.constant 0 : index
    %c0_20 = arith.constant 0 : index
    %37 = vector.load %arg6[%c0_18, %c0_19, %c0_20] : memref<1x16x32xf32, #tpu.memory_space<vmem>>, vector<1x16x32xf32>
    %38 = vector.shape_cast %37 : vector<1x16x32xf32> to vector<16x32xf32>
    %39 = vector.shape_cast %36 : vector<16x32xf32> to vector<1x16x32xf32>
    tpu.vector_store %arg6[%c0_18, %c0_19, %c0_20], %39 {strides = array<i32>} : memref<1x16x32xf32, #tpu.memory_space<vmem>>, vector<1x16x32xf32>,
    return
  }
  func.func @transform_0(%arg0: i32, %arg1: i32) -> (i32, i32, i32) {
    %c0_i32 = arith.constant 0 : i32
    %c0_i32_0 = arith.constant 0 : i32
    %c0_i32_1 = arith.constant 0 : i32
    return %arg0, %c0_i32, %c0_i32_0 : i32, i32, i32
  }
  func.func @transform_1(%arg0: i32, %arg1: i32) -> (i32, i32, i32) {
    %c0_i32 = arith.constant 0 : i32
    %c0_i32_0 = arith.constant 0 : i32
    %c0_i32_1 = arith.constant 0 : i32
    return %arg0, %c0_i32, %c0_i32_0 : i32, i32, i32
  }
  func.func @transform_2(%arg0: i32, %arg1: i32) -> (i32, i32, i32) {
    %c0_i32 = arith.constant 0 : i32
    %c0_i32_0 = arith.constant 0 : i32
    %c0_i32_1 = arith.constant 0 : i32
    %c0_i32_2 = arith.constant 0 : i32
    return %c0_i32, %c0_i32_0, %c0_i32_1 : i32, i32, i32
  }
  func.func @transform_3(%arg0: i32, %arg1: i32) -> (i32, i32) {
    %c0_i32 = arith.constant 0 : i32
    %c0_i32_0 = arith.constant 0 : i32
    %c0_i32_1 = arith.constant 0 : i32
    return %c0_i32, %c0_i32_0 : i32, i32
  }
  func.func @transform_4(%arg0: i32, %arg1: i32) -> (i32, i32, i32) {
    %c0_i32 = arith.constant 0 : i32
    %c0_i32_0 = arith.constant 0 : i32
    return %arg0, %arg1, %c0_i32 : i32, i32, i32
  }
}

module attributes {stable_mosaic.version = 11 : i64} {
  func.func @_flash_kernel(%arg0: i32, %arg1: i32, %arg2: i32, %arg3: memref<1x16x8xbf16, #tpu.memory_space<vmem>>, %arg4: memref<1x16x8xbf16, #tpu.memory_space<vmem>>, %arg5: memref<1x16x8xbf16, #tpu.memory_space<vmem>>, %arg6: memref<1x16x8xbf16, #tpu.memory_space<vmem>>, %arg7: memref<16x1xf32, #tpu.memory_space<vmem>>, %arg8: memref<16x1xf32, #tpu.memory_space<vmem>>, %arg9: memref<16x8xf32, #tpu.memory_space<vmem>>) attributes {dimension_semantics = [#tpu.dimension_semantics<parallel>, #tpu.dimension_semantics<parallel>, #tpu.dimension_semantics<arbitrary>], iteration_bounds = array<i64: 8, 1, 1>, scalar_prefetch = 0 : i64, scratch_operands = 3 : i64, tpu.core_type = #tpu.core_type<tc>, window_params = [{transform_indices = @transform_0, window_bounds = array<i64: 1, 16, 8>}, {transform_indices = @transform_1, window_bounds = array<i64: 1, 16, 8>}, {transform_indices = @transform_2, window_bounds = array<i64: 1, 16, 8>}, {transform_indices = @transform_3, window_bounds = array<i64: 1, 16, 8>}]} {
    %c0_i32 = arith.constant 0 : i32
    %0 = arith.cmpi eq, %arg2, %c0_i32 : i32
    %1 = arith.extui %0 : i1 to i32
    %c0_i32_0 = arith.constant 0 : i32
    %2 = arith.cmpi ne, %1, %c0_i32_0 : i32
    scf.if %2 {
      %cst_26 = arith.constant 0xFF800000 : f32
      %37 = vector.broadcast %cst_26 : f32 to vector<16x1xf32>
      %c0_27 = arith.constant 0 : index
      %c0_28 = arith.constant 0 : index
      %38 = vector.load %arg7[%c0_27, %c0_28] : memref<16x1xf32, #tpu.memory_space<vmem>>, vector<16x1xf32>
      tpu.vector_store %arg7[%c0_27, %c0_28], %37 {strides = array<i32>} : memref<16x1xf32, #tpu.memory_space<vmem>>, vector<16x1xf32>,
      %cst_29 = arith.constant 0.000000e+00 : f32
      %39 = vector.broadcast %cst_29 : f32 to vector<16x1xf32>
      %c0_30 = arith.constant 0 : index
      %c0_31 = arith.constant 0 : index
      %40 = vector.load %arg8[%c0_30, %c0_31] : memref<16x1xf32, #tpu.memory_space<vmem>>, vector<16x1xf32>
      tpu.vector_store %arg8[%c0_30, %c0_31], %39 {strides = array<i32>} : memref<16x1xf32, #tpu.memory_space<vmem>>, vector<16x1xf32>,
      %cst_32 = arith.constant 0.000000e+00 : f32
      %41 = vector.broadcast %cst_32 : f32 to vector<16x8xf32>
      %c0_33 = arith.constant 0 : index
      %c0_34 = arith.constant 0 : index
      %42 = vector.load %arg9[%c0_33, %c0_34] : memref<16x8xf32, #tpu.memory_space<vmem>>, vector<16x8xf32>
      tpu.vector_store %arg9[%c0_33, %c0_34], %41 {strides = array<i32>} : memref<16x8xf32, #tpu.memory_space<vmem>>, vector<16x8xf32>,
    } else {
    }
    %c0 = arith.constant 0 : index
    %c0_1 = arith.constant 0 : index
    %c0_2 = arith.constant 0 : index
    %3 = vector.load %arg3[%c0, %c0_1, %c0_2] : memref<1x16x8xbf16, #tpu.memory_space<vmem>>, vector<1x16x8xbf16>
    %4 = vector.shape_cast %3 : vector<1x16x8xbf16> to vector<16x8xbf16>
    %c0_3 = arith.constant 0 : index
    %c0_4 = arith.constant 0 : index
    %c0_5 = arith.constant 0 : index
    %5 = vector.load %arg4[%c0_3, %c0_4, %c0_5] : memref<1x16x8xbf16, #tpu.memory_space<vmem>>, vector<1x16x8xbf16>
    %6 = vector.shape_cast %5 : vector<1x16x8xbf16> to vector<16x8xbf16>
    %c0_6 = arith.constant 0 : index
    %c0_7 = arith.constant 0 : index
    %c0_8 = arith.constant 0 : index
    %7 = vector.load %arg5[%c0_6, %c0_7, %c0_8] : memref<1x16x8xbf16, #tpu.memory_space<vmem>>, vector<1x16x8xbf16>
    %8 = vector.shape_cast %7 : vector<1x16x8xbf16> to vector<16x8xbf16>
    %9 = tpu.transpose %6, [1, 0] : vector<16x8xbf16> -> vector<8x16xbf16>
    %cst = arith.constant dense<0.000000e+00> : vector<16x16xf32>
    %10 = tpu.matmul %4, %9, %cst {dimension_numbers = #tpu.dot_dimension_numbers<[1], [0], [0], [1], [0, 0, 1, 1], [], []>} : vector<16x8xbf16>, vector<8x16xbf16>, vector<16x16xf32> -> vector<16x16xf32>
    %c0_9 = arith.constant 0 : index
    %c0_10 = arith.constant 0 : index
    %11 = vector.load %arg7[%c0_9, %c0_10] : memref<16x1xf32, #tpu.memory_space<vmem>>, vector<16x1xf32>
    %cst_11 = arith.constant dense<0xFF800000> : vector<16xf32>
    %12 = vector.multi_reduction <maximumf>, %10, %cst_11 [1] : vector<16x16xf32> to vector<16xf32>
    %13 = vector.shape_cast %12 : vector<16xf32> to vector<16x1xf32>
    %14 = arith.maximumf %11, %13 : vector<16x1xf32>
    %15 = arith.subf %11, %14 : vector<16x1xf32>
    %16 = math.exp %15 : vector<16x1xf32>
    %17 = vector.broadcast %14 : vector<16x1xf32> to vector<16x16xf32>
    %18 = arith.subf %10, %17 : vector<16x16xf32>
    %19 = math.exp %18 : vector<16x16xf32>
    %c0_12 = arith.constant 0 : index
    %c0_13 = arith.constant 0 : index
    %20 = vector.load %arg8[%c0_12, %c0_13] : memref<16x1xf32, #tpu.memory_space<vmem>>, vector<16x1xf32>
    %21 = arith.mulf %16, %20 : vector<16x1xf32>
    %cst_14 = arith.constant dense<0.000000e+00> : vector<16xf32>
    %22 = vector.multi_reduction <add>, %19, %cst_14 [1] : vector<16x16xf32> to vector<16xf32>
    %23 = vector.shape_cast %22 : vector<16xf32> to vector<16x1xf32>
    %24 = arith.addf %21, %23 : vector<16x1xf32>
    %c0_15 = arith.constant 0 : index
    %c0_16 = arith.constant 0 : index
    %25 = vector.load %arg8[%c0_15, %c0_16] : memref<16x1xf32, #tpu.memory_space<vmem>>, vector<16x1xf32>
    tpu.vector_store %arg8[%c0_15, %c0_16], %24 {strides = array<i32>} : memref<16x1xf32, #tpu.memory_space<vmem>>, vector<16x1xf32>,
    %c0_17 = arith.constant 0 : index
    %c0_18 = arith.constant 0 : index
    %26 = vector.load %arg9[%c0_17, %c0_18] : memref<16x8xf32, #tpu.memory_space<vmem>>, vector<16x8xf32>
    %27 = vector.broadcast %16 : vector<16x1xf32> to vector<16x8xf32>
    %28 = arith.mulf %27, %26 : vector<16x8xf32>
    %29 = arith.truncf %19 : vector<16x16xf32> to vector<16x16xbf16>
    %cst_19 = arith.constant dense<0.000000e+00> : vector<16x8xf32>
    %30 = tpu.matmul %29, %8, %cst_19 {dimension_numbers = #tpu.dot_dimension_numbers<[1], [0], [0], [1], [0, 0, 1, 1], [], []>} : vector<16x16xbf16>, vector<16x8xbf16>, vector<16x8xf32> -> vector<16x8xf32>
    %31 = arith.addf %28, %30 : vector<16x8xf32>
    %c0_20 = arith.constant 0 : index
    %c0_21 = arith.constant 0 : index
    %32 = vector.load %arg9[%c0_20, %c0_21] : memref<16x8xf32, #tpu.memory_space<vmem>>, vector<16x8xf32>
    tpu.vector_store %arg9[%c0_20, %c0_21], %31 {strides = array<i32>} : memref<16x8xf32, #tpu.memory_space<vmem>>, vector<16x8xf32>,
    %c0_22 = arith.constant 0 : index
    %c0_23 = arith.constant 0 : index
    %33 = vector.load %arg7[%c0_22, %c0_23] : memref<16x1xf32, #tpu.memory_space<vmem>>, vector<16x1xf32>
    tpu.vector_store %arg7[%c0_22, %c0_23], %14 {strides = array<i32>} : memref<16x1xf32, #tpu.memory_space<vmem>>, vector<16x1xf32>,
    %c0_i32_24 = arith.constant 0 : i32
    %34 = arith.cmpi eq, %arg2, %c0_i32_24 : i32
    %35 = arith.extui %34 : i1 to i32
    %c0_i32_25 = arith.constant 0 : i32
    %36 = arith.cmpi ne, %35, %c0_i32_25 : i32
    scf.if %36 {
      %c0_26 = arith.constant 0 : index
      %c0_27 = arith.constant 0 : index
      %37 = vector.load %arg8[%c0_26, %c0_27] : memref<16x1xf32, #tpu.memory_space<vmem>>, vector<16x1xf32>
      %38 = tpu.reciprocal %37 {approx = true} : vector<16x1xf32> -> vector<16x1xf32>
      %c0_28 = arith.constant 0 : index
      %c0_29 = arith.constant 0 : index
      %39 = vector.load %arg9[%c0_28, %c0_29] : memref<16x8xf32, #tpu.memory_space<vmem>>, vector<16x8xf32>
      %40 = vector.broadcast %38 : vector<16x1xf32> to vector<16x8xf32>
      %41 = arith.mulf %39, %40 : vector<16x8xf32>
      %42 = arith.truncf %41 : vector<16x8xf32> to vector<16x8xbf16>
      %c0_30 = arith.constant 0 : index
      %c0_31 = arith.constant 0 : index
      %c0_32 = arith.constant 0 : index
      %43 = vector.load %arg6[%c0_30, %c0_31, %c0_32] : memref<1x16x8xbf16, #tpu.memory_space<vmem>>, vector<1x16x8xbf16>
      %44 = vector.shape_cast %43 : vector<1x16x8xbf16> to vector<16x8xbf16>
      %45 = vector.shape_cast %42 : vector<16x8xbf16> to vector<1x16x8xbf16>
      tpu.vector_store %arg6[%c0_30, %c0_31, %c0_32], %45 {strides = array<i32>} : memref<1x16x8xbf16, #tpu.memory_space<vmem>>, vector<1x16x8xbf16>,
    } else {
    }
    return
  }
  func.func @transform_0(%arg0: i32, %arg1: i32, %arg2: i32) -> (i32, i32, i32) {
    %c0_i32 = arith.constant 0 : i32
    %c0_i32_0 = arith.constant 0 : i32
    return %arg0, %arg1, %c0_i32 : i32, i32, i32
  }
  func.func @transform_1(%arg0: i32, %arg1: i32, %arg2: i32) -> (i32, i32, i32) {
    %c0_i32 = arith.constant 0 : i32
    %c0_i32_0 = arith.constant 0 : i32
    return %arg0, %arg2, %c0_i32 : i32, i32, i32
  }
  func.func @transform_2(%arg0: i32, %arg1: i32, %arg2: i32) -> (i32, i32, i32) {
    %c0_i32 = arith.constant 0 : i32
    %c0_i32_0 = arith.constant 0 : i32
    return %arg0, %arg2, %c0_i32 : i32, i32, i32
  }
  func.func @transform_3(%arg0: i32, %arg1: i32, %arg2: i32) -> (i32, i32, i32) {
    %c0_i32 = arith.constant 0 : i32
    %c0_i32_0 = arith.constant 0 : i32
    return %arg0, %arg1, %c0_i32 : i32, i32, i32
  }
}

module attributes {stable_mosaic.version = 11 : i64} {
  func.func @_attn_out_mlp_kernel(%arg0: i32, %arg1: i32, %arg2: memref<32x32xbf16, #tpu.memory_space<vmem>>, %arg3: memref<32x32xf32, #tpu.memory_space<vmem>>, %arg4: memref<32x32xbf16, #tpu.memory_space<vmem>>, %arg5: memref<1x32xf32, #tpu.memory_space<vmem>>, %arg6: memref<1x32xf32, #tpu.memory_space<vmem>>, %arg7: memref<1x32xf32, #tpu.memory_space<vmem>>, %arg8: memref<32x128xbf16, #tpu.memory_space<vmem>>, %arg9: memref<1x128xf32, #tpu.memory_space<vmem>>, %arg10: memref<128x32xbf16, #tpu.memory_space<vmem>>, %arg11: memref<1x32xf32, #tpu.memory_space<vmem>>, %arg12: memref<32x32xf32, #tpu.memory_space<vmem>>, %arg13: memref<32x32xf32, #tpu.memory_space<vmem>>, %arg14: memref<32x32xbf16, #tpu.memory_space<vmem>>, %arg15: memref<32x32xf32, #tpu.memory_space<vmem>>) attributes {dimension_semantics = [#tpu.dimension_semantics<parallel>, #tpu.dimension_semantics<arbitrary>], iteration_bounds = array<i64: 1, 1>, scalar_prefetch = 0 : i64, scratch_operands = 3 : i64, tpu.core_type = #tpu.core_type<tc>, window_params = [{transform_indices = @transform_0, window_bounds = array<i64: 32, 32>}, {transform_indices = @transform_1, window_bounds = array<i64: 32, 32>}, {pipeline_mode = #tpu.pipeline_mode<synchronous>, transform_indices = @transform_2, window_bounds = array<i64: 32, 32>}, {pipeline_mode = #tpu.pipeline_mode<synchronous>, transform_indices = @transform_3, window_bounds = array<i64: 1, 32>}, {pipeline_mode = #tpu.pipeline_mode<synchronous>, transform_indices = @transform_4, window_bounds = array<i64: 1, 32>}, {pipeline_mode = #tpu.pipeline_mode<synchronous>, transform_indices = @transform_5, window_bounds = array<i64: 1, 32>}, {transform_indices = @transform_6, window_bounds = array<i64: 32, 128>}, {transform_indices = @transform_7, window_bounds = array<i64: 1, 128>}, {transform_indices = @transform_8, window_bounds = array<i64: 128, 32>}, {pipeline_mode = #tpu.pipeline_mode<synchronous>, transform_indices = @transform_9, window_bounds = array<i64: 1, 32>}, {transform_indices = @transform_10, window_bounds = array<i64: 32, 32>}]} {
    %c0_i32 = arith.constant 0 : i32
    %0 = arith.cmpi eq, %arg1, %c0_i32 : i32
    %1 = arith.extui %0 : i1 to i32
    %c0_i32_0 = arith.constant 0 : i32
    %2 = arith.cmpi ne, %1, %c0_i32_0 : i32
    scf.if %2 {
      %c0_19 = arith.constant 0 : index
      %c0_20 = arith.constant 0 : index
      %31 = vector.load %arg3[%c0_19, %c0_20] : memref<32x32xf32, #tpu.memory_space<vmem>>, vector<32x32xf32>
      %c0_21 = arith.constant 0 : index
      %c0_22 = arith.constant 0 : index
      %32 = vector.load %arg2[%c0_21, %c0_22] : memref<32x32xbf16, #tpu.memory_space<vmem>>, vector<32x32xbf16>
      %c0_23 = arith.constant 0 : index
      %c0_24 = arith.constant 0 : index
      %33 = vector.load %arg4[%c0_23, %c0_24] : memref<32x32xbf16, #tpu.memory_space<vmem>>, vector<32x32xbf16>
      %cst_25 = arith.constant dense<0.000000e+00> : vector<32x32xf32>
      %34 = tpu.matmul %32, %33, %cst_25 {dimension_numbers = #tpu.dot_dimension_numbers<[1], [0], [0], [1], [0, 0, 1, 1], [], []>} : vector<32x32xbf16>, vector<32x32xbf16>, vector<32x32xf32> -> vector<32x32xf32>
      %35 = arith.addf %31, %34 : vector<32x32xf32>
      %c0_26 = arith.constant 0 : index
      %c0_27 = arith.constant 0 : index
      %36 = vector.load %arg5[%c0_26, %c0_27] : memref<1x32xf32, #tpu.memory_space<vmem>>, vector<1x32xf32>
      %37 = vector.broadcast %36 : vector<1x32xf32> to vector<32x32xf32>
      %38 = arith.addf %35, %37 : vector<32x32xf32>
      %c0_28 = arith.constant 0 : index
      %c0_29 = arith.constant 0 : index
      %39 = vector.load %arg13[%c0_28, %c0_29] : memref<32x32xf32, #tpu.memory_space<vmem>>, vector<32x32xf32>
      tpu.vector_store %arg13[%c0_28, %c0_29], %38 {strides = array<i32>} : memref<32x32xf32, #tpu.memory_space<vmem>>, vector<32x32xf32>,
      %c0_30 = arith.constant 0 : index
      %c0_31 = arith.constant 0 : index
      %40 = vector.load %arg6[%c0_30, %c0_31] : memref<1x32xf32, #tpu.memory_space<vmem>>, vector<1x32xf32>
      %c0_32 = arith.constant 0 : index
      %c0_33 = arith.constant 0 : index
      %41 = vector.load %arg7[%c0_32, %c0_33] : memref<1x32xf32, #tpu.memory_space<vmem>>, vector<1x32xf32>
      %cst_34 = arith.constant dense<0.000000e+00> : vector<32xf32>
      %42 = vector.multi_reduction <add>, %38, %cst_34 [1] : vector<32x32xf32> to vector<32xf32>
      %43 = vector.shape_cast %42 : vector<32xf32> to vector<32x1xf32>
      %cst_35 = arith.constant 3.200000e+01 : f32
      %44 = vector.broadcast %cst_35 : f32 to vector<32x1xf32>
      %45 = arith.divf %43, %44 : vector<32x1xf32>
      %46 = vector.broadcast %45 : vector<32x1xf32> to vector<32x32xf32>
      %47 = arith.subf %38, %46 : vector<32x32xf32>
      %48 = arith.mulf %47, %47 : vector<32x32xf32>
      %cst_36 = arith.constant dense<0.000000e+00> : vector<32xf32>
      %49 = vector.multi_reduction <add>, %48, %cst_36 [1] : vector<32x32xf32> to vector<32xf32>
      %50 = vector.shape_cast %49 : vector<32xf32> to vector<32x1xf32>
      %cst_37 = arith.constant 3.200000e+01 : f32
      %51 = vector.broadcast %cst_37 : f32 to vector<32x1xf32>
      %52 = arith.divf %50, %51 : vector<32x1xf32>
      %cst_38 = arith.constant 9.99999974E-6 : f32
      %53 = vector.broadcast %cst_38 : f32 to vector<32x1xf32>
      %54 = arith.addf %52, %53 : vector<32x1xf32>
      %55 = math.rsqrt %54 : vector<32x1xf32>
      %56 = vector.broadcast %55 : vector<32x1xf32> to vector<32x32xf32>
      %57 = arith.mulf %47, %56 : vector<32x32xf32>
      %58 = vector.broadcast %40 : vector<1x32xf32> to vector<32x32xf32>
      %59 = arith.mulf %57, %58 : vector<32x32xf32>
      %60 = vector.broadcast %41 : vector<1x32xf32> to vector<32x32xf32>
      %61 = arith.addf %59, %60 : vector<32x32xf32>
      %62 = arith.truncf %61 : vector<32x32xf32> to vector<32x32xbf16>
      %c0_39 = arith.constant 0 : index
      %c0_40 = arith.constant 0 : index
      %63 = vector.load %arg14[%c0_39, %c0_40] : memref<32x32xbf16, #tpu.memory_space<vmem>>, vector<32x32xbf16>
      tpu.vector_store %arg14[%c0_39, %c0_40], %62 {strides = array<i32>} : memref<32x32xbf16, #tpu.memory_space<vmem>>, vector<32x32xbf16>,
      %cst_41 = arith.constant 0.000000e+00 : f32
      %64 = vector.broadcast %cst_41 : f32 to vector<32x32xf32>
      %c0_42 = arith.constant 0 : index
      %c0_43 = arith.constant 0 : index
      %65 = vector.load %arg15[%c0_42, %c0_43] : memref<32x32xf32, #tpu.memory_space<vmem>>, vector<32x32xf32>
      tpu.vector_store %arg15[%c0_42, %c0_43], %64 {strides = array<i32>} : memref<32x32xf32, #tpu.memory_space<vmem>>, vector<32x32xf32>,
    } else {
    }
    %c0 = arith.constant 0 : index
    %c0_1 = arith.constant 0 : index
    %3 = vector.load %arg14[%c0, %c0_1] : memref<32x32xbf16, #tpu.memory_space<vmem>>, vector<32x32xbf16>
    %c0_2 = arith.constant 0 : index
    %c0_3 = arith.constant 0 : index
    %4 = vector.load %arg8[%c0_2, %c0_3] : memref<32x128xbf16, #tpu.memory_space<vmem>>, vector<32x128xbf16>
    %cst = arith.constant dense<0.000000e+00> : vector<32x128xf32>
    %5 = tpu.matmul %3, %4, %cst {dimension_numbers = #tpu.dot_dimension_numbers<[1], [0], [0], [1], [0, 0, 1, 1], [], []>} : vector<32x32xbf16>, vector<32x128xbf16>, vector<32x128xf32> -> vector<32x128xf32>
    %c0_4 = arith.constant 0 : index
    %c0_5 = arith.constant 0 : index
    %6 = vector.load %arg9[%c0_4, %c0_5] : memref<1x128xf32, #tpu.memory_space<vmem>>, vector<1x128xf32>
    %7 = vector.broadcast %6 : vector<1x128xf32> to vector<32x128xf32>
    %8 = arith.addf %5, %7 : vector<32x128xf32>
    %cst_6 = arith.constant 5.000000e-01 : f32
    %9 = vector.broadcast %cst_6 : f32 to vector<32x128xf32>
    %10 = arith.mulf %9, %8 : vector<32x128xf32>
    %cst_7 = arith.constant 4.471500e-02 : f32
    %11 = vector.broadcast %cst_7 : f32 to vector<32x128xf32>
    %12 = arith.mulf %11, %8 : vector<32x128xf32>
    %13 = arith.mulf %12, %8 : vector<32x128xf32>
    %14 = arith.mulf %13, %8 : vector<32x128xf32>
    %15 = arith.addf %8, %14 : vector<32x128xf32>
    %cst_8 = arith.constant 0.797884583 : f32
    %16 = vector.broadcast %cst_8 : f32 to vector<32x128xf32>
    %17 = arith.mulf %16, %15 : vector<32x128xf32>
    %18 = math.tanh %17 : vector<32x128xf32>
    %cst_9 = arith.constant 1.000000e+00 : f32
    %19 = vector.broadcast %cst_9 : f32 to vector<32x128xf32>
    %20 = arith.addf %19, %18 : vector<32x128xf32>
    %21 = arith.mulf %10, %20 : vector<32x128xf32>
    %c0_10 = arith.constant 0 : index
    %c0_11 = arith.constant 0 : index
    %22 = vector.load %arg15[%c0_10, %c0_11] : memref<32x32xf32, #tpu.memory_space<vmem>>, vector<32x32xf32>
    %23 = arith.truncf %21 : vector<32x128xf32> to vector<32x128xbf16>
    %c0_12 = arith.constant 0 : index
    %c0_13 = arith.constant 0 : index
    %24 = vector.load %arg10[%c0_12, %c0_13] : memref<128x32xbf16, #tpu.memory_space<vmem>>, vector<128x32xbf16>
    %cst_14 = arith.constant dense<0.000000e+00> : vector<32x32xf32>
    %25 = tpu.matmul %23, %24, %cst_14 {dimension_numbers = #tpu.dot_dimension_numbers<[1], [0], [0], [1], [0, 0, 1, 1], [], []>} : vector<32x128xbf16>, vector<128x32xbf16>, vector<32x32xf32> -> vector<32x32xf32>
    %26 = arith.addf %22, %25 : vector<32x32xf32>
    %c0_15 = arith.constant 0 : index
    %c0_16 = arith.constant 0 : index
    %27 = vector.load %arg15[%c0_15, %c0_16] : memref<32x32xf32, #tpu.memory_space<vmem>>, vector<32x32xf32>
    tpu.vector_store %arg15[%c0_15, %c0_16], %26 {strides = array<i32>} : memref<32x32xf32, #tpu.memory_space<vmem>>, vector<32x32xf32>,
    %c0_i32_17 = arith.constant 0 : i32
    %28 = arith.cmpi eq, %arg1, %c0_i32_17 : i32
    %29 = arith.extui %28 : i1 to i32
    %c0_i32_18 = arith.constant 0 : i32
    %30 = arith.cmpi ne, %29, %c0_i32_18 : i32
    scf.if %30 {
      %c0_19 = arith.constant 0 : index
      %c0_20 = arith.constant 0 : index
      %31 = vector.load %arg13[%c0_19, %c0_20] : memref<32x32xf32, #tpu.memory_space<vmem>>, vector<32x32xf32>
      %c0_21 = arith.constant 0 : index
      %c0_22 = arith.constant 0 : index
      %32 = vector.load %arg15[%c0_21, %c0_22] : memref<32x32xf32, #tpu.memory_space<vmem>>, vector<32x32xf32>
      %33 = arith.addf %31, %32 : vector<32x32xf32>
      %c0_23 = arith.constant 0 : index
      %c0_24 = arith.constant 0 : index
      %34 = vector.load %arg11[%c0_23, %c0_24] : memref<1x32xf32, #tpu.memory_space<vmem>>, vector<1x32xf32>
      %35 = vector.broadcast %34 : vector<1x32xf32> to vector<32x32xf32>
      %36 = arith.addf %33, %35 : vector<32x32xf32>
      %c0_25 = arith.constant 0 : index
      %c0_26 = arith.constant 0 : index
      %37 = vector.load %arg12[%c0_25, %c0_26] : memref<32x32xf32, #tpu.memory_space<vmem>>, vector<32x32xf32>
      tpu.vector_store %arg12[%c0_25, %c0_26], %36 {strides = array<i32>} : memref<32x32xf32, #tpu.memory_space<vmem>>, vector<32x32xf32>,
    } else {
    }
    return
  }
  func.func @transform_0(%arg0: i32, %arg1: i32) -> (i32, i32) {
    %c0_i32 = arith.constant 0 : i32
    %c0_i32_0 = arith.constant 0 : i32
    return %arg0, %c0_i32 : i32, i32
  }
  func.func @transform_1(%arg0: i32, %arg1: i32) -> (i32, i32) {
    %c0_i32 = arith.constant 0 : i32
    %c0_i32_0 = arith.constant 0 : i32
    return %arg0, %c0_i32 : i32, i32
  }
  func.func @transform_2(%arg0: i32, %arg1: i32) -> (i32, i32) {
    %c0_i32 = arith.constant 0 : i32
    %c0_i32_0 = arith.constant 0 : i32
    %c0_i32_1 = arith.constant 0 : i32
    return %c0_i32, %c0_i32_0 : i32, i32
  }
  func.func @transform_3(%arg0: i32, %arg1: i32) -> (i32, i32) {
    %c0_i32 = arith.constant 0 : i32
    %c0_i32_0 = arith.constant 0 : i32
    %c0_i32_1 = arith.constant 0 : i32
    return %c0_i32, %c0_i32_0 : i32, i32
  }
  func.func @transform_4(%arg0: i32, %arg1: i32) -> (i32, i32) {
    %c0_i32 = arith.constant 0 : i32
    %c0_i32_0 = arith.constant 0 : i32
    %c0_i32_1 = arith.constant 0 : i32
    return %c0_i32, %c0_i32_0 : i32, i32
  }
  func.func @transform_5(%arg0: i32, %arg1: i32) -> (i32, i32) {
    %c0_i32 = arith.constant 0 : i32
    %c0_i32_0 = arith.constant 0 : i32
    %c0_i32_1 = arith.constant 0 : i32
    return %c0_i32, %c0_i32_0 : i32, i32
  }
  func.func @transform_6(%arg0: i32, %arg1: i32) -> (i32, i32) {
    %c0_i32 = arith.constant 0 : i32
    %c0_i32_0 = arith.constant 0 : i32
    return %c0_i32, %arg1 : i32, i32
  }
  func.func @transform_7(%arg0: i32, %arg1: i32) -> (i32, i32) {
    %c0_i32 = arith.constant 0 : i32
    %c0_i32_0 = arith.constant 0 : i32
    return %c0_i32, %arg1 : i32, i32
  }
  func.func @transform_8(%arg0: i32, %arg1: i32) -> (i32, i32) {
    %c0_i32 = arith.constant 0 : i32
    %c0_i32_0 = arith.constant 0 : i32
    return %arg1, %c0_i32 : i32, i32
  }
  func.func @transform_9(%arg0: i32, %arg1: i32) -> (i32, i32) {
    %c0_i32 = arith.constant 0 : i32
    %c0_i32_0 = arith.constant 0 : i32
    %c0_i32_1 = arith.constant 0 : i32
    return %c0_i32, %c0_i32_0 : i32, i32
  }
  func.func @transform_10(%arg0: i32, %arg1: i32) -> (i32, i32) {
    %c0_i32 = arith.constant 0 : i32
    %c0_i32_0 = arith.constant 0 : i32
    return %arg0, %c0_i32 : i32, i32
  }
}

</mosaic_0001>

<llo_original>
// kernel: audio_encoder_forward.9
$region0: #{audio_encoder_forward.9}
  #allocation0 [shape = 'u32[]', space=smem, size = 0x4, offset = 0x4, fixed_abs, tag = 'smem constant byte address 0x4 - core index']
  #allocation1 [shape = 'u32[144,128]{1,0:T(1,128)}', space=vmem, size = 0x12000, scoped, tag = 'internal scratch']
  %s0 = inlined_call_operand.vmem [shape: bf16[2,17,32], index: 0, kind: input, shape index: {}]
  %s1 = inlined_call_operand.vmem [shape: bf16[2,17,32], index: 1, kind: input, shape index: {}]
  %s2 = inlined_call_operand.vmem [shape: bf16[3,32,32], index: 2, kind: input, shape index: {}]
  %s3 = inlined_call_operand.vmem [shape: f32[1,32], index: 3, kind: input, shape index: {}]
  %s4 = inlined_call_operand.vmem [shape: f32[2,16,32], index: 4, kind: output, shape index: {}]
  %s5 = sld [smem:[#allocation0]]
  $region49: #{audio_encoder_forward.9} parent=0
    _
  %s7 = ssub.s32 1, %s5
  %s8 = scalar_select 0, %s7, %s5
  loop: start=0, step=1, limit=4
  $region2: #{audio_encoder_forward.9} parent=0 // loop_pre_header
    _
  $region3: #{audio_encoder_forward.9} parent=0 // loop_header
    %s10 = sphi 0, %s14
    %p11 = scmp.ge.s32.totalorder %s10, 4
    %s17 = sphi 0, %s29
    %s18 = sphi 0, %s25
    %s19 = sphi 0, %s17
    %s20 = sphi 0, %s18
    %s21 = sphi 0, %s19
    %s22 = sphi 0, %s20
    %s32 = sphi 0, %s34
    %s35 = sphi 0, %s32
    %s36 = sphi 0, %s35
    %s52 = sphi 0, %s36
    %s58 = sphi 0, %s60
    %s61 = sphi 0, %s58
    %s62 = sphi 0, %s61
    %s78 = sphi 0, %s62
    %s82 = sphi 0, %s82
    %s84 = sphi 0, %s82
    %s85 = sphi 0, %s84
    %s99 = sphi 0, %s85
    %s103 = sphi 0, %s103
    %s105 = sphi 0, %s103
    %s106 = sphi 0, %s105
    %s120 = sphi 0, %s106
    %s128 = sphi 0, %s130
    %s131 = sphi 0, %s128
    %s132 = sphi 0, %s131
    %s148 = sphi 0, %s132
  $region4: #{audio_encoder_forward.9} parent=0 // loop_header_branch
    %13 = sbr.rel (%p11) target = $region8
  $region5: #{audio_encoder_forward.9} parent=0 // loop_body
    %s15 = ssub.s32 %s10, 1
    %s16 = ssub.s32 %s10, 2
    %s23 = sadd.s32 1, %s18
    %p24 = scmp.ge.s32.totalorder %s23, 1
    %s25 = scalar_select %p24, 0, %s23
    %s26 = sadd.s32 1, %s17
    %s27 = scalar_select %p24, %s26, %s17
    %p28 = scmp.ge.s32.totalorder %s27, 2
    %s29 = scalar_select %p28, 0, %s27
    %s30 = ssub.s32 %s17, %s29
    %p31 = scmp.eq.s32.totalorder %s30, 0
    %s33 = sadd.s32 %s32, 1
    %s34 = scalar_select %p31, %s32, %s33
    %p37 = pneg %p31
    %p38 = scmp.eq.s32.totalorder %s10, 1
    %p39 = por %p37, %p38
    %p40 = scmp.ne.s32.totalorder %s32, %s35
    %p41 = scmp.eq.s32.totalorder %s10, 0
    %p42 = por %p40, %p41
    %p43 = scmp.ne.s32.totalorder %s32, %s35
    %p44 = scmp.eq.s32.totalorder %s15, 1
    %p45 = por %p43, %p44
    %p46 = scmp.ne.s32.totalorder %s35, %s36
    %p47 = scmp.eq.s32.totalorder %s15, 0
    %p48 = por %p46, %p47
    %p49 = scmp.ne.s32.totalorder %s35, %s36
    %p50 = scmp.eq.s32.totalorder %s16, 1
    %p51 = por %p49, %p50
    %p53 = scmp.ne.s32.totalorder %s36, %s52
    %p54 = scmp.eq.s32.totalorder %s16, 0
    %p55 = por %p53, %p54
    %s56 = ssub.s32 %s17, %s29
    %p57 = scmp.eq.s32.totalorder %s56, 0
    %s59 = sadd.s32 %s58, 1
    %s60 = scalar_select %p57, %s58, %s59
    %p63 = pneg %p57
    %p64 = scmp.eq.s32.totalorder %s10, 1
    %p65 = por %p63, %p64
    %p66 = scmp.ne.s32.totalorder %s58, %s61
    %p67 = scmp.eq.s32.totalorder %s10, 0
    %p68 = por %p66, %p67
    %p69 = scmp.ne.s32.totalorder %s58, %s61
    %p70 = scmp.eq.s32.totalorder %s15, 1
    %p71 = por %p69, %p70
    %p72 = scmp.ne.s32.totalorder %s61, %s62
    %p73 = scmp.eq.s32.totalorder %s15, 0
    %p74 = por %p72, %p73
    %p75 = scmp.ne.s32.totalorder %s61, %s62
    %p76 = scmp.eq.s32.totalorder %s16, 1
    %p77 = por %p75, %p76
    %p79 = scmp.ne.s32.totalorder %s62, %s78
    %p80 = scmp.eq.s32.totalorder %s16, 0
    %p81 = por %p79, %p80
    %s83 = sadd.s32 %s82, 1
    %p86 = scmp.eq.s32.totalorder %s10, 1
    %p87 = scmp.ne.s32.totalorder %s82, %s84
    %p88 = scmp.eq.s32.totalorder %s10, 0
    %p89 = por %p87, %p88
    %p90 = scmp.ne.s32.totalorder %s82, %s84
    %p91 = scmp.eq.s32.totalorder %s15, 1
    %p92 = por %p90, %p91
    %p93 = scmp.ne.s32.totalorder %s84, %s85
    %p94 = scmp.eq.s32.totalorder %s15, 0
    %p95 = por %p93, %p94
    %p96 = scmp.ne.s32.totalorder %s84, %s85
    %p97 = scmp.eq.s32.totalorder %s16, 1
    %p98 = por %p96, %p97
    %p100 = scmp.ne.s32.totalorder %s85, %s99
    %p101 = scmp.eq.s32.totalorder %s16, 0
    %p102 = por %p100, %p101
    %s104 = sadd.s32 %s103, 1
    %p107 = scmp.eq.s32.totalorder %s10, 1
    %p108 = scmp.ne.s32.totalorder %s103, %s105
    %p109 = scmp.eq.s32.totalorder %s10, 0
    %p110 = por %p108, %p109
    %p111 = scmp.ne.s32.totalorder %s103, %s105
    %p112 = scmp.eq.s32.totalorder %s15, 1
    %p113 = por %p111, %p112
    %p114 = scmp.ne.s32.totalorder %s105, %s106
    %p115 = scmp.eq.s32.totalorder %s15, 0
    %p116 = por %p114, %p115
    %p117 = scmp.ne.s32.totalorder %s105, %s106
    %p118 = scmp.eq.s32.totalorder %s16, 1
    %p119 = por %p117, %p118
    %p121 = scmp.ne.s32.totalorder %s106, %s120
    %p122 = scmp.eq.s32.totalorder %s16, 0
    %p123 = por %p121, %p122
    %s124 = ssub.s32 %s17, %s29
    %s125 = ssub.s32 %s18, %s25
    %s126 = sor.u32 %s124, %s125
    %p127 = scmp.eq.s32.totalorder %s126, 0
    %s129 = sadd.s32 %s128, 1
    %s130 = scalar_select %p127, %s128, %s129
    %p133 = pneg %p127
    %p134 = scmp.eq.s32.totalorder %s10, 1
    %p135 = por %p133, %p134
    %p136 = scmp.ne.s32.totalorder %s128, %s131
    %p137 = scmp.eq.s32.totalorder %s10, 0
    %p138 = por %p136, %p137
    %p139 = scmp.ne.s32.totalorder %s128, %s131
    %p140 = scmp.eq.s32.totalorder %s15, 1
    %p141 = por %p139, %p140
    %p142 = scmp.ne.s32.totalorder %s131, %s132
    %p143 = scmp.eq.s32.totalorder %s15, 0
    %p144 = por %p142, %p143
    %p145 = scmp.ne.s32.totalorder %s131, %s132
    %p146 = scmp.eq.s32.totalorder %s16, 1
    %p147 = por %p145, %p146
    %p149 = scmp.ne.s32.totalorder %s132, %s148
    %p150 = scmp.eq.s32.totalorder %s16, 0
    %p151 = por %p149, %p150
    %p152 = scmp.le.s32.totalorder 1, %s10
    %p153 = scmp.lt.s32.totalorder %s10, 3
    %p154 = pnand %p152, %p153
    %p155 = pneg %p154
    // Predicated region
    $region9: #{audio_encoder_forward.9} parent=5 // pred_check
      _
    $region10: #{audio_encoder_forward.9} parent=5 // pred_check_branch
      %157 = sbr.rel (%p154) target = $region12
    $region11: #{audio_encoder_forward.9} parent=5 // pred_region
      %s158 = ssub.s32 %s10, 1
      // Predicated region
      $region13: #{audio_encoder_forward.9} parent=11 // pred_check
        %p159 = pneg %p95
      $region14: #{audio_encoder_forward.9} parent=11 // pred_check_branch
        %161 = sbr.rel (%p159) target = $region16
      $region15: #{audio_encoder_forward.9} parent=11 // pred_region
        _
      $region16: #{audio_encoder_forward.9} parent=11 // pred_fallthru
        _
      // Predicated region
      $region17: #{audio_encoder_forward.9} parent=11 // pred_check
        %p162 = pneg %p116
      $region18: #{audio_encoder_forward.9} parent=11 // pred_check_branch
        %164 = sbr.rel (%p162) target = $region20
      $region19: #{audio_encoder_forward.9} parent=11 // pred_region
        _
      $region20: #{audio_encoder_forward.9} parent=11 // pred_fallthru
        _
    $region12: #{audio_encoder_forward.9} parent=5 // pred_fallthru
      _
    %p165 = scmp.lt.s32.totalorder %s10, 2
    // Predicated region
    $region21: #{audio_encoder_forward.9} parent=5 // pred_check
      %p166 = pneg %p165
    $region22: #{audio_encoder_forward.9} parent=5 // pred_check_branch
      %168 = sbr.rel (%p166) target = $region24
    $region23: #{audio_encoder_forward.9} parent=5 // pred_region
      // Predicated region
      $region25: #{audio_encoder_forward.9} parent=23 // pred_check
        %p169 = pneg %p42
      $region26: #{audio_encoder_forward.9} parent=23 // pred_check_branch
        %171 = sbr.rel (%p169) target = $region28
      $region27: #{audio_encoder_forward.9} parent=23 // pred_region
        %p172 = scmp.lt.s32.totalorder %s17, 1
        %s173 = scalar_select %p172, %s17, 1
        %s174 = smul.addr %s173, 3
        %s175 = smul.addr %s174, 4
        %s176 = scalar_lea.vmem %s0, %s175
      $region28: #{audio_encoder_forward.9} parent=23 // pred_fallthru
        _
      // Predicated region
      $region29: #{audio_encoder_forward.9} parent=23 // pred_check
        %p177 = pneg %p68
      $region30: #{audio_encoder_forward.9} parent=23 // pred_check_branch
        %179 = sbr.rel (%p177) target = $region32
      $region31: #{audio_encoder_forward.9} parent=23 // pred_region
        %p180 = scmp.lt.s32.totalorder %s17, 1
        %s181 = scalar_select %p180, %s17, 1
        %s182 = smul.addr %s181, 3
        %s183 = smul.addr %s182, 4
        %s184 = scalar_lea.vmem %s1, %s183
      $region32: #{audio_encoder_forward.9} parent=23 // pred_fallthru
        _
    $region24: #{audio_encoder_forward.9} parent=5 // pred_fallthru
      _
    %p185 = scmp.le.s32.totalorder 1, %s10
    %p186 = scmp.lt.s32.totalorder %s10, 3
    %p187 = pnand %p185, %p186
    %p188 = pneg %p187
    // Predicated region
    $region33: #{audio_encoder_forward.9} parent=5 // pred_check
      _
    $region34: #{audio_encoder_forward.9} parent=5 // pred_check_branch
      %190 = sbr.rel (%p187) target = $region36
    $region35: #{audio_encoder_forward.9} parent=5 // pred_region
      %s191 = ssub.s32 %s10, 1
      %p192 = scmp.lt.s32.totalorder %s19, 1
      %s193 = scalar_select %p192, %s19, 1
      %s194 = smul.addr %s193, 3
      %s195 = smul.addr %s194, 4
      %s196 = scalar_lea.vmem %s0, %s195
      %p197 = pneg %p48
      %p198 = pneg %p45
      %p199 = scmp.lt.s32.totalorder %s19, 1
      %s200 = scalar_select %p199, %s19, 1
      %s201 = smul.addr %s200, 3
      %s202 = smul.addr %s201, 4
      %s203 = scalar_lea.vmem %s1, %s202
      %p204 = pneg %p74
      %p205 = pneg %p71
      %p206 = pneg %p95
      %p207 = pneg %p92
      %p208 = pneg %p116
      %p209 = pneg %p113
      %p210 = pneg %p144
      %p211 = pneg %p141
      %s212 = smul.u32 2, %s20
      %p213 = scmp.lt.s32.totalorder %s19, 1
      %s214 = scalar_select %p213, %s19, 1
      %p215 = scmp.lt.s32.totalorder %s212, 1
      %s216 = scalar_select %p215, %s212, 1
      %s217 = smul.addr %s214, 2
      %s218 = sadd.s32 %s216, %s217
      %s219 = smul.addr %s218, 8
      %s220 = scalar_lea.vmem %s4, %s219
      %p221 = scmp.lt.s32.totalorder %s19, 1
      %s222 = scalar_select %p221, %s19, 1
      %s223 = smul.addr %s222, 3
      %s224 = smul.addr %s223, 4
      %s225 = scalar_lea.vmem %s0, %s224
      %p226 = scmp.lt.s32.totalorder %s19, 1
      %s227 = scalar_select %p226, %s19, 1
      %s228 = smul.addr %s227, 3
      %s229 = smul.addr %s228, 4
      %s230 = scalar_lea.vmem %s1, %s229
      %s231 = smul.u32 2, %s20
      %p232 = scmp.lt.s32.totalorder %s19, 1
      %s233 = scalar_select %p232, %s19, 1
      %p234 = scmp.lt.s32.totalorder %s231, 1
      %s235 = scalar_select %p234, %s231, 1
      %s236 = smul.addr %s233, 2
      %s237 = sadd.s32 %s235, %s236
      %s238 = smul.addr %s237, 8
      %s239 = scalar_lea.vmem %s4, %s238
      %s240 = smul.u32 2, %s20
      %s242 = smul.u32 %s20, 16
      %s243 = sshra.s32 %s242, 3
      %s244 = sand.u32 %s242, 7
      %s245 = smul.addr %s243, 4
      %s246 = scalar_lea.vmem %s225, %s245
      %v247 = vld [vmem:[%s246] sm:$0xf]
      %v248 = vld [vmem:[%s246 + $0x4] sm:$0xf]
      %v249 = vld [vmem:[%s246 + $0x8] sm:$0x1]
      %s250 = smul.addr %s243, 4
      %s251 = scalar_lea.vmem %s230, %s250
      %v252 = vld [vmem:[%s251] sm:$0xf]
      %v253 = vld [vmem:[%s251 + $0x4] sm:$0xf]
      %v254 = vld [vmem:[%s2] sm:$0xf]
      %v255 = vld [vmem:[%s2 + $0x4] sm:$0xf]
      %v256 = vld [vmem:[%s2 + $0x8] sm:$0xf]
      %v257 = vld [vmem:[%s2 + $0xc] sm:$0xf]
      %s258 = scalar_lea.vmem %s2, 16
      %v259 = vld [vmem:[%s258] sm:$0xf]
      %v260 = vld [vmem:[%s258 + $0x4] sm:$0xf]
      %v261 = vld [vmem:[%s258 + $0x8] sm:$0xf]
      %v262 = vld [vmem:[%s258 + $0xc] sm:$0xf]
      %v265 = vunpack.c.l.b16 %v252
      %v266 = vunpack.c.l.b16 %v253
      %v267 = vpack.c.b16 %v266, %v265
      %v272 = vunpack.c.l.b16 %v259
      %v273 = vunpack.c.l.b16 %v260
      %v274 = vunpack.c.l.b16 %v261
      %v275 = vunpack.c.l.b16 %v262
      %v276 = vpack.c.b16 %v273, %v272
      %v277 = vpack.c.b16 %v275, %v274
      %vm280 = vcmask 261120
      %v282 = vsel %vm280, %v267, 0
      %284 = vmatprep.subr.bf16.mxu0 0
      %285 = vmatpush1.bf16.msra.mxu0 0
      %286 = vmatprep.subr.bf16.mxu0 0
      %287 = vmatpush1.bf16.msra.mxu0 0
      %288 = vmatprep.subr.bf16.mxu0 0
      %289 = vmatpush1.bf16.msra.mxu0 0
      %290 = vmatprep.subr.bf16.mxu0 0
      %291 = vmatpush1.bf16.msra.mxu0 0
      %292 = vmatprep.subr.bf16.mxu0 0
      %293 = vmatpush1.bf16.msra.mxu0 0
      %294 = vmatprep.subr.bf16.mxu0 0
      %295 = vmatpush1.bf16.msra.mxu0 0
      %296 = vmatprep.subr.bf16.mxu0 0
      %297 = vmatpush1.bf16.msra.mxu0 %v277
      %298 = vmatprep.subr.bf16.mxu0 0
      %299 = vmatpush1.bf16.msra.mxu0 %v276
      %300 = vmatprep.subr.bf16.mxu0 0
      %301 = vmatpush2.bf16.msra.mxu0 0
      %302 = vmatprep.subr.bf16.mxu0 0
      %303 = vmatpush2.bf16.msra.mxu0 0
      %304 = vmatprep.subr.bf16.mxu0 0
      %305 = vmatpush2.bf16.msra.mxu0 0
      %306 = vmatprep.subr.bf16.mxu0 0
      %307 = vmatpush2.bf16.msra.mxu0 0
      %308 = vmatprep.subr.bf16.mxu0 0
      %309 = vmatpush2.bf16.msra.mxu0 0
      %310 = vmatprep.subr.bf16.mxu0 0
      %311 = vmatpush2.bf16.msra.mxu0 0
      %312 = vmatprep.subr.bf16.mxu0 0
      %313 = vmatpush2.bf16.msra.mxu0 0
      %314 = vmatprep.subr.bf16.mxu0 0
      %315 = vmatpush2.bf16.msra.mxu0 0
      %316 = vmatprep.mubr.bf16.mxu0 0
      %317 = vmatmul.mubr.bf16.gmra.mxu0 %v282
      %v318 = vpop.f32.mrf.mxu0
      %v319 = vadd.f32 0.0, %v318
      %v320 = vpop.f32.mrf.mxu0
      %v321 = vpop.f32.mrf.mxu0
      %v322 = vadd.f32 0.0, %v321
      %v323 = vpop.f32.mrf.mxu0
      %324 = vdwg.mxu0
      %v327 = vunpack.c.l.b16 %v247
      %v328 = vunpack.c.l.b16 %v248
      %v329 = vpack.c.b16 %v328, %v327
      %v334 = vunpack.c.l.b16 %v254
      %v335 = vunpack.c.l.b16 %v255
      %v336 = vunpack.c.l.b16 %v256
      %v337 = vunpack.c.l.b16 %v257
      %v338 = vpack.c.b16 %v335, %v334
      %v339 = vpack.c.b16 %v337, %v336
      %v343 = vsel %vm280, %v329, 0
      %345 = vmatprep.subr.bf16.mxu0 0
      %346 = vmatpush1.bf16.msra.mxu0 0
      %347 = vmatprep.subr.bf16.mxu0 0
      %348 = vmatpush1.bf16.msra.mxu0 0
      %349 = vmatprep.subr.bf16.mxu0 0
      %350 = vmatpush1.bf16.msra.mxu0 0
      %351 = vmatprep.subr.bf16.mxu0 0
      %352 = vmatpush1.bf16.msra.mxu0 0
      %353 = vmatprep.subr.bf16.mxu0 0
      %354 = vmatpush1.bf16.msra.mxu0 0
      %355 = vmatprep.subr.bf16.mxu0 0
      %356 = vmatpush1.bf16.msra.mxu0 0
      %357 = vmatprep.subr.bf16.mxu0 0
      %358 = vmatpush1.bf16.msra.mxu0 %v339
      %359 = vmatprep.subr.bf16.mxu0 0
      %360 = vmatpush1.bf16.msra.mxu0 %v338
      %361 = vmatprep.subr.bf16.mxu0 0
      %362 = vmatpush2.bf16.msra.mxu0 0
      %363 = vmatprep.subr.bf16.mxu0 0
      %364 = vmatpush2.bf16.msra.mxu0 0
      %365 = vmatprep.subr.bf16.mxu0 0
      %366 = vmatpush2.bf16.msra.mxu0 0
      %367 = vmatprep.subr.bf16.mxu0 0
      %368 = vmatpush2.bf16.msra.mxu0 0
      %369 = vmatprep.subr.bf16.mxu0 0
      %370 = vmatpush2.bf16.msra.mxu0 0
      %371 = vmatprep.subr.bf16.mxu0 0
      %372 = vmatpush2.bf16.msra.mxu0 0
      %373 = vmatprep.subr.bf16.mxu0 0
      %374 = vmatpush2.bf16.msra.mxu0 0
      %375 = vmatprep.subr.bf16.mxu0 0
      %376 = vmatpush2.bf16.msra.mxu0 0
      %377 = vmatprep.mubr.bf16.mxu0 0
      %378 = vmatmul.mubr.bf16.gmra.mxu0 %v343
      %v379 = vpop.f32.mrf.mxu0
      %v380 = vadd.f32 %v319, %v379
      %v381 = vpop.f32.mrf.mxu0
      %v382 = vpop.f32.mrf.mxu0
      %v383 = vadd.f32 %v322, %v382
      %v384 = vpop.f32.mrf.mxu0
      %385 = vdwg.mxu0
      %s386 = scalar_lea.vmem %s2, 32
      %v387 = vld [vmem:[%s386] sm:$0xf]
      %v388 = vld [vmem:[%s386 + $0x4] sm:$0xf]
      %v389 = vld [vmem:[%s386 + $0x8] sm:$0xf]
      %v390 = vld [vmem:[%s386 + $0xc] sm:$0xf]
      %v392 = vunpack.c.l.b16 %v249
      %v393 = vpack.c.b16 %v392, %v392
      %vm394 = vsmask.f32 7424
      %v395 = vshrl.u32 %v329, 16
      %v397 = vshll.u32 %v329, 16
      %v399 = vrot.slane %v397, 1
      %v400 = vor.u32 %v395, %v399
      %v402 = vshll.u32 %v393, 16
      %v404 = vrot.slane %v402, 1
      %v405 = vsel %vm394, %v400, %v404
      %v410 = vunpack.c.l.b16 %v387
      %v411 = vunpack.c.l.b16 %v388
      %v412 = vunpack.c.l.b16 %v389
      %v413 = vunpack.c.l.b16 %v390
      %v414 = vpack.c.b16 %v411, %v410
      %v415 = vpack.c.b16 %v413, %v412
      %v419 = vsel %vm280, %v405, 0
      %421 = vmatprep.subr.bf16.mxu0 0
      %422 = vmatpush1.bf16.msra.mxu0 0
      %423 = vmatprep.subr.bf16.mxu0 0
      %424 = vmatpush1.bf16.msra.mxu0 0
      %425 = vmatprep.subr.bf16.mxu0 0
      %426 = vmatpush1.bf16.msra.mxu0 0
      %427 = vmatprep.subr.bf16.mxu0 0
      %428 = vmatpush1.bf16.msra.mxu0 0
      %429 = vmatprep.subr.bf16.mxu0 0
      %430 = vmatpush1.bf16.msra.mxu0 0
      %431 = vmatprep.subr.bf16.mxu0 0
      %432 = vmatpush1.bf16.msra.mxu0 0
      %433 = vmatprep.subr.bf16.mxu0 0
      %434 = vmatpush1.bf16.msra.mxu0 %v415
      %435 = vmatprep.subr.bf16.mxu0 0
      %436 = vmatpush1.bf16.msra.mxu0 %v414
      %437 = vmatprep.subr.bf16.mxu0 0
      %438 = vmatpush2.bf16.msra.mxu0 0
      %439 = vmatprep.subr.bf16.mxu0 0
      %440 = vmatpush2.bf16.msra.mxu0 0
      %441 = vmatprep.subr.bf16.mxu0 0
      %442 = vmatpush2.bf16.msra.mxu0 0
      %443 = vmatprep.subr.bf16.mxu0 0
      %444 = vmatpush2.bf16.msra.mxu0 0
      %445 = vmatprep.subr.bf16.mxu0 0
      %446 = vmatpush2.bf16.msra.mxu0 0
      %447 = vmatprep.subr.bf16.mxu0 0
      %448 = vmatpush2.bf16.msra.mxu0 0
      %449 = vmatprep.subr.bf16.mxu0 0
      %450 = vmatpush2.bf16.msra.mxu0 0
      %451 = vmatprep.subr.bf16.mxu0 0
      %452 = vmatpush2.bf16.msra.mxu0 0
      %453 = vmatprep.mubr.bf16.mxu0 0
      %454 = vmatmul.mubr.bf16.gmra.mxu0 %v419
      %v455 = vpop.f32.mrf.mxu0
      %v456 = vadd.f32 0.0, %v455
      %v457 = vpop.f32.mrf.mxu0
      %v458 = vpop.f32.mrf.mxu0
      %v459 = vadd.f32 0.0, %v458
      %v460 = vpop.f32.mrf.mxu0
      %461 = vdwg.mxu0
      %v462 = vadd.f32 %v380, %v456
      %v463 = vadd.f32 %v383, %v459
      %v464 = vld [vmem:[%s3] sm:$0x1]
      %v466 = vlaneseq
      %v467 = vshrl.u32 %v466, 7
      %v468 = vsub.s32 0, %v467
      %v469 = vrot.slane %v464, %v468
      %v471 = vadd.f32 %v462, %v469
      %v472 = vadd.f32 %v463, %v469
      %v473 = vmul.f32 %v471, 0.5
      %v474 = vmul.f32 %v472, 0.5
      %v475 = vmul.f32 %v471, 0.044715
      %v476 = vmul.f32 %v472, 0.044715
      %v477 = vmul.f32 %v475, %v471
      %v478 = vmul.f32 %v476, %v472
      %v479 = vmul.f32 %v477, %v471
      %v480 = vmul.f32 %v478, %v472
      %v481 = vadd.f32 %v471, %v479
      %v482 = vadd.f32 %v472, %v480
      %v483 = vmul.f32 %v481, 0.7978846
      %v484 = vmul.f32 %v482, 0.7978846
      %v485 = vtanh.pop %v483
      %v486 = vtanh.pop %v484
      %v487 = vadd.f32 %v485, 1.0
      %v488 = vadd.f32 %v486, 1.0
      %v489 = vmul.f32 %v473, %v487
      %v490 = vmul.f32 %v474, %v488
      %491 = vst.msk [vmem:[%s239] sm:$0xff] %vm280, %v489
      %492 = vst.msk [vmem:[%s239 + $0x8] sm:$0xff] %vm280, %v490
      %s493 = smul.u32 2, %s20
      %p494 = scmp.lt.s32.totalorder %s19, 1
      %s495 = scalar_select %p494, %s19, 1
      %p496 = scmp.lt.s32.totalorder %s493, 1
      %s497 = scalar_select %p496, %s493, 1
      %s498 = smul.addr %s495, 2
      %s499 = sadd.s32 %s497, %s498
      %s500 = smul.addr %s499, 8
      %s501 = scalar_lea.vmem %s4, %s500
      // Predicated region
      $region37: #{audio_encoder_forward.9} parent=35 // pred_check
        %p502 = pneg %p141
      $region38: #{audio_encoder_forward.9} parent=35 // pred_check_branch
        %504 = sbr.rel (%p502) target = $region40
      $region39: #{audio_encoder_forward.9} parent=35 // pred_region
        %s505 = smul.u32 2, %s20
      $region40: #{audio_encoder_forward.9} parent=35 // pred_fallthru
        _
    $region36: #{audio_encoder_forward.9} parent=5 // pred_fallthru
      _
    %p506 = scmp.le.s32.totalorder 2, %s10
    // Predicated region
    $region41: #{audio_encoder_forward.9} parent=5 // pred_check
      %p507 = pneg %p506
    $region42: #{audio_encoder_forward.9} parent=5 // pred_check_branch
      %509 = sbr.rel (%p507) target = $region44
    $region43: #{audio_encoder_forward.9} parent=5 // pred_region
      %s510 = ssub.s32 %s10, 2
      // Predicated region
      $region45: #{audio_encoder_forward.9} parent=43 // pred_check
        %p511 = pneg %p147
      $region46: #{audio_encoder_forward.9} parent=43 // pred_check_branch
        %513 = sbr.rel (%p511) target = $region48
      $region47: #{audio_encoder_forward.9} parent=43 // pred_region
        %s514 = smul.u32 2, %s22
        %p515 = scmp.lt.s32.totalorder %s21, 1
        %s516 = scalar_select %p515, %s21, 1
        %p517 = scmp.lt.s32.totalorder %s514, 1
        %s518 = scalar_select %p517, %s514, 1
        %s519 = smul.addr %s516, 2
        %s520 = sadd.s32 %s518, %s519
        %s521 = smul.addr %s520, 8
        %s522 = scalar_lea.vmem %s4, %s521
      $region48: #{audio_encoder_forward.9} parent=43 // pred_fallthru
        _
    $region44: #{audio_encoder_forward.9} parent=5 // pred_fallthru
      _
  $region6: #{audio_encoder_forward.9} parent=0 // loop_footer
    %s14 = sadd.s32 1, %s10
  $region7: #{audio_encoder_forward.9} parent=0 // loop_footer_branch
    %9 = sbr.rel target = $region3
  $region8: #{audio_encoder_forward.9} parent=0 // loop_exit
    _

// kernel: audio_encoder_forward.10
$region0: #{audio_encoder_forward.10}
  #allocation0 [shape = 'u32[]', space=smem, size = 0x4, offset = 0x4, fixed_abs, tag = 'smem constant byte address 0x4 - core index']
  #allocation1 [shape = 'u32[144,128]{1,0:T(1,128)}', space=vmem, size = 0x12000, scoped, tag = 'internal scratch']
  %s0 = inlined_call_operand.vmem [shape: f32[32,32], index: 0, kind: input, shape index: {}]
  %s1 = inlined_call_operand.vmem [shape: f32[1,32], index: 1, kind: input, shape index: {}]
  %s2 = inlined_call_operand.vmem [shape: f32[1,32], index: 2, kind: input, shape index: {}]
  %s3 = inlined_call_operand.vmem [shape: bf16[32,32], index: 3, kind: input, shape index: {}]
  %s4 = inlined_call_operand.vmem [shape: f32[1,32], index: 4, kind: input, shape index: {}]
  %s5 = inlined_call_operand.vmem [shape: bf16[32,32], index: 5, kind: input, shape index: {}]
  %s6 = inlined_call_operand.vmem [shape: bf16[32,32], index: 6, kind: input, shape index: {}]
  %s7 = inlined_call_operand.vmem [shape: f32[1,32], index: 7, kind: input, shape index: {}]
  %s8 = inlined_call_operand.vmem [shape: bf16[32,32], index: 8, kind: output, shape index: {0}]
  %s9 = inlined_call_operand.vmem [shape: bf16[32,32], index: 9, kind: output, shape index: {1}]
  %s10 = inlined_call_operand.vmem [shape: bf16[32,32], index: 10, kind: output, shape index: {2}]
  %11 = xla_tuple %s8, %s9, %s10
  %s12 = sld [smem:[#allocation0]]
  $region58: #{audio_encoder_forward.10} parent=0
    _
  %s14 = ssub.s32 1, %s12
  %s15 = scalar_select 0, %s14, %s12
  // Predicated region
  $region2: #{audio_encoder_forward.10} parent=0 // pred_check
    _
  $region3: #{audio_encoder_forward.10} parent=0 // pred_check_branch
    %17 = sbr.rel (0) target = $region5
  $region4: #{audio_encoder_forward.10} parent=0 // pred_region
    _
  $region5: #{audio_encoder_forward.10} parent=0 // pred_fallthru
    _
  // Predicated region
  $region6: #{audio_encoder_forward.10} parent=0 // pred_check
    _
  $region7: #{audio_encoder_forward.10} parent=0 // pred_check_branch
    %19 = sbr.rel (0) target = $region9
  $region8: #{audio_encoder_forward.10} parent=0 // pred_region
    _
  $region9: #{audio_encoder_forward.10} parent=0 // pred_fallthru
    _
  // Predicated region
  $region10: #{audio_encoder_forward.10} parent=0 // pred_check
    _
  $region11: #{audio_encoder_forward.10} parent=0 // pred_check_branch
    %21 = sbr.rel (0) target = $region13
  $region12: #{audio_encoder_forward.10} parent=0 // pred_region
    _
  $region13: #{audio_encoder_forward.10} parent=0 // pred_fallthru
    _
  // Predicated region
  $region14: #{audio_encoder_forward.10} parent=0 // pred_check
    _
  $region15: #{audio_encoder_forward.10} parent=0 // pred_check_branch
    %23 = sbr.rel (0) target = $region17
  $region16: #{audio_encoder_forward.10} parent=0 // pred_region
    _
  $region17: #{audio_encoder_forward.10} parent=0 // pred_fallthru
    _
  // Predicated region
  $region18: #{audio_encoder_forward.10} parent=0 // pred_check
    _
  $region19: #{audio_encoder_forward.10} parent=0 // pred_check_branch
    %25 = sbr.rel (0) target = $region21
  $region20: #{audio_encoder_forward.10} parent=0 // pred_region
    _
  $region21: #{audio_encoder_forward.10} parent=0 // pred_fallthru
    _
  // Predicated region
  $region22: #{audio_encoder_forward.10} parent=0 // pred_check
    _
  $region23: #{audio_encoder_forward.10} parent=0 // pred_check_branch
    %27 = sbr.rel (0) target = $region25
  $region24: #{audio_encoder_forward.10} parent=0 // pred_region
    _
  $region25: #{audio_encoder_forward.10} parent=0 // pred_fallthru
    _
  // Predicated region
  $region26: #{audio_encoder_forward.10} parent=0 // pred_check
    _
  $region27: #{audio_encoder_forward.10} parent=0 // pred_check_branch
    %29 = sbr.rel (0) target = $region29
  $region28: #{audio_encoder_forward.10} parent=0 // pred_region
    _
  $region29: #{audio_encoder_forward.10} parent=0 // pred_fallthru
    _
  // Predicated region
  $region30: #{audio_encoder_forward.10} parent=0 // pred_check
    _
  $region31: #{audio_encoder_forward.10} parent=0 // pred_check_branch
    %31 = sbr.rel (0) target = $region33
  $region32: #{audio_encoder_forward.10} parent=0 // pred_region
    _
  $region33: #{audio_encoder_forward.10} parent=0 // pred_fallthru
    _
  %v33 = vld [vmem:[%s0] sm:$0xff]
  %v34 = vld [vmem:[%s0 + $0x8] sm:$0xff]
  %v35 = vld [vmem:[%s0 + $0x10] sm:$0xff]
  %v36 = vld [vmem:[%s0 + $0x18] sm:$0xff]
  %v37 = vld [vmem:[%s1] sm:$0x1]
  %v38 = vld [vmem:[%s2] sm:$0x1]
  %vm39 = vcmask 261120
  %v40 = vsel %vm39, %v33, 0.0
  %41 = vadd.xlane.f32.xlu0 %v40
  %v42 = vpop.xlane.xlu0 %41
  %v43 = vsel %vm39, %v34, 0.0
  %44 = vadd.xlane.f32.xlu0 %v43
  %v45 = vpop.xlane.xlu0 %44
  %v46 = vsel %vm39, %v35, 0.0
  %47 = vadd.xlane.f32.xlu0 %v46
  %v48 = vpop.xlane.xlu0 %47
  %v49 = vsel %vm39, %v36, 0.0
  %50 = vadd.xlane.f32.xlu0 %v49
  %v51 = vpop.xlane.xlu0 %50
  %v52 = vrcp.pop 32.0
  %v53 = vmul.f32 %v42, %v52
  %v54 = vmul.f32 %v45, %v52
  %v55 = vmul.f32 %v48, %v52
  %v56 = vmul.f32 %v51, %v52
  %v57 = vsub.f32 %v33, %v53
  %v58 = vsub.f32 %v34, %v54
  %v59 = vsub.f32 %v35, %v55
  %v60 = vsub.f32 %v36, %v56
  %v61 = vmul.f32 %v57, %v57
  %v62 = vmul.f32 %v58, %v58
  %v63 = vmul.f32 %v59, %v59
  %v64 = vmul.f32 %v60, %v60
  %v65 = vsel %vm39, %v61, 0.0
  %66 = vadd.xlane.f32.xlu0 %v65
  %v67 = vpop.xlane.xlu0 %66
  %v68 = vsel %vm39, %v62, 0.0
  %69 = vadd.xlane.f32.xlu0 %v68
  %v70 = vpop.xlane.xlu0 %69
  %v71 = vsel %vm39, %v63, 0.0
  %72 = vadd.xlane.f32.xlu0 %v71
  %v73 = vpop.xlane.xlu0 %72
  %v74 = vsel %vm39, %v64, 0.0
  %75 = vadd.xlane.f32.xlu0 %v74
  %v76 = vpop.xlane.xlu0 %75
  %v77 = vmul.f32 %v67, %v52
  %v78 = vmul.f32 %v70, %v52
  %v79 = vmul.f32 %v73, %v52
  %v80 = vmul.f32 %v76, %v52
  %v81 = vadd.f32 %v77, 1e-05
  %v82 = vadd.f32 %v78, 1e-05
  %v83 = vadd.f32 %v79, 1e-05
  %v84 = vadd.f32 %v80, 1e-05
  %v85 = vrsqrt.pop %v81
  %v86 = vrsqrt.pop %v82
  %v87 = vrsqrt.pop %v83
  %v88 = vrsqrt.pop %v84
  %v89 = vmul.f32 %v57, %v85
  %v90 = vmul.f32 %v58, %v86
  %v91 = vmul.f32 %v59, %v87
  %v92 = vmul.f32 %v60, %v88
  %v94 = vlaneseq
  %v95 = vshrl.u32 %v94, 7
  %v96 = vsub.s32 0, %v95
  %v97 = vrot.slane %v37, %v96
  %v99 = vmul.f32 %v89, %v97
  %v100 = vmul.f32 %v90, %v97
  %v101 = vmul.f32 %v91, %v97
  %v102 = vmul.f32 %v92, %v97
  %v104 = vlaneseq
  %v105 = vshrl.u32 %v104, 7
  %v106 = vsub.s32 0, %v105
  %v107 = vrot.slane %v38, %v106
  %v109 = vadd.f32 %v99, %v107
  %v110 = vadd.f32 %v100, %v107
  %v111 = vadd.f32 %v101, %v107
  %v112 = vadd.f32 %v102, %v107
  %v113 = vpack.c.bf16 %v110, %v109
  %v114 = vpack.c.bf16 %v112, %v111
  %v115 = vld [vmem:[%s3] sm:$0xf]
  %v116 = vld [vmem:[%s3 + $0x4] sm:$0xf]
  %v117 = vld [vmem:[%s3 + $0x8] sm:$0xf]
  %v118 = vld [vmem:[%s3 + $0xc] sm:$0xf]
  %v119 = vld [vmem:[%s4] sm:$0x1]
  %v121 = vlaneseq
  %v122 = vshrl.u32 %v121, 7
  %v123 = vsub.s32 0, %v122
  %v124 = vrot.slane %v119, %v123
  %v130 = vunpack.c.l.b16 %v115
  %v131 = vunpack.c.l.b16 %v116
  %v132 = vunpack.c.l.b16 %v117
  %v133 = vunpack.c.l.b16 %v118
  %v134 = vpack.c.b16 %v131, %v130
  %v135 = vpack.c.b16 %v133, %v132
  %v139 = vsel %vm39, %v113, 0
  %v142 = vsel %vm39, %v114, 0
  %144 = vmatprep.subr.bf16.mxu0 0
  %145 = vmatpush1.bf16.msra.mxu0 0
  %146 = vmatprep.subr.bf16.mxu0 0
  %147 = vmatpush1.bf16.msra.mxu0 0
  %148 = vmatprep.subr.bf16.mxu0 0
  %149 = vmatpush1.bf16.msra.mxu0 0
  %150 = vmatprep.subr.bf16.mxu0 0
  %151 = vmatpush1.bf16.msra.mxu0 0
  %152 = vmatprep.subr.bf16.mxu0 0
  %153 = vmatpush1.bf16.msra.mxu0 0
  %154 = vmatprep.subr.bf16.mxu0 0
  %155 = vmatpush1.bf16.msra.mxu0 0
  %156 = vmatprep.subr.bf16.mxu0 0
  %157 = vmatpush1.bf16.msra.mxu0 %v135
  %158 = vmatprep.subr.bf16.mxu0 0
  %159 = vmatpush1.bf16.msra.mxu0 %v134
  %160 = vmatprep.subr.bf16.mxu0 0
  %161 = vmatpush2.bf16.msra.mxu0 0
  %162 = vmatprep.subr.bf16.mxu0 0
  %163 = vmatpush2.bf16.msra.mxu0 0
  %164 = vmatprep.subr.bf16.mxu0 0
  %165 = vmatpush2.bf16.msra.mxu0 0
  %166 = vmatprep.subr.bf16.mxu0 0
  %167 = vmatpush2.bf16.msra.mxu0 0
  %168 = vmatprep.subr.bf16.mxu0 0
  %169 = vmatpush2.bf16.msra.mxu0 0
  %170 = vmatprep.subr.bf16.mxu0 0
  %171 = vmatpush2.bf16.msra.mxu0 0
  %172 = vmatprep.subr.bf16.mxu0 0
  %173 = vmatpush2.bf16.msra.mxu0 0
  %174 = vmatprep.subr.bf16.mxu0 0
  %175 = vmatpush2.bf16.msra.mxu0 0
  %176 = vmatprep.mubr.bf16.mxu0 0
  %177 = vmatmul.mubr.bf16.gmra.mxu0 %v139
  %v178 = vpop.f32.mrf.mxu0
  %v179 = vadd.f32 %v124, %v178
  %v180 = vpop.f32.mrf.mxu0
  %v181 = vpop.f32.mrf.mxu0
  %v182 = vadd.f32 %v124, %v181
  %v183 = vpop.f32.mrf.mxu0
  %184 = vmatprep.mubr.bf16.mxu0 0
  %185 = vmatmul.mubr.bf16.gmra.mxu0 %v142
  %v186 = vpop.f32.mrf.mxu0
  %v187 = vadd.f32 %v124, %v186
  %v188 = vpop.f32.mrf.mxu0
  %v189 = vpop.f32.mrf.mxu0
  %v190 = vadd.f32 %v124, %v189
  %v191 = vpop.f32.mrf.mxu0
  %192 = vdwg.mxu0
  %v193 = vld [vmem:[%s5] sm:$0xf]
  %v194 = vld [vmem:[%s5 + $0x4] sm:$0xf]
  %v195 = vld [vmem:[%s5 + $0x8] sm:$0xf]
  %v196 = vld [vmem:[%s5 + $0xc] sm:$0xf]
  %v201 = vunpack.c.l.b16 %v193
  %v202 = vunpack.c.l.b16 %v194
  %v203 = vunpack.c.l.b16 %v195
  %v204 = vunpack.c.l.b16 %v196
  %v205 = vpack.c.b16 %v202, %v201
  %v206 = vpack.c.b16 %v204, %v203
  %209 = vmatprep.subr.bf16.mxu0 0
  %210 = vmatpush1.bf16.msra.mxu0 0
  %211 = vmatprep.subr.bf16.mxu0 0
  %212 = vmatpush1.bf16.msra.mxu0 0
  %213 = vmatprep.subr.bf16.mxu0 0
  %214 = vmatpush1.bf16.msra.mxu0 0
  %215 = vmatprep.subr.bf16.mxu0 0
  %216 = vmatpush1.bf16.msra.mxu0 0
  %217 = vmatprep.subr.bf16.mxu0 0
  %218 = vmatpush1.bf16.msra.mxu0 0
  %219 = vmatprep.subr.bf16.mxu0 0
  %220 = vmatpush1.bf16.msra.mxu0 0
  %221 = vmatprep.subr.bf16.mxu0 0
  %222 = vmatpush1.bf16.msra.mxu0 %v206
  %223 = vmatprep.subr.bf16.mxu0 0
  %224 = vmatpush1.bf16.msra.mxu0 %v205
  %225 = vmatprep.subr.bf16.mxu0 0
  %226 = vmatpush2.bf16.msra.mxu0 0
  %227 = vmatprep.subr.bf16.mxu0 0
  %228 = vmatpush2.bf16.msra.mxu0 0
  %229 = vmatprep.subr.bf16.mxu0 0
  %230 = vmatpush2.bf16.msra.mxu0 0
  %231 = vmatprep.subr.bf16.mxu0 0
  %232 = vmatpush2.bf16.msra.mxu0 0
  %233 = vmatprep.subr.bf16.mxu0 0
  %234 = vmatpush2.bf16.msra.mxu0 0
  %235 = vmatprep.subr.bf16.mxu0 0
  %236 = vmatpush2.bf16.msra.mxu0 0
  %237 = vmatprep.subr.bf16.mxu0 0
  %238 = vmatpush2.bf16.msra.mxu0 0
  %239 = vmatprep.subr.bf16.mxu0 0
  %240 = vmatpush2.bf16.msra.mxu0 0
  %241 = vmatprep.mubr.bf16.mxu0 0
  %242 = vmatmul.mubr.bf16.gmra.mxu0 %v139
  %v243 = vpop.f32.mrf.mxu0
  %v244 = vadd.f32 0.0, %v243
  %v245 = vpop.f32.mrf.mxu0
  %v246 = vpop.f32.mrf.mxu0
  %v247 = vadd.f32 0.0, %v246
  %v248 = vpop.f32.mrf.mxu0
  %249 = vmatprep.mubr.bf16.mxu0 0
  %250 = vmatmul.mubr.bf16.gmra.mxu0 %v142
  %v251 = vpop.f32.mrf.mxu0
  %v252 = vadd.f32 0.0, %v251
  %v253 = vpop.f32.mrf.mxu0
  %v254 = vpop.f32.mrf.mxu0
  %v255 = vadd.f32 0.0, %v254
  %v256 = vpop.f32.mrf.mxu0
  %257 = vdwg.mxu0
  %v258 = vld [vmem:[%s6] sm:$0xf]
  %v259 = vld [vmem:[%s6 + $0x4] sm:$0xf]
  %v260 = vld [vmem:[%s6 + $0x8] sm:$0xf]
  %v261 = vld [vmem:[%s6 + $0xc] sm:$0xf]
  %v262 = vld [vmem:[%s7] sm:$0x1]
  %v264 = vlaneseq
  %v265 = vshrl.u32 %v264, 7
  %v266 = vsub.s32 0, %v265
  %v267 = vrot.slane %v262, %v266
  %v273 = vunpack.c.l.b16 %v258
  %v274 = vunpack.c.l.b16 %v259
  %v275 = vunpack.c.l.b16 %v260
  %v276 = vunpack.c.l.b16 %v261
  %v277 = vpack.c.b16 %v274, %v273
  %v278 = vpack.c.b16 %v276, %v275
  %281 = vmatprep.subr.bf16.mxu0 0
  %282 = vmatpush1.bf16.msra.mxu0 0
  %283 = vmatprep.subr.bf16.mxu0 0
  %284 = vmatpush1.bf16.msra.mxu0 0
  %285 = vmatprep.subr.bf16.mxu0 0
  %286 = vmatpush1.bf16.msra.mxu0 0
  %287 = vmatprep.subr.bf16.mxu0 0
  %288 = vmatpush1.bf16.msra.mxu0 0
  %289 = vmatprep.subr.bf16.mxu0 0
  %290 = vmatpush1.bf16.msra.mxu0 0
  %291 = vmatprep.subr.bf16.mxu0 0
  %292 = vmatpush1.bf16.msra.mxu0 0
  %293 = vmatprep.subr.bf16.mxu0 0
  %294 = vmatpush1.bf16.msra.mxu0 %v278
  %295 = vmatprep.subr.bf16.mxu0 0
  %296 = vmatpush1.bf16.msra.mxu0 %v277
  %297 = vmatprep.subr.bf16.mxu0 0
  %298 = vmatpush2.bf16.msra.mxu0 0
  %299 = vmatprep.subr.bf16.mxu0 0
  %300 = vmatpush2.bf16.msra.mxu0 0
  %301 = vmatprep.subr.bf16.mxu0 0
  %302 = vmatpush2.bf16.msra.mxu0 0
  %303 = vmatprep.subr.bf16.mxu0 0
  %304 = vmatpush2.bf16.msra.mxu0 0
  %305 = vmatprep.subr.bf16.mxu0 0
  %306 = vmatpush2.bf16.msra.mxu0 0
  %307 = vmatprep.subr.bf16.mxu0 0
  %308 = vmatpush2.bf16.msra.mxu0 0
  %309 = vmatprep.subr.bf16.mxu0 0
  %310 = vmatpush2.bf16.msra.mxu0 0
  %311 = vmatprep.subr.bf16.mxu0 0
  %312 = vmatpush2.bf16.msra.mxu0 0
  %313 = vmatprep.mubr.bf16.mxu0 0
  %314 = vmatmul.mubr.bf16.gmra.mxu0 %v139
  %v315 = vpop.f32.mrf.mxu0
  %v316 = vadd.f32 %v267, %v315
  %v317 = vpop.f32.mrf.mxu0
  %v318 = vpop.f32.mrf.mxu0
  %v319 = vadd.f32 %v267, %v318
  %v320 = vpop.f32.mrf.mxu0
  %321 = vmatprep.mubr.bf16.mxu0 0
  %322 = vmatmul.mubr.bf16.gmra.mxu0 %v142
  %v323 = vpop.f32.mrf.mxu0
  %v324 = vadd.f32 %v267, %v323
  %v325 = vpop.f32.mrf.mxu0
  %v326 = vpop.f32.mrf.mxu0
  %v327 = vadd.f32 %v267, %v326
  %v328 = vpop.f32.mrf.mxu0
  %329 = vdwg.mxu0
  %v330 = vpack.c.bf16 %v182, %v179
  %v331 = vpack.c.bf16 %v190, %v187
  %v334 = vunpack.c.l.b16 %v330
  %v335 = vunpack.c.h.b16 %v330
  %v336 = vunpack.c.l.b16 %v331
  %v337 = vunpack.c.h.b16 %v331
  %v338 = vpack.c.b16 %v334, %v334
  %v339 = vpack.c.b16 %v335, %v335
  %v340 = vpack.c.b16 %v336, %v336
  %v341 = vpack.c.b16 %v337, %v337
  %vm346 = vcmask 257024
  %347 = vst.msk [vmem:[%s8] sm:$0xf] %vm346, %v338
  %348 = vst.msk [vmem:[%s8 + $0x4] sm:$0xf] %vm346, %v339
  %349 = vst.msk [vmem:[%s8 + $0x8] sm:$0xf] %vm346, %v340
  %350 = vst.msk [vmem:[%s8 + $0xc] sm:$0xf] %vm346, %v341
  %v351 = vpack.c.bf16 %v247, %v244
  %v352 = vpack.c.bf16 %v255, %v252
  %v355 = vunpack.c.l.b16 %v351
  %v356 = vunpack.c.h.b16 %v351
  %v357 = vunpack.c.l.b16 %v352
  %v358 = vunpack.c.h.b16 %v352
  %v359 = vpack.c.b16 %v355, %v355
  %v360 = vpack.c.b16 %v356, %v356
  %v361 = vpack.c.b16 %v357, %v357
  %v362 = vpack.c.b16 %v358, %v358
  %367 = vst.msk [vmem:[%s9] sm:$0xf] %vm346, %v359
  %368 = vst.msk [vmem:[%s9 + $0x4] sm:$0xf] %vm346, %v360
  %369 = vst.msk [vmem:[%s9 + $0x8] sm:$0xf] %vm346, %v361
  %370 = vst.msk [vmem:[%s9 + $0xc] sm:$0xf] %vm346, %v362
  %v371 = vpack.c.bf16 %v319, %v316
  %v372 = vpack.c.bf16 %v327, %v324
  %v375 = vunpack.c.l.b16 %v371
  %v376 = vunpack.c.h.b16 %v371
  %v377 = vunpack.c.l.b16 %v372
  %v378 = vunpack.c.h.b16 %v372
  %v379 = vpack.c.b16 %v375, %v375
  %v380 = vpack.c.b16 %v376, %v376
  %v381 = vpack.c.b16 %v377, %v377
  %v382 = vpack.c.b16 %v378, %v378
  %387 = vst.msk [vmem:[%s10] sm:$0xf] %vm346, %v379
  %388 = vst.msk [vmem:[%s10 + $0x4] sm:$0xf] %vm346, %v380
  %389 = vst.msk [vmem:[%s10 + $0x8] sm:$0xf] %vm346, %v381
  %390 = vst.msk [vmem:[%s10 + $0xc] sm:$0xf] %vm346, %v382
  // Predicated region
  $region34: #{audio_encoder_forward.10} parent=0 // pred_check
    _
  $region35: #{audio_encoder_forward.10} parent=0 // pred_check_branch
    %392 = sbr.rel (0) target = $region37
  $region36: #{audio_encoder_forward.10} parent=0 // pred_region
    _
  $region37: #{audio_encoder_forward.10} parent=0 // pred_fallthru
    _
  // Predicated region
  $region38: #{audio_encoder_forward.10} parent=0 // pred_check
    _
  $region39: #{audio_encoder_forward.10} parent=0 // pred_check_branch
    %394 = sbr.rel (0) target = $region41
  $region40: #{audio_encoder_forward.10} parent=0 // pred_region
    _
  $region41: #{audio_encoder_forward.10} parent=0 // pred_fallthru
    _
  // Predicated region
  $region42: #{audio_encoder_forward.10} parent=0 // pred_check
    _
  $region43: #{audio_encoder_forward.10} parent=0 // pred_check_branch
    %396 = sbr.rel (0) target = $region45
  $region44: #{audio_encoder_forward.10} parent=0 // pred_region
    _
  $region45: #{audio_encoder_forward.10} parent=0 // pred_fallthru
    _
  // Predicated region
  $region46: #{audio_encoder_forward.10} parent=0 // pred_check
    _
  $region47: #{audio_encoder_forward.10} parent=0 // pred_check_branch
    %398 = sbr.rel (0) target = $region49
  $region48: #{audio_encoder_forward.10} parent=0 // pred_region
    _
  $region49: #{audio_encoder_forward.10} parent=0 // pred_fallthru
    _
  // Predicated region
  $region50: #{audio_encoder_forward.10} parent=0 // pred_check
    _
  $region51: #{audio_encoder_forward.10} parent=0 // pred_check_branch
    %400 = sbr.rel (0) target = $region53
  $region52: #{audio_encoder_forward.10} parent=0 // pred_region
    _
  $region53: #{audio_encoder_forward.10} parent=0 // pred_fallthru
    _
  // Predicated region
  $region54: #{audio_encoder_forward.10} parent=0 // pred_check
    _
  $region55: #{audio_encoder_forward.10} parent=0 // pred_check_branch
    %402 = sbr.rel (0) target = $region57
  $region56: #{audio_encoder_forward.10} parent=0 // pred_region
    _
  $region57: #{audio_encoder_forward.10} parent=0 // pred_fallthru
    _

// kernel: audio_encoder_forward.8
$region0: #{audio_encoder_forward.8}
  #allocation0 [shape = 'u32[]', space=smem, size = 0x4, offset = 0x4, fixed_abs, tag = 'smem constant byte address 0x4 - core index']
  #allocation1 [shape = 'u32[144,128]{1,0:T(1,128)}', space=vmem, size = 0x12000, scoped, tag = 'internal scratch']
  %s0 = inlined_call_operand.vmem [shape: bf16[2,34,128], index: 0, kind: input, shape index: {}]
  %s1 = inlined_call_operand.vmem [shape: bf16[3,128,32], index: 1, kind: input, shape index: {}]
  %s2 = inlined_call_operand.vmem [shape: f32[1,32], index: 2, kind: input, shape index: {}]
  %s3 = inlined_call_operand.vmem [shape: bf16[2,32,32], index: 3, kind: output, shape index: {}]
  %s4 = sld [smem:[#allocation0]]
  $region45: #{audio_encoder_forward.8} parent=0
    _
  %s6 = ssub.s32 1, %s4
  %s7 = scalar_select 0, %s6, %s4
  loop: start=0, step=1, limit=4
  $region2: #{audio_encoder_forward.8} parent=0 // loop_pre_header
    _
  $region3: #{audio_encoder_forward.8} parent=0 // loop_header
    %s9 = sphi 0, %s13
    %p10 = scmp.ge.s32.totalorder %s9, 4
    %s16 = sphi 0, %s28
    %s17 = sphi 0, %s24
    %s18 = sphi 0, %s16
    %s19 = sphi 0, %s17
    %s20 = sphi 0, %s18
    %s21 = sphi 0, %s19
    %s31 = sphi 0, %s33
    %s34 = sphi 0, %s31
    %s35 = sphi 0, %s34
    %s51 = sphi 0, %s35
    %s55 = sphi 0, %s55
    %s57 = sphi 0, %s55
    %s58 = sphi 0, %s57
    %s72 = sphi 0, %s58
    %s76 = sphi 0, %s76
    %s78 = sphi 0, %s76
    %s79 = sphi 0, %s78
    %s93 = sphi 0, %s79
    %s101 = sphi 0, %s103
    %s104 = sphi 0, %s101
    %s105 = sphi 0, %s104
    %s121 = sphi 0, %s105
  $region4: #{audio_encoder_forward.8} parent=0 // loop_header_branch
    %12 = sbr.rel (%p10) target = $region8
  $region5: #{audio_encoder_forward.8} parent=0 // loop_body
    %s14 = ssub.s32 %s9, 1
    %s15 = ssub.s32 %s9, 2
    %s22 = sadd.s32 1, %s17
    %p23 = scmp.ge.s32.totalorder %s22, 1
    %s24 = scalar_select %p23, 0, %s22
    %s25 = sadd.s32 1, %s16
    %s26 = scalar_select %p23, %s25, %s16
    %p27 = scmp.ge.s32.totalorder %s26, 2
    %s28 = scalar_select %p27, 0, %s26
    %s29 = ssub.s32 %s16, %s28
    %p30 = scmp.eq.s32.totalorder %s29, 0
    %s32 = sadd.s32 %s31, 1
    %s33 = scalar_select %p30, %s31, %s32
    %p36 = pneg %p30
    %p37 = scmp.eq.s32.totalorder %s9, 1
    %p38 = por %p36, %p37
    %p39 = scmp.ne.s32.totalorder %s31, %s34
    %p40 = scmp.eq.s32.totalorder %s9, 0
    %p41 = por %p39, %p40
    %p42 = scmp.ne.s32.totalorder %s31, %s34
    %p43 = scmp.eq.s32.totalorder %s14, 1
    %p44 = por %p42, %p43
    %p45 = scmp.ne.s32.totalorder %s34, %s35
    %p46 = scmp.eq.s32.totalorder %s14, 0
    %p47 = por %p45, %p46
    %p48 = scmp.ne.s32.totalorder %s34, %s35
    %p49 = scmp.eq.s32.totalorder %s15, 1
    %p50 = por %p48, %p49
    %p52 = scmp.ne.s32.totalorder %s35, %s51
    %p53 = scmp.eq.s32.totalorder %s15, 0
    %p54 = por %p52, %p53
    %s56 = sadd.s32 %s55, 1
    %p59 = scmp.eq.s32.totalorder %s9, 1
    %p60 = scmp.ne.s32.totalorder %s55, %s57
    %p61 = scmp.eq.s32.totalorder %s9, 0
    %p62 = por %p60, %p61
    %p63 = scmp.ne.s32.totalorder %s55, %s57
    %p64 = scmp.eq.s32.totalorder %s14, 1
    %p65 = por %p63, %p64
    %p66 = scmp.ne.s32.totalorder %s57, %s58
    %p67 = scmp.eq.s32.totalorder %s14, 0
    %p68 = por %p66, %p67
    %p69 = scmp.ne.s32.totalorder %s57, %s58
    %p70 = scmp.eq.s32.totalorder %s15, 1
    %p71 = por %p69, %p70
    %p73 = scmp.ne.s32.totalorder %s58, %s72
    %p74 = scmp.eq.s32.totalorder %s15, 0
    %p75 = por %p73, %p74
    %s77 = sadd.s32 %s76, 1
    %p80 = scmp.eq.s32.totalorder %s9, 1
    %p81 = scmp.ne.s32.totalorder %s76, %s78
    %p82 = scmp.eq.s32.totalorder %s9, 0
    %p83 = por %p81, %p82
    %p84 = scmp.ne.s32.totalorder %s76, %s78
    %p85 = scmp.eq.s32.totalorder %s14, 1
    %p86 = por %p84, %p85
    %p87 = scmp.ne.s32.totalorder %s78, %s79
    %p88 = scmp.eq.s32.totalorder %s14, 0
    %p89 = por %p87, %p88
    %p90 = scmp.ne.s32.totalorder %s78, %s79
    %p91 = scmp.eq.s32.totalorder %s15, 1
    %p92 = por %p90, %p91
    %p94 = scmp.ne.s32.totalorder %s79, %s93
    %p95 = scmp.eq.s32.totalorder %s15, 0
    %p96 = por %p94, %p95
    %s97 = ssub.s32 %s16, %s28
    %s98 = ssub.s32 %s17, %s24
    %s99 = sor.u32 %s97, %s98
    %p100 = scmp.eq.s32.totalorder %s99, 0
    %s102 = sadd.s32 %s101, 1
    %s103 = scalar_select %p100, %s101, %s102
    %p106 = pneg %p100
    %p107 = scmp.eq.s32.totalorder %s9, 1
    %p108 = por %p106, %p107
    %p109 = scmp.ne.s32.totalorder %s101, %s104
    %p110 = scmp.eq.s32.totalorder %s9, 0
    %p111 = por %p109, %p110
    %p112 = scmp.ne.s32.totalorder %s101, %s104
    %p113 = scmp.eq.s32.totalorder %s14, 1
    %p114 = por %p112, %p113
    %p115 = scmp.ne.s32.totalorder %s104, %s105
    %p116 = scmp.eq.s32.totalorder %s14, 0
    %p117 = por %p115, %p116
    %p118 = scmp.ne.s32.totalorder %s104, %s105
    %p119 = scmp.eq.s32.totalorder %s15, 1
    %p120 = por %p118, %p119
    %p122 = scmp.ne.s32.totalorder %s105, %s121
    %p123 = scmp.eq.s32.totalorder %s15, 0
    %p124 = por %p122, %p123
    %p125 = scmp.le.s32.totalorder 1, %s9
    %p126 = scmp.lt.s32.totalorder %s9, 3
    %p127 = pnand %p125, %p126
    %p128 = pneg %p127
    // Predicated region
    $region9: #{audio_encoder_forward.8} parent=5 // pred_check
      _
    $region10: #{audio_encoder_forward.8} parent=5 // pred_check_branch
      %130 = sbr.rel (%p127) target = $region12
    $region11: #{audio_encoder_forward.8} parent=5 // pred_region
      %s131 = ssub.s32 %s9, 1
      // Predicated region
      $region13: #{audio_encoder_forward.8} parent=11 // pred_check
        %p132 = pneg %p68
      $region14: #{audio_encoder_forward.8} parent=11 // pred_check_branch
        %134 = sbr.rel (%p132) target = $region16
      $region15: #{audio_encoder_forward.8} parent=11 // pred_region
        _
      $region16: #{audio_encoder_forward.8} parent=11 // pred_fallthru
        _
      // Predicated region
      $region17: #{audio_encoder_forward.8} parent=11 // pred_check
        %p135 = pneg %p89
      $region18: #{audio_encoder_forward.8} parent=11 // pred_check_branch
        %137 = sbr.rel (%p135) target = $region20
      $region19: #{audio_encoder_forward.8} parent=11 // pred_region
        _
      $region20: #{audio_encoder_forward.8} parent=11 // pred_fallthru
        _
    $region12: #{audio_encoder_forward.8} parent=5 // pred_fallthru
      _
    %p138 = scmp.lt.s32.totalorder %s9, 2
    // Predicated region
    $region21: #{audio_encoder_forward.8} parent=5 // pred_check
      %p139 = pneg %p138
    $region22: #{audio_encoder_forward.8} parent=5 // pred_check_branch
      %141 = sbr.rel (%p139) target = $region24
    $region23: #{audio_encoder_forward.8} parent=5 // pred_region
      // Predicated region
      $region25: #{audio_encoder_forward.8} parent=23 // pred_check
        %p142 = pneg %p41
      $region26: #{audio_encoder_forward.8} parent=23 // pred_check_branch
        %144 = sbr.rel (%p142) target = $region28
      $region27: #{audio_encoder_forward.8} parent=23 // pred_region
        %p145 = scmp.lt.s32.totalorder %s16, 1
        %s146 = scalar_select %p145, %s16, 1
        %s147 = smul.addr %s146, 5
        %s148 = smul.addr %s147, 4
        %s149 = scalar_lea.vmem %s0, %s148
      $region28: #{audio_encoder_forward.8} parent=23 // pred_fallthru
        _
    $region24: #{audio_encoder_forward.8} parent=5 // pred_fallthru
      _
    %p150 = scmp.le.s32.totalorder 1, %s9
    %p151 = scmp.lt.s32.totalorder %s9, 3
    %p152 = pnand %p150, %p151
    %p153 = pneg %p152
    // Predicated region
    $region29: #{audio_encoder_forward.8} parent=5 // pred_check
      _
    $region30: #{audio_encoder_forward.8} parent=5 // pred_check_branch
      %155 = sbr.rel (%p152) target = $region32
    $region31: #{audio_encoder_forward.8} parent=5 // pred_region
      %s156 = ssub.s32 %s9, 1
      %p157 = scmp.lt.s32.totalorder %s18, 1
      %s158 = scalar_select %p157, %s18, 1
      %s159 = smul.addr %s158, 5
      %s160 = smul.addr %s159, 4
      %s161 = scalar_lea.vmem %s0, %s160
      %p162 = pneg %p47
      %p163 = pneg %p44
      %p164 = pneg %p68
      %p165 = pneg %p65
      %p166 = pneg %p89
      %p167 = pneg %p86
      %p168 = pneg %p117
      %p169 = pneg %p114
      %s170 = smul.u32 4, %s19
      %p171 = scmp.lt.s32.totalorder %s18, 1
      %s172 = scalar_select %p171, %s18, 1
      %p173 = scmp.lt.s32.totalorder %s170, 3
      %s174 = scalar_select %p173, %s170, 3
      %s175 = smul.addr %s172, 4
      %s176 = sadd.s32 %s174, %s175
      %s177 = smul.addr %s176, 4
      %s178 = scalar_lea.vmem %s3, %s177
      %p179 = scmp.lt.s32.totalorder %s18, 1
      %s180 = scalar_select %p179, %s18, 1
      %s181 = smul.addr %s180, 5
      %s182 = smul.addr %s181, 4
      %s183 = scalar_lea.vmem %s0, %s182
      %s184 = smul.u32 4, %s19
      %p185 = scmp.lt.s32.totalorder %s18, 1
      %s186 = scalar_select %p185, %s18, 1
      %p187 = scmp.lt.s32.totalorder %s184, 3
      %s188 = scalar_select %p187, %s184, 3
      %s189 = smul.addr %s186, 4
      %s190 = sadd.s32 %s188, %s189
      %s191 = smul.addr %s190, 4
      %s192 = scalar_lea.vmem %s3, %s191
      %s193 = smul.u32 4, %s19
      %s195 = smul.u32 %s19, 32
      %s196 = sshra.s32 %s195, 3
      %s197 = sand.u32 %s195, 7
      %s198 = smul.addr %s196, 4
      %s199 = scalar_lea.vmem %s183, %s198
      %v200 = vld [vmem:[%s199] sm:$0xf]
      %v201 = vld [vmem:[%s199 + $0x4] sm:$0xf]
      %v202 = vld [vmem:[%s199 + $0x8] sm:$0xf]
      %v203 = vld [vmem:[%s199 + $0xc] sm:$0xf]
      %v204 = vld [vmem:[%s199 + $0x10] sm:$0x1]
      %v205 = vld [vmem:[%s1] sm:$0xf]
      %v206 = vld [vmem:[%s1 + $0x4] sm:$0xf]
      %v207 = vld [vmem:[%s1 + $0x8] sm:$0xf]
      %v208 = vld [vmem:[%s1 + $0xc] sm:$0xf]
      %v209 = vld [vmem:[%s1 + $0x10] sm:$0xf]
      %v210 = vld [vmem:[%s1 + $0x14] sm:$0xf]
      %v211 = vld [vmem:[%s1 + $0x18] sm:$0xf]
      %v212 = vld [vmem:[%s1 + $0x1c] sm:$0xf]
      %v213 = vld [vmem:[%s1 + $0x20] sm:$0xf]
      %v214 = vld [vmem:[%s1 + $0x24] sm:$0xf]
      %v215 = vld [vmem:[%s1 + $0x28] sm:$0xf]
      %v216 = vld [vmem:[%s1 + $0x2c] sm:$0xf]
      %v217 = vld [vmem:[%s1 + $0x30] sm:$0xf]
      %v218 = vld [vmem:[%s1 + $0x34] sm:$0xf]
      %v219 = vld [vmem:[%s1 + $0x38] sm:$0xf]
      %v220 = vld [vmem:[%s1 + $0x3c] sm:$0xf]
      %s221 = scalar_lea.vmem %s1, 64
      %v222 = vld [vmem:[%s221] sm:$0xf]
      %v223 = vld [vmem:[%s221 + $0x4] sm:$0xf]
      %v224 = vld [vmem:[%s221 + $0x8] sm:$0xf]
      %v225 = vld [vmem:[%s221 + $0xc] sm:$0xf]
      %v226 = vld [vmem:[%s221 + $0x10] sm:$0xf]
      %v227 = vld [vmem:[%s221 + $0x14] sm:$0xf]
      %v228 = vld [vmem:[%s221 + $0x18] sm:$0xf]
      %v229 = vld [vmem:[%s221 + $0x1c] sm:$0xf]
      %v230 = vld [vmem:[%s221 + $0x20] sm:$0xf]
      %v231 = vld [vmem:[%s221 + $0x24] sm:$0xf]
      %v232 = vld [vmem:[%s221 + $0x28] sm:$0xf]
      %v233 = vld [vmem:[%s221 + $0x2c] sm:$0xf]
      %v234 = vld [vmem:[%s221 + $0x30] sm:$0xf]
      %v235 = vld [vmem:[%s221 + $0x34] sm:$0xf]
      %v236 = vld [vmem:[%s221 + $0x38] sm:$0xf]
      %v237 = vld [vmem:[%s221 + $0x3c] sm:$0xf]
      %v243 = vunpack.c.l.b16 %v200
      %v244 = vunpack.c.l.b16 %v201
      %v245 = vunpack.c.l.b16 %v202
      %v246 = vunpack.c.l.b16 %v203
      %v247 = vunpack.c.l.b16 %v204
      %v248 = vpack.c.b16 %v244, %v243
      %v249 = vpack.c.b16 %v246, %v245
      %v250 = vpack.c.b16 %v247, %v247
      %vm251 = vsmask.f32 7424
      %v253 = vshrl.u32 %v248, 16
      %v255 = vshll.u32 %v248, 16
      %v257 = vrot.slane %v255, 1
      %v258 = vor.u32 %v253, %v257
      %v260 = vshll.u32 %v249, 16
      %v262 = vrot.slane %v260, 1
      %v263 = vsel %vm251, %v258, %v262
      %v264 = vshrl.u32 %v249, 16
      %v266 = vor.u32 %v264, %v262
      %v268 = vshll.u32 %v250, 16
      %v270 = vrot.slane %v268, 1
      %v271 = vsel %vm251, %v266, %v270
      %v290 = vunpack.c.l.b16 %v222
      %v291 = vunpack.c.l.b16 %v223
      %v292 = vunpack.c.l.b16 %v224
      %v293 = vunpack.c.l.b16 %v225
      %v294 = vunpack.c.l.b16 %v226
      %v295 = vunpack.c.l.b16 %v227
      %v296 = vunpack.c.l.b16 %v228
      %v297 = vunpack.c.l.b16 %v229
      %v298 = vunpack.c.l.b16 %v230
      %v299 = vunpack.c.l.b16 %v231
      %v300 = vunpack.c.l.b16 %v232
      %v301 = vunpack.c.l.b16 %v233
      %v302 = vunpack.c.l.b16 %v234
      %v303 = vunpack.c.l.b16 %v235
      %v304 = vunpack.c.l.b16 %v236
      %v305 = vunpack.c.l.b16 %v237
      %v306 = vpack.c.b16 %v291, %v290
      %v307 = vpack.c.b16 %v293, %v292
      %v308 = vpack.c.b16 %v295, %v294
      %v309 = vpack.c.b16 %v297, %v296
      %v310 = vpack.c.b16 %v299, %v298
      %v311 = vpack.c.b16 %v301, %v300
      %v312 = vpack.c.b16 %v303, %v302
      %v313 = vpack.c.b16 %v305, %v304
      %322 = vmatprep.subr.bf16.mxu0 0
      %323 = vmatpush1.bf16.msra.mxu0 %v313
      %324 = vmatprep.subr.bf16.mxu0 0
      %325 = vmatpush1.bf16.msra.mxu0 %v312
      %326 = vmatprep.subr.bf16.mxu0 0
      %327 = vmatpush1.bf16.msra.mxu0 %v311
      %328 = vmatprep.subr.bf16.mxu0 0
      %329 = vmatpush1.bf16.msra.mxu0 %v310
      %330 = vmatprep.subr.bf16.mxu0 0
      %331 = vmatpush1.bf16.msra.mxu0 %v309
      %332 = vmatprep.subr.bf16.mxu0 0
      %333 = vmatpush1.bf16.msra.mxu0 %v308
      %334 = vmatprep.subr.bf16.mxu0 0
      %335 = vmatpush1.bf16.msra.mxu0 %v307
      %336 = vmatprep.subr.bf16.mxu0 0
      %337 = vmatpush1.bf16.msra.mxu0 %v306
      %338 = vmatprep.subr.bf16.mxu0 0
      %339 = vmatpush2.bf16.msra.mxu0 0
      %340 = vmatprep.subr.bf16.mxu0 0
      %341 = vmatpush2.bf16.msra.mxu0 0
      %342 = vmatprep.subr.bf16.mxu0 0
      %343 = vmatpush2.bf16.msra.mxu0 0
      %344 = vmatprep.subr.bf16.mxu0 0
      %345 = vmatpush2.bf16.msra.mxu0 0
      %346 = vmatprep.subr.bf16.mxu0 0
      %347 = vmatpush2.bf16.msra.mxu0 0
      %348 = vmatprep.subr.bf16.mxu0 0
      %349 = vmatpush2.bf16.msra.mxu0 0
      %350 = vmatprep.subr.bf16.mxu0 0
      %351 = vmatpush2.bf16.msra.mxu0 0
      %352 = vmatprep.subr.bf16.mxu0 0
      %353 = vmatpush2.bf16.msra.mxu0 0
      %354 = vmatprep.mubr.bf16.mxu0 0
      %355 = vmatmul.mubr.bf16.gmra.mxu0 %v263
      %v356 = vpop.f32.mrf.mxu0
      %v357 = vadd.f32 0.0, %v356
      %v358 = vpop.f32.mrf.mxu0
      %v359 = vpop.f32.mrf.mxu0
      %v360 = vadd.f32 0.0, %v359
      %v361 = vpop.f32.mrf.mxu0
      %362 = vmatprep.mubr.bf16.mxu0 0
      %363 = vmatmul.mubr.bf16.gmra.mxu0 %v271
      %v364 = vpop.f32.mrf.mxu0
      %v365 = vadd.f32 0.0, %v364
      %v366 = vpop.f32.mrf.mxu0
      %v367 = vpop.f32.mrf.mxu0
      %v368 = vadd.f32 0.0, %v367
      %v369 = vpop.f32.mrf.mxu0
      %370 = vdwg.mxu0
      %v389 = vunpack.c.l.b16 %v205
      %v390 = vunpack.c.l.b16 %v206
      %v391 = vunpack.c.l.b16 %v207
      %v392 = vunpack.c.l.b16 %v208
      %v393 = vunpack.c.l.b16 %v209
      %v394 = vunpack.c.l.b16 %v210
      %v395 = vunpack.c.l.b16 %v211
      %v396 = vunpack.c.l.b16 %v212
      %v397 = vunpack.c.l.b16 %v213
      %v398 = vunpack.c.l.b16 %v214
      %v399 = vunpack.c.l.b16 %v215
      %v400 = vunpack.c.l.b16 %v216
      %v401 = vunpack.c.l.b16 %v217
      %v402 = vunpack.c.l.b16 %v218
      %v403 = vunpack.c.l.b16 %v219
      %v404 = vunpack.c.l.b16 %v220
      %v405 = vpack.c.b16 %v390, %v389
      %v406 = vpack.c.b16 %v392, %v391
      %v407 = vpack.c.b16 %v394, %v393
      %v408 = vpack.c.b16 %v396, %v395
      %v409 = vpack.c.b16 %v398, %v397
      %v410 = vpack.c.b16 %v400, %v399
      %v411 = vpack.c.b16 %v402, %v401
      %v412 = vpack.c.b16 %v404, %v403
      %421 = vmatprep.subr.bf16.mxu0 0
      %422 = vmatpush1.bf16.msra.mxu0 %v412
      %423 = vmatprep.subr.bf16.mxu0 0
      %424 = vmatpush1.bf16.msra.mxu0 %v411
      %425 = vmatprep.subr.bf16.mxu0 0
      %426 = vmatpush1.bf16.msra.mxu0 %v410
      %427 = vmatprep.subr.bf16.mxu0 0
      %428 = vmatpush1.bf16.msra.mxu0 %v409
      %429 = vmatprep.subr.bf16.mxu0 0
      %430 = vmatpush1.bf16.msra.mxu0 %v408
      %431 = vmatprep.subr.bf16.mxu0 0
      %432 = vmatpush1.bf16.msra.mxu0 %v407
      %433 = vmatprep.subr.bf16.mxu0 0
      %434 = vmatpush1.bf16.msra.mxu0 %v406
      %435 = vmatprep.subr.bf16.mxu0 0
      %436 = vmatpush1.bf16.msra.mxu0 %v405
      %437 = vmatprep.subr.bf16.mxu0 0
      %438 = vmatpush2.bf16.msra.mxu0 0
      %439 = vmatprep.subr.bf16.mxu0 0
      %440 = vmatpush2.bf16.msra.mxu0 0
      %441 = vmatprep.subr.bf16.mxu0 0
      %442 = vmatpush2.bf16.msra.mxu0 0
      %443 = vmatprep.subr.bf16.mxu0 0
      %444 = vmatpush2.bf16.msra.mxu0 0
      %445 = vmatprep.subr.bf16.mxu0 0
      %446 = vmatpush2.bf16.msra.mxu0 0
      %447 = vmatprep.subr.bf16.mxu0 0
      %448 = vmatpush2.bf16.msra.mxu0 0
      %449 = vmatprep.subr.bf16.mxu0 0
      %450 = vmatpush2.bf16.msra.mxu0 0
      %451 = vmatprep.subr.bf16.mxu0 0
      %452 = vmatpush2.bf16.msra.mxu0 0
      %453 = vmatprep.mubr.bf16.mxu0 0
      %454 = vmatmul.mubr.bf16.gmra.mxu0 %v248
      %v455 = vpop.f32.mrf.mxu0
      %v456 = vadd.f32 %v357, %v455
      %v457 = vpop.f32.mrf.mxu0
      %v458 = vpop.f32.mrf.mxu0
      %v459 = vadd.f32 %v360, %v458
      %v460 = vpop.f32.mrf.mxu0
      %461 = vmatprep.mubr.bf16.mxu0 0
      %462 = vmatmul.mubr.bf16.gmra.mxu0 %v249
      %v463 = vpop.f32.mrf.mxu0
      %v464 = vadd.f32 %v365, %v463
      %v465 = vpop.f32.mrf.mxu0
      %v466 = vpop.f32.mrf.mxu0
      %v467 = vadd.f32 %v368, %v466
      %v468 = vpop.f32.mrf.mxu0
      %469 = vdwg.mxu0
      %s470 = scalar_lea.vmem %s1, 128
      %v471 = vld [vmem:[%s470] sm:$0xf]
      %v472 = vld [vmem:[%s470 + $0x4] sm:$0xf]
      %v473 = vld [vmem:[%s470 + $0x8] sm:$0xf]
      %v474 = vld [vmem:[%s470 + $0xc] sm:$0xf]
      %v475 = vld [vmem:[%s470 + $0x10] sm:$0xf]
      %v476 = vld [vmem:[%s470 + $0x14] sm:$0xf]
      %v477 = vld [vmem:[%s470 + $0x18] sm:$0xf]
      %v478 = vld [vmem:[%s470 + $0x1c] sm:$0xf]
      %v479 = vld [vmem:[%s470 + $0x20] sm:$0xf]
      %v480 = vld [vmem:[%s470 + $0x24] sm:$0xf]
      %v481 = vld [vmem:[%s470 + $0x28] sm:$0xf]
      %v482 = vld [vmem:[%s470 + $0x2c] sm:$0xf]
      %v483 = vld [vmem:[%s470 + $0x30] sm:$0xf]
      %v484 = vld [vmem:[%s470 + $0x34] sm:$0xf]
      %v485 = vld [vmem:[%s470 + $0x38] sm:$0xf]
      %v486 = vld [vmem:[%s470 + $0x3c] sm:$0xf]
      %vm487 = vcmask 1046528
      %v488 = vrot.slane %v248, 1
      %v489 = vrot.slane %v249, 1
      %v490 = vsel %vm487, %v488, %v489
      %v491 = vrot.slane %v250, 1
      %v492 = vsel %vm487, %v489, %v491
      %v511 = vunpack.c.l.b16 %v471
      %v512 = vunpack.c.l.b16 %v472
      %v513 = vunpack.c.l.b16 %v473
      %v514 = vunpack.c.l.b16 %v474
      %v515 = vunpack.c.l.b16 %v475
      %v516 = vunpack.c.l.b16 %v476
      %v517 = vunpack.c.l.b16 %v477
      %v518 = vunpack.c.l.b16 %v478
      %v519 = vunpack.c.l.b16 %v479
      %v520 = vunpack.c.l.b16 %v480
      %v521 = vunpack.c.l.b16 %v481
      %v522 = vunpack.c.l.b16 %v482
      %v523 = vunpack.c.l.b16 %v483
      %v524 = vunpack.c.l.b16 %v484
      %v525 = vunpack.c.l.b16 %v485
      %v526 = vunpack.c.l.b16 %v486
      %v527 = vpack.c.b16 %v512, %v511
      %v528 = vpack.c.b16 %v514, %v513
      %v529 = vpack.c.b16 %v516, %v515
      %v530 = vpack.c.b16 %v518, %v517
      %v531 = vpack.c.b16 %v520, %v519
      %v532 = vpack.c.b16 %v522, %v521
      %v533 = vpack.c.b16 %v524, %v523
      %v534 = vpack.c.b16 %v526, %v525
      %543 = vmatprep.subr.bf16.mxu0 0
      %544 = vmatpush1.bf16.msra.mxu0 %v534
      %545 = vmatprep.subr.bf16.mxu0 0
      %546 = vmatpush1.bf16.msra.mxu0 %v533
      %547 = vmatprep.subr.bf16.mxu0 0
      %548 = vmatpush1.bf16.msra.mxu0 %v532
      %549 = vmatprep.subr.bf16.mxu0 0
      %550 = vmatpush1.bf16.msra.mxu0 %v531
      %551 = vmatprep.subr.bf16.mxu0 0
      %552 = vmatpush1.bf16.msra.mxu0 %v530
      %553 = vmatprep.subr.bf16.mxu0 0
      %554 = vmatpush1.bf16.msra.mxu0 %v529
      %555 = vmatprep.subr.bf16.mxu0 0
      %556 = vmatpush1.bf16.msra.mxu0 %v528
      %557 = vmatprep.subr.bf16.mxu0 0
      %558 = vmatpush1.bf16.msra.mxu0 %v527
      %559 = vmatprep.subr.bf16.mxu0 0
      %560 = vmatpush2.bf16.msra.mxu0 0
      %561 = vmatprep.subr.bf16.mxu0 0
      %562 = vmatpush2.bf16.msra.mxu0 0
      %563 = vmatprep.subr.bf16.mxu0 0
      %564 = vmatpush2.bf16.msra.mxu0 0
      %565 = vmatprep.subr.bf16.mxu0 0
      %566 = vmatpush2.bf16.msra.mxu0 0
      %567 = vmatprep.subr.bf16.mxu0 0
      %568 = vmatpush2.bf16.msra.mxu0 0
      %569 = vmatprep.subr.bf16.mxu0 0
      %570 = vmatpush2.bf16.msra.mxu0 0
      %571 = vmatprep.subr.bf16.mxu0 0
      %572 = vmatpush2.bf16.msra.mxu0 0
      %573 = vmatprep.subr.bf16.mxu0 0
      %574 = vmatpush2.bf16.msra.mxu0 0
      %575 = vmatprep.mubr.bf16.mxu0 0
      %576 = vmatmul.mubr.bf16.gmra.mxu0 %v490
      %v577 = vpop.f32.mrf.mxu0
      %v578 = vadd.f32 0.0, %v577
      %v579 = vpop.f32.mrf.mxu0
      %v580 = vpop.f32.mrf.mxu0
      %v581 = vadd.f32 0.0, %v580
      %v582 = vpop.f32.mrf.mxu0
      %583 = vmatprep.mubr.bf16.mxu0 0
      %584 = vmatmul.mubr.bf16.gmra.mxu0 %v492
      %v585 = vpop.f32.mrf.mxu0
      %v586 = vadd.f32 0.0, %v585
      %v587 = vpop.f32.mrf.mxu0
      %v588 = vpop.f32.mrf.mxu0
      %v589 = vadd.f32 0.0, %v588
      %v590 = vpop.f32.mrf.mxu0
      %591 = vdwg.mxu0
      %v592 = vadd.f32 %v456, %v578
      %v593 = vadd.f32 %v459, %v581
      %v594 = vadd.f32 %v464, %v586
      %v595 = vadd.f32 %v467, %v589
      %v596 = vld [vmem:[%s2] sm:$0x1]
      %v598 = vlaneseq
      %v599 = vshrl.u32 %v598, 7
      %v600 = vsub.s32 0, %v599
      %v601 = vrot.slane %v596, %v600
      %v603 = vadd.f32 %v592, %v601
      %v604 = vadd.f32 %v593, %v601
      %v605 = vadd.f32 %v594, %v601
      %v606 = vadd.f32 %v595, %v601
      %v607 = vmul.f32 %v603, 0.5
      %v608 = vmul.f32 %v604, 0.5
      %v609 = vmul.f32 %v605, 0.5
      %v610 = vmul.f32 %v606, 0.5
      %v611 = vmul.f32 %v603, 0.044715
      %v612 = vmul.f32 %v604, 0.044715
      %v613 = vmul.f32 %v605, 0.044715
      %v614 = vmul.f32 %v606, 0.044715
      %v615 = vmul.f32 %v611, %v603
      %v616 = vmul.f32 %v612, %v604
      %v617 = vmul.f32 %v613, %v605
      %v618 = vmul.f32 %v614, %v606
      %v619 = vmul.f32 %v615, %v603
      %v620 = vmul.f32 %v616, %v604
      %v621 = vmul.f32 %v617, %v605
      %v622 = vmul.f32 %v618, %v606
      %v623 = vadd.f32 %v603, %v619
      %v624 = vadd.f32 %v604, %v620
      %v625 = vadd.f32 %v605, %v621
      %v626 = vadd.f32 %v606, %v622
      %v627 = vmul.f32 %v623, 0.7978846
      %v628 = vmul.f32 %v624, 0.7978846
      %v629 = vmul.f32 %v625, 0.7978846
      %v630 = vmul.f32 %v626, 0.7978846
      %v631 = vtanh.pop %v627
      %v632 = vtanh.pop %v628
      %v633 = vtanh.pop %v629
      %v634 = vtanh.pop %v630
      %v635 = vadd.f32 %v631, 1.0
      %v636 = vadd.f32 %v632, 1.0
      %v637 = vadd.f32 %v633, 1.0
      %v638 = vadd.f32 %v634, 1.0
      %v639 = vmul.f32 %v607, %v635
      %v640 = vmul.f32 %v608, %v636
      %v641 = vmul.f32 %v609, %v637
      %v642 = vmul.f32 %v610, %v638
      %v643 = vpack.c.bf16 %v640, %v639
      %v644 = vpack.c.bf16 %v642, %v641
      %v647 = vunpack.c.l.b16 %v643
      %v648 = vunpack.c.h.b16 %v643
      %v649 = vunpack.c.l.b16 %v644
      %v650 = vunpack.c.h.b16 %v644
      %v651 = vpack.c.b16 %v647, %v647
      %v652 = vpack.c.b16 %v648, %v648
      %v653 = vpack.c.b16 %v649, %v649
      %v654 = vpack.c.b16 %v650, %v650
      %vm659 = vcmask 257024
      %660 = vst.msk [vmem:[%s192] sm:$0xf] %vm659, %v651
      %661 = vst.msk [vmem:[%s192 + $0x4] sm:$0xf] %vm659, %v652
      %662 = vst.msk [vmem:[%s192 + $0x8] sm:$0xf] %vm659, %v653
      %663 = vst.msk [vmem:[%s192 + $0xc] sm:$0xf] %vm659, %v654
      %s664 = smul.u32 4, %s19
      %p665 = scmp.lt.s32.totalorder %s18, 1
      %s666 = scalar_select %p665, %s18, 1
      %p667 = scmp.lt.s32.totalorder %s664, 3
      %s668 = scalar_select %p667, %s664, 3
      %s669 = smul.addr %s666, 4
      %s670 = sadd.s32 %s668, %s669
      %s671 = smul.addr %s670, 4
      %s672 = scalar_lea.vmem %s3, %s671
      // Predicated region
      $region33: #{audio_encoder_forward.8} parent=31 // pred_check
        %p673 = pneg %p114
      $region34: #{audio_encoder_forward.8} parent=31 // pred_check_branch
        %675 = sbr.rel (%p673) target = $region36
      $region35: #{audio_encoder_forward.8} parent=31 // pred_region
        %s676 = smul.u32 4, %s19
      $region36: #{audio_encoder_forward.8} parent=31 // pred_fallthru
        _
    $region32: #{audio_encoder_forward.8} parent=5 // pred_fallthru
      _
    %p677 = scmp.le.s32.totalorder 2, %s9
    // Predicated region
    $region37: #{audio_encoder_forward.8} parent=5 // pred_check
      %p678 = pneg %p677
    $region38: #{audio_encoder_forward.8} parent=5 // pred_check_branch
      %680 = sbr.rel (%p678) target = $region40
    $region39: #{audio_encoder_forward.8} parent=5 // pred_region
      %s681 = ssub.s32 %s9, 2
      // Predicated region
      $region41: #{audio_encoder_forward.8} parent=39 // pred_check
        %p682 = pneg %p120
      $region42: #{audio_encoder_forward.8} parent=39 // pred_check_branch
        %684 = sbr.rel (%p682) target = $region44
      $region43: #{audio_encoder_forward.8} parent=39 // pred_region
        %s685 = smul.u32 4, %s21
        %p686 = scmp.lt.s32.totalorder %s20, 1
        %s687 = scalar_select %p686, %s20, 1
        %p688 = scmp.lt.s32.totalorder %s685, 3
        %s689 = scalar_select %p688, %s685, 3
        %s690 = smul.addr %s687, 4
        %s691 = sadd.s32 %s689, %s690
        %s692 = smul.addr %s691, 4
        %s693 = scalar_lea.vmem %s3, %s692
      $region44: #{audio_encoder_forward.8} parent=39 // pred_fallthru
        _
    $region40: #{audio_encoder_forward.8} parent=5 // pred_fallthru
      _
  $region6: #{audio_encoder_forward.8} parent=0 // loop_footer
    %s13 = sadd.s32 1, %s9
  $region7: #{audio_encoder_forward.8} parent=0 // loop_footer_branch
    %8 = sbr.rel target = $region3
  $region8: #{audio_encoder_forward.8} parent=0 // loop_exit
    _

// kernel: audio_encoder_forward.11
$region0: #{audio_encoder_forward.11}
  #allocation0 [shape = 'u32[]', space=smem, size = 0x4, offset = 0x4, fixed_abs, tag = 'smem constant byte address 0x4 - core index']
  #allocation1 [shape = 'u32[144,128]{1,0:T(1,128)}', space=vmem, size = 0x12000, scoped, tag = 'internal scratch']
  #allocation2 [shape = 'f32[16,1]{1,0:T(8,128)}', space=vmem, size = 0x2000, scoped, tag = 'scratch operand']
  #allocation3 [shape = 'f32[16,1]{1,0:T(8,128)}', space=vmem, size = 0x2000, scoped, tag = 'scratch operand']
  #allocation4 [shape = 'f32[16,8]{1,0:T(8,128)}', space=vmem, size = 0x2000, scoped, tag = 'scratch operand']
  %s0 = inlined_call_operand.vmem [shape: bf16[8,16,8], index: 0, kind: input, shape index: {}]
  %s1 = inlined_call_operand.vmem [shape: bf16[8,16,8], index: 1, kind: input, shape index: {}]
  %s2 = inlined_call_operand.vmem [shape: bf16[8,16,8], index: 2, kind: input, shape index: {}]
  %s3 = inlined_call_operand.vmem [shape: bf16[8,16,8], index: 3, kind: output, shape index: {}]
  %s4 = sld [smem:[#allocation0]]
  $region53: #{audio_encoder_forward.11} parent=0
    _
  %s6 = ssub.s32 1, %s4
  %s7 = scalar_select 0, %s6, %s4
  loop: start=0, step=1, limit=10
  $region2: #{audio_encoder_forward.11} parent=0 // loop_pre_header
    _
  $region3: #{audio_encoder_forward.11} parent=0 // loop_header
    %s9 = sphi 0, %s13
    %p10 = scmp.ge.s32.totalorder %s9, 10
    %s16 = sphi 0, %s35
    %s17 = sphi 0, %s31
    %s18 = sphi 0, %s27
    %s19 = sphi 0, %s16
    %s20 = sphi 0, %s17
    %s21 = sphi 0, %s18
    %s22 = sphi 0, %s19
    %s23 = sphi 0, %s20
    %s24 = sphi 0, %s21
    %s40 = sphi 0, %s42
    %s43 = sphi 0, %s40
    %s44 = sphi 0, %s43
    %s60 = sphi 0, %s44
    %s68 = sphi 0, %s70
    %s71 = sphi 0, %s68
    %s72 = sphi 0, %s71
    %s88 = sphi 0, %s72
    %s96 = sphi 0, %s98
    %s99 = sphi 0, %s96
    %s100 = sphi 0, %s99
    %s116 = sphi 0, %s100
    %s124 = sphi 0, %s126
    %s127 = sphi 0, %s124
    %s128 = sphi 0, %s127
    %s144 = sphi 0, %s128
  $region4: #{audio_encoder_forward.11} parent=0 // loop_header_branch
    %12 = sbr.rel (%p10) target = $region8
  $region5: #{audio_encoder_forward.11} parent=0 // loop_body
    %s14 = ssub.s32 %s9, 1
    %s15 = ssub.s32 %s9, 2
    %s25 = sadd.s32 1, %s18
    %p26 = scmp.ge.s32.totalorder %s25, 1
    %s27 = scalar_select %p26, 0, %s25
    %s28 = sadd.s32 1, %s17
    %s29 = scalar_select %p26, %s28, %s17
    %p30 = scmp.ge.s32.totalorder %s29, 1
    %s31 = scalar_select %p30, 0, %s29
    %s32 = sadd.s32 1, %s16
    %s33 = scalar_select %p30, %s32, %s16
    %p34 = scmp.ge.s32.totalorder %s33, 8
    %s35 = scalar_select %p34, 0, %s33
    %s36 = ssub.s32 %s16, %s35
    %s37 = ssub.s32 %s17, %s31
    %s38 = sor.u32 %s36, %s37
    %p39 = scmp.eq.s32.totalorder %s38, 0
    %s41 = sadd.s32 %s40, 1
    %s42 = scalar_select %p39, %s40, %s41
    %p45 = pneg %p39
    %p46 = scmp.eq.s32.totalorder %s9, 7
    %p47 = por %p45, %p46
    %p48 = scmp.ne.s32.totalorder %s40, %s43
    %p49 = scmp.eq.s32.totalorder %s9, 0
    %p50 = por %p48, %p49
    %p51 = scmp.ne.s32.totalorder %s40, %s43
    %p52 = scmp.eq.s32.totalorder %s14, 7
    %p53 = por %p51, %p52
    %p54 = scmp.ne.s32.totalorder %s43, %s44
    %p55 = scmp.eq.s32.totalorder %s14, 0
    %p56 = por %p54, %p55
    %p57 = scmp.ne.s32.totalorder %s43, %s44
    %p58 = scmp.eq.s32.totalorder %s15, 7
    %p59 = por %p57, %p58
    %p61 = scmp.ne.s32.totalorder %s44, %s60
    %p62 = scmp.eq.s32.totalorder %s15, 0
    %p63 = por %p61, %p62
    %s64 = ssub.s32 %s16, %s35
    %s65 = ssub.s32 %s18, %s27
    %s66 = sor.u32 %s64, %s65
    %p67 = scmp.eq.s32.totalorder %s66, 0
    %s69 = sadd.s32 %s68, 1
    %s70 = scalar_select %p67, %s68, %s69
    %p73 = pneg %p67
    %p74 = scmp.eq.s32.totalorder %s9, 7
    %p75 = por %p73, %p74
    %p76 = scmp.ne.s32.totalorder %s68, %s71
    %p77 = scmp.eq.s32.totalorder %s9, 0
    %p78 = por %p76, %p77
    %p79 = scmp.ne.s32.totalorder %s68, %s71
    %p80 = scmp.eq.s32.totalorder %s14, 7
    %p81 = por %p79, %p80
    %p82 = scmp.ne.s32.totalorder %s71, %s72
    %p83 = scmp.eq.s32.totalorder %s14, 0
    %p84 = por %p82, %p83
    %p85 = scmp.ne.s32.totalorder %s71, %s72
    %p86 = scmp.eq.s32.totalorder %s15, 7
    %p87 = por %p85, %p86
    %p89 = scmp.ne.s32.totalorder %s72, %s88
    %p90 = scmp.eq.s32.totalorder %s15, 0
    %p91 = por %p89, %p90
    %s92 = ssub.s32 %s16, %s35
    %s93 = ssub.s32 %s18, %s27
    %s94 = sor.u32 %s92, %s93
    %p95 = scmp.eq.s32.totalorder %s94, 0
    %s97 = sadd.s32 %s96, 1
    %s98 = scalar_select %p95, %s96, %s97
    %p101 = pneg %p95
    %p102 = scmp.eq.s32.totalorder %s9, 7
    %p103 = por %p101, %p102
    %p104 = scmp.ne.s32.totalorder %s96, %s99
    %p105 = scmp.eq.s32.totalorder %s9, 0
    %p106 = por %p104, %p105
    %p107 = scmp.ne.s32.totalorder %s96, %s99
    %p108 = scmp.eq.s32.totalorder %s14, 7
    %p109 = por %p107, %p108
    %p110 = scmp.ne.s32.totalorder %s99, %s100
    %p111 = scmp.eq.s32.totalorder %s14, 0
    %p112 = por %p110, %p111
    %p113 = scmp.ne.s32.totalorder %s99, %s100
    %p114 = scmp.eq.s32.totalorder %s15, 7
    %p115 = por %p113, %p114
    %p117 = scmp.ne.s32.totalorder %s100, %s116
    %p118 = scmp.eq.s32.totalorder %s15, 0
    %p119 = por %p117, %p118
    %s120 = ssub.s32 %s16, %s35
    %s121 = ssub.s32 %s17, %s31
    %s122 = sor.u32 %s120, %s121
    %p123 = scmp.eq.s32.totalorder %s122, 0
    %s125 = sadd.s32 %s124, 1
    %s126 = scalar_select %p123, %s124, %s125
    %p129 = pneg %p123
    %p130 = scmp.eq.s32.totalorder %s9, 7
    %p131 = por %p129, %p130
    %p132 = scmp.ne.s32.totalorder %s124, %s127
    %p133 = scmp.eq.s32.totalorder %s9, 0
    %p134 = por %p132, %p133
    %p135 = scmp.ne.s32.totalorder %s124, %s127
    %p136 = scmp.eq.s32.totalorder %s14, 7
    %p137 = por %p135, %p136
    %p138 = scmp.ne.s32.totalorder %s127, %s128
    %p139 = scmp.eq.s32.totalorder %s14, 0
    %p140 = por %p138, %p139
    %p141 = scmp.ne.s32.totalorder %s127, %s128
    %p142 = scmp.eq.s32.totalorder %s15, 7
    %p143 = por %p141, %p142
    %p145 = scmp.ne.s32.totalorder %s128, %s144
    %p146 = scmp.eq.s32.totalorder %s15, 0
    %p147 = por %p145, %p146
    %p148 = scmp.le.s32.totalorder 1, %s9
    %p149 = scmp.lt.s32.totalorder %s9, 9
    %p150 = pnand %p148, %p149
    %p151 = pneg %p150
    // Predicated region
    $region9: #{audio_encoder_forward.11} parent=5 // pred_check
      _
    $region10: #{audio_encoder_forward.11} parent=5 // pred_check_branch
      %153 = sbr.rel (%p150) target = $region12
    $region11: #{audio_encoder_forward.11} parent=5 // pred_region
      %s154 = ssub.s32 %s9, 1
    $region12: #{audio_encoder_forward.11} parent=5 // pred_fallthru
      _
    %p155 = scmp.lt.s32.totalorder %s9, 8
    // Predicated region
    $region13: #{audio_encoder_forward.11} parent=5 // pred_check
      %p156 = pneg %p155
    $region14: #{audio_encoder_forward.11} parent=5 // pred_check_branch
      %158 = sbr.rel (%p156) target = $region16
    $region15: #{audio_encoder_forward.11} parent=5 // pred_region
      // Predicated region
      $region17: #{audio_encoder_forward.11} parent=15 // pred_check
        %p159 = pneg %p50
      $region18: #{audio_encoder_forward.11} parent=15 // pred_check_branch
        %161 = sbr.rel (%p159) target = $region20
      $region19: #{audio_encoder_forward.11} parent=15 // pred_region
        %s162 = smul.u32 2, %s17
        %p163 = scmp.lt.s32.totalorder %s16, 7
        %s164 = scalar_select %p163, %s16, 7
        %p165 = scmp.lt.s32.totalorder %s162, 1
        %s166 = scalar_select %p165, %s162, 1
        %s167 = smul.addr %s164, 2
        %s168 = sadd.s32 %s166, %s167
        %s169 = smul.addr %s168, 4
        %s170 = scalar_lea.vmem %s0, %s169
        %s171 = smul.u32 2, %s17
      $region20: #{audio_encoder_forward.11} parent=15 // pred_fallthru
        _
      // Predicated region
      $region21: #{audio_encoder_forward.11} parent=15 // pred_check
        %p172 = pneg %p78
      $region22: #{audio_encoder_forward.11} parent=15 // pred_check_branch
        %174 = sbr.rel (%p172) target = $region24
      $region23: #{audio_encoder_forward.11} parent=15 // pred_region
        %s175 = smul.u32 2, %s18
        %p176 = scmp.lt.s32.totalorder %s16, 7
        %s177 = scalar_select %p176, %s16, 7
        %p178 = scmp.lt.s32.totalorder %s175, 1
        %s179 = scalar_select %p178, %s175, 1
        %s180 = smul.addr %s177, 2
        %s181 = sadd.s32 %s179, %s180
        %s182 = smul.addr %s181, 4
        %s183 = scalar_lea.vmem %s1, %s182
        %s184 = smul.u32 2, %s18
      $region24: #{audio_encoder_forward.11} parent=15 // pred_fallthru
        _
      // Predicated region
      $region25: #{audio_encoder_forward.11} parent=15 // pred_check
        %p185 = pneg %p106
      $region26: #{audio_encoder_forward.11} parent=15 // pred_check_branch
        %187 = sbr.rel (%p185) target = $region28
      $region27: #{audio_encoder_forward.11} parent=15 // pred_region
        %s188 = smul.u32 2, %s18
        %p189 = scmp.lt.s32.totalorder %s16, 7
        %s190 = scalar_select %p189, %s16, 7
        %p191 = scmp.lt.s32.totalorder %s188, 1
        %s192 = scalar_select %p191, %s188, 1
        %s193 = smul.addr %s190, 2
        %s194 = sadd.s32 %s192, %s193
        %s195 = smul.addr %s194, 4
        %s196 = scalar_lea.vmem %s2, %s195
        %s197 = smul.u32 2, %s18
      $region28: #{audio_encoder_forward.11} parent=15 // pred_fallthru
        _
    $region16: #{audio_encoder_forward.11} parent=5 // pred_fallthru
      _
    %p198 = scmp.le.s32.totalorder 1, %s9
    %p199 = scmp.lt.s32.totalorder %s9, 9
    %p200 = pnand %p198, %p199
    %p201 = pneg %p200
    // Predicated region
    $region29: #{audio_encoder_forward.11} parent=5 // pred_check
      _
    $region30: #{audio_encoder_forward.11} parent=5 // pred_check_branch
      %203 = sbr.rel (%p200) target = $region32
    $region31: #{audio_encoder_forward.11} parent=5 // pred_region
      %s204 = ssub.s32 %s9, 1
      %s205 = smul.u32 2, %s20
      %p206 = scmp.lt.s32.totalorder %s19, 7
      %s207 = scalar_select %p206, %s19, 7
      %p208 = scmp.lt.s32.totalorder %s205, 1
      %s209 = scalar_select %p208, %s205, 1
      %s210 = smul.addr %s207, 2
      %s211 = sadd.s32 %s209, %s210
      %s212 = smul.addr %s211, 4
      %s213 = scalar_lea.vmem %s0, %s212
      %p214 = pneg %p56
      %p215 = pneg %p53
      %s216 = smul.u32 2, %s21
      %p217 = scmp.lt.s32.totalorder %s19, 7
      %s218 = scalar_select %p217, %s19, 7
      %p219 = scmp.lt.s32.totalorder %s216, 1
      %s220 = scalar_select %p219, %s216, 1
      %s221 = smul.addr %s218, 2
      %s222 = sadd.s32 %s220, %s221
      %s223 = smul.addr %s222, 4
      %s224 = scalar_lea.vmem %s1, %s223
      %p225 = pneg %p84
      %p226 = pneg %p81
      %s227 = smul.u32 2, %s21
      %p228 = scmp.lt.s32.totalorder %s19, 7
      %s229 = scalar_select %p228, %s19, 7
      %p230 = scmp.lt.s32.totalorder %s227, 1
      %s231 = scalar_select %p230, %s227, 1
      %s232 = smul.addr %s229, 2
      %s233 = sadd.s32 %s231, %s232
      %s234 = smul.addr %s233, 4
      %s235 = scalar_lea.vmem %s2, %s234
      %p236 = pneg %p112
      %p237 = pneg %p109
      %p238 = pneg %p140
      %p239 = pneg %p137
      %s240 = smul.u32 2, %s20
      %p241 = scmp.lt.s32.totalorder %s19, 7
      %s242 = scalar_select %p241, %s19, 7
      %p243 = scmp.lt.s32.totalorder %s240, 1
      %s244 = scalar_select %p243, %s240, 1
      %s245 = smul.addr %s242, 2
      %s246 = sadd.s32 %s244, %s245
      %s247 = smul.addr %s246, 4
      %s248 = scalar_lea.vmem %s3, %s247
      %s249 = smul.u32 2, %s20
      %p250 = scmp.lt.s32.totalorder %s19, 7
      %s251 = scalar_select %p250, %s19, 7
      %p252 = scmp.lt.s32.totalorder %s249, 1
      %s253 = scalar_select %p252, %s249, 1
      %s254 = smul.addr %s251, 2
      %s255 = sadd.s32 %s253, %s254
      %s256 = smul.addr %s255, 4
      %s257 = scalar_lea.vmem %s0, %s256
      %s258 = smul.u32 2, %s20
      %s259 = smul.u32 2, %s21
      %p260 = scmp.lt.s32.totalorder %s19, 7
      %s261 = scalar_select %p260, %s19, 7
      %p262 = scmp.lt.s32.totalorder %s259, 1
      %s263 = scalar_select %p262, %s259, 1
      %s264 = smul.addr %s261, 2
      %s265 = sadd.s32 %s263, %s264
      %s266 = smul.addr %s265, 4
      %s267 = scalar_lea.vmem %s1, %s266
      %s268 = smul.u32 2, %s21
      %s269 = smul.u32 2, %s21
      %p270 = scmp.lt.s32.totalorder %s19, 7
      %s271 = scalar_select %p270, %s19, 7
      %p272 = scmp.lt.s32.totalorder %s269, 1
      %s273 = scalar_select %p272, %s269, 1
      %s274 = smul.addr %s271, 2
      %s275 = sadd.s32 %s273, %s274
      %s276 = smul.addr %s275, 4
      %s277 = scalar_lea.vmem %s2, %s276
      %s278 = smul.u32 2, %s21
      %s279 = smul.u32 2, %s20
      %p280 = scmp.lt.s32.totalorder %s19, 7
      %s281 = scalar_select %p280, %s19, 7
      %p282 = scmp.lt.s32.totalorder %s279, 1
      %s283 = scalar_select %p282, %s279, 1
      %s284 = smul.addr %s281, 2
      %s285 = sadd.s32 %s283, %s284
      %s286 = smul.addr %s285, 4
      %s287 = scalar_lea.vmem %s3, %s286
      %s288 = smul.u32 2, %s20
      %p290 = scmp.eq.s32.totalorder %s21, 0
      // Predicated region
      $region33: #{audio_encoder_forward.11} parent=31 // pred_check
        %p291 = pneg %p290
      $region34: #{audio_encoder_forward.11} parent=31 // pred_check_branch
        %293 = sbr.rel (%p291) target = $region36
      $region35: #{audio_encoder_forward.11} parent=31 // pred_region
        %vm294 = vcmask 7168
        %295 = vst.msk [vmem:[#allocation2] sm:$0xff] %vm294, -inf
        %296 = vst.msk [vmem:[#allocation2 + $0x8] sm:$0xff] %vm294, -inf
        %297 = vst.msk [vmem:[#allocation3] sm:$0xff] %vm294, 0.0
        %298 = vst.msk [vmem:[#allocation3 + $0x8] sm:$0xff] %vm294, 0.0
        %vm299 = vcmask 64512
        %300 = vst.msk [vmem:[#allocation4] sm:$0xff] %vm299, 0.0
        %301 = vst.msk [vmem:[#allocation4 + $0x8] sm:$0xff] %vm299, 0.0
      $region36: #{audio_encoder_forward.11} parent=31 // pred_fallthru
        _
      %v302 = vld [vmem:[%s257] sm:$0xf]
      %v303 = vld [vmem:[%s257 + $0x4] sm:$0xf]
      %v304 = vld [vmem:[%s267] sm:$0xf]
      %v305 = vld [vmem:[%s267 + $0x4] sm:$0xf]
      %v306 = vld [vmem:[%s277] sm:$0xf]
      %v307 = vld [vmem:[%s277 + $0x4] sm:$0xf]
      %v310 = vunpack.c.l.b16 %v302
      %v311 = vunpack.c.l.b16 %v303
      %v312 = vpack.c.b16 %v311, %v310
      %v315 = vunpack.c.l.b16 %v304
      %v316 = vunpack.c.l.b16 %v305
      %v317 = vpack.c.b16 %v316, %v315
      %vm318 = vcmask 64512
      %v320 = vsel %vm318, %v312, 0
      %v323 = vsel %vm318, %v317, 0
      %325 = vmatprep.subr.bf16.mxu0 0
      %326 = vmatpush1.bf16.xpose.msra.mxu0 0
      %327 = vmatprep.subr.bf16.mxu0 0
      %328 = vmatpush1.bf16.xpose.msra.mxu0 0
      %329 = vmatprep.subr.bf16.mxu0 0
      %330 = vmatpush1.bf16.xpose.msra.mxu0 0
      %331 = vmatprep.subr.bf16.mxu0 0
      %332 = vmatpush1.bf16.xpose.msra.mxu0 0
      %333 = vmatprep.subr.bf16.mxu0 0
      %334 = vmatpush1.bf16.xpose.msra.mxu0 0
      %335 = vmatprep.subr.bf16.mxu0 0
      %336 = vmatpush1.bf16.xpose.msra.mxu0 0
      %337 = vmatprep.subr.bf16.mxu0 0
      %338 = vmatpush1.bf16.xpose.msra.mxu0 0
      %339 = vmatprep.subr.bf16.mxu0 0
      %340 = vmatpush1.bf16.xpose.msra.mxu0 %v323
      %341 = vmatprep.subr.bf16.mxu0 0
      %342 = vmatpush2.bf16.xpose.msra.mxu0 0
      %343 = vmatprep.subr.bf16.mxu0 0
      %344 = vmatpush2.bf16.xpose.msra.mxu0 0
      %345 = vmatprep.subr.bf16.mxu0 0
      %346 = vmatpush2.bf16.xpose.msra.mxu0 0
      %347 = vmatprep.subr.bf16.mxu0 0
      %348 = vmatpush2.bf16.xpose.msra.mxu0 0
      %349 = vmatprep.subr.bf16.mxu0 0
      %350 = vmatpush2.bf16.xpose.msra.mxu0 0
      %351 = vmatprep.subr.bf16.mxu0 0
      %352 = vmatpush2.bf16.xpose.msra.mxu0 0
      %353 = vmatprep.subr.bf16.mxu0 0
      %354 = vmatpush2.bf16.xpose.msra.mxu0 0
      %355 = vmatprep.subr.bf16.mxu0 0
      %356 = vmatpush2.bf16.xpose.msra.mxu0 0
      %357 = vmatprep.mubr.bf16.mxu0 0
      %358 = vmatmul.mubr.bf16.gmra.mxu0 %v320
      %v359 = vpop.f32.mrf.mxu0
      %v360 = vadd.f32 0.0, %v359
      %v361 = vpop.f32.mrf.mxu0
      %v362 = vpop.f32.mrf.mxu0
      %v363 = vadd.f32 0.0, %v362
      %v364 = vpop.f32.mrf.mxu0
      %365 = vdwg.mxu0
      %v366 = vld [vmem:[#allocation2] sm:$0xff]
      %v367 = vld [vmem:[#allocation2 + $0x8] sm:$0xff]
      %vm368 = vcmask 130048
      %v369 = vsel %vm368, %v360, -inf
      %370 = vmax.xlane.f32.xlu0 %v369
      %v371 = vpop.xlane.xlu0 %370
      %v372 = vsel %vm368, %v363, -inf
      %373 = vmax.xlane.f32.xlu0 %v372
      %v374 = vpop.xlane.xlu0 %373
      %v375 = vmax.f32 %v366, %v371
      %v376 = vmax.f32 %v367, %v374
      %v377 = vsub.f32 %v366, %v375
      %v378 = vsub.f32 %v367, %v376
      %v379 = vmul.f32 %v377, 1.442695
      %v380 = vpow.pop %v379
      %v381 = vmul.f32 %v378, 1.442695
      %v382 = vpow.pop %v381
      %384 = vset.pattern.permute.xlu0 0
      %385 = vperm.xlu0 %384, %v375
      %v386 = vpop.permute.xlu0 %385
      %389 = vset.pattern.permute.xlu0 0
      %390 = vperm.xlu0 %389, %v376
      %v391 = vpop.permute.xlu0 %390
      %v393 = vsub.f32 %v360, %v386
      %v394 = vsub.f32 %v363, %v391
      %v395 = vmul.f32 %v393, 1.442695
      %v396 = vpow.pop %v395
      %v397 = vmul.f32 %v394, 1.442695
      %v398 = vpow.pop %v397
      %v399 = vld [vmem:[#allocation3] sm:$0xff]
      %v400 = vld [vmem:[#allocation3 + $0x8] sm:$0xff]
      %v401 = vmul.f32 %v380, %v399
      %v402 = vmul.f32 %v382, %v400
      %v403 = vsel %vm368, %v396, 0.0
      %404 = vadd.xlane.f32.xlu0 %v403
      %v405 = vpop.xlane.xlu0 %404
      %v406 = vsel %vm368, %v398, 0.0
      %407 = vadd.xlane.f32.xlu0 %v406
      %v408 = vpop.xlane.xlu0 %407
      %v409 = vadd.f32 %v401, %v405
      %v410 = vadd.f32 %v402, %v408
      %vm411 = vcmask 7168
      %412 = vst.msk [vmem:[#allocation3] sm:$0xff] %vm411, %v409
      %413 = vst.msk [vmem:[#allocation3 + $0x8] sm:$0xff] %vm411, %v410
      %v414 = vld [vmem:[#allocation4] sm:$0xff]
      %v415 = vld [vmem:[#allocation4 + $0x8] sm:$0xff]
      %417 = vset.pattern.permute.xlu0 0
      %418 = vperm.xlu0 %417, %v380
      %v419 = vpop.permute.xlu0 %418
      %422 = vset.pattern.permute.xlu0 0
      %423 = vperm.xlu0 %422, %v382
      %v424 = vpop.permute.xlu0 %423
      %v426 = vmul.f32 %v419, %v414
      %v427 = vmul.f32 %v424, %v415
      %v428 = vpack.c.bf16 %v398, %v396
      %v431 = vunpack.c.l.b16 %v306
      %v432 = vunpack.c.l.b16 %v307
      %v433 = vpack.c.b16 %v432, %v431
      %v436 = vsel %vm368, %v428, 0
      %438 = vmatprep.subr.bf16.mxu0 0
      %439 = vmatpush1.bf16.msra.mxu0 0
      %440 = vmatprep.subr.bf16.mxu0 0
      %441 = vmatpush1.bf16.msra.mxu0 0
      %442 = vmatprep.subr.bf16.mxu0 0
      %443 = vmatpush1.bf16.msra.mxu0 0
      %444 = vmatprep.subr.bf16.mxu0 0
      %445 = vmatpush1.bf16.msra.mxu0 0
      %446 = vmatprep.subr.bf16.mxu0 0
      %447 = vmatpush1.bf16.msra.mxu0 0
      %448 = vmatprep.subr.bf16.mxu0 0
      %449 = vmatpush1.bf16.msra.mxu0 0
      %450 = vmatprep.subr.bf16.mxu0 0
      %451 = vmatpush1.bf16.msra.mxu0 0
      %452 = vmatprep.subr.bf16.mxu0 0
      %453 = vmatpush1.bf16.msra.mxu0 %v433
      %454 = vmatprep.subr.bf16.mxu0 0
      %455 = vmatpush2.bf16.msra.mxu0 0
      %456 = vmatprep.subr.bf16.mxu0 0
      %457 = vmatpush2.bf16.msra.mxu0 0
      %458 = vmatprep.subr.bf16.mxu0 0
      %459 = vmatpush2.bf16.msra.mxu0 0
      %460 = vmatprep.subr.bf16.mxu0 0
      %461 = vmatpush2.bf16.msra.mxu0 0
      %462 = vmatprep.subr.bf16.mxu0 0
      %463 = vmatpush2.bf16.msra.mxu0 0
      %464 = vmatprep.subr.bf16.mxu0 0
      %465 = vmatpush2.bf16.msra.mxu0 0
      %466 = vmatprep.subr.bf16.mxu0 0
      %467 = vmatpush2.bf16.msra.mxu0 0
      %468 = vmatprep.subr.bf16.mxu0 0
      %469 = vmatpush2.bf16.msra.mxu0 0
      %470 = vmatprep.mubr.bf16.mxu0 0
      %471 = vmatmul.mubr.bf16.gmra.mxu0 %v436
      %v472 = vpop.f32.mrf.mxu0
      %v473 = vadd.f32 0.0, %v472
      %v474 = vpop.f32.mrf.mxu0
      %v475 = vpop.f32.mrf.mxu0
      %v476 = vadd.f32 0.0, %v475
      %v477 = vpop.f32.mrf.mxu0
      %478 = vdwg.mxu0
      %v479 = vadd.f32 %v426, %v473
      %v480 = vadd.f32 %v427, %v476
      %481 = vst.msk [vmem:[#allocation4] sm:$0xff] %vm318, %v479
      %482 = vst.msk [vmem:[#allocation4 + $0x8] sm:$0xff] %vm318, %v480
      %483 = vst.msk [vmem:[#allocation2] sm:$0xff] %vm411, %v375
      %484 = vst.msk [vmem:[#allocation2 + $0x8] sm:$0xff] %vm411, %v376
      // Predicated region
      $region37: #{audio_encoder_forward.11} parent=31 // pred_check
        %p485 = pneg %p290
      $region38: #{audio_encoder_forward.11} parent=31 // pred_check_branch
        %487 = sbr.rel (%p485) target = $region40
      $region39: #{audio_encoder_forward.11} parent=31 // pred_region
        %v488 = vld [vmem:[#allocation3] sm:$0xff]
        %v489 = vld [vmem:[#allocation3 + $0x8] sm:$0xff]
        %v490 = vrcp.pop %v488
        %v491 = vrcp.pop %v489
        %v492 = vld [vmem:[#allocation4] sm:$0xff]
        %v493 = vld [vmem:[#allocation4 + $0x8] sm:$0xff]
        %495 = vset.pattern.permute.xlu0 0
        %496 = vperm.xlu0 %495, %v490
        %v497 = vpop.permute.xlu0 %496
        %500 = vset.pattern.permute.xlu0 0
        %501 = vperm.xlu0 %500, %v491
        %v502 = vpop.permute.xlu0 %501
        %v504 = vmul.f32 %v492, %v497
        %v505 = vmul.f32 %v493, %v502
        %v506 = vpack.c.bf16 %v505, %v504
        %v508 = vunpack.c.l.b16 %v506
        %v509 = vunpack.c.h.b16 %v506
        %v510 = vpack.c.b16 %v508, %v508
        %v511 = vpack.c.b16 %v509, %v509
        %vm514 = vcmask 60416
        %515 = vst.msk [vmem:[%s287] sm:$0xf] %vm514, %v510
        %516 = vst.msk [vmem:[%s287 + $0x4] sm:$0xf] %vm514, %v511
      $region40: #{audio_encoder_forward.11} parent=31 // pred_fallthru
        _
      %s517 = smul.u32 2, %s20
      %p518 = scmp.lt.s32.totalorder %s19, 7
      %s519 = scalar_select %p518, %s19, 7
      %p520 = scmp.lt.s32.totalorder %s517, 1
      %s521 = scalar_select %p520, %s517, 1
      %s522 = smul.addr %s519, 2
      %s523 = sadd.s32 %s521, %s522
      %s524 = smul.addr %s523, 4
      %s525 = scalar_lea.vmem %s3, %s524
      // Predicated region
      $region41: #{audio_encoder_forward.11} parent=31 // pred_check
        %p526 = pneg %p137
      $region42: #{audio_encoder_forward.11} parent=31 // pred_check_branch
        %528 = sbr.rel (%p526) target = $region44
      $region43: #{audio_encoder_forward.11} parent=31 // pred_region
        %s529 = smul.u32 2, %s20
      $region44: #{audio_encoder_forward.11} parent=31 // pred_fallthru
        _
    $region32: #{audio_encoder_forward.11} parent=5 // pred_fallthru
      _
    %p530 = scmp.le.s32.totalorder 2, %s9
    // Predicated region
    $region45: #{audio_encoder_forward.11} parent=5 // pred_check
      %p531 = pneg %p530
    $region46: #{audio_encoder_forward.11} parent=5 // pred_check_branch
      %533 = sbr.rel (%p531) target = $region48
    $region47: #{audio_encoder_forward.11} parent=5 // pred_region
      %s534 = ssub.s32 %s9, 2
      // Predicated region
      $region49: #{audio_encoder_forward.11} parent=47 // pred_check
        %p535 = pneg %p143
      $region50: #{audio_encoder_forward.11} parent=47 // pred_check_branch
        %537 = sbr.rel (%p535) target = $region52
      $region51: #{audio_encoder_forward.11} parent=47 // pred_region
        %s538 = smul.u32 2, %s23
        %p539 = scmp.lt.s32.totalorder %s22, 7
        %s540 = scalar_select %p539, %s22, 7
        %p541 = scmp.lt.s32.totalorder %s538, 1
        %s542 = scalar_select %p541, %s538, 1
        %s543 = smul.addr %s540, 2
        %s544 = sadd.s32 %s542, %s543
        %s545 = smul.addr %s544, 4
        %s546 = scalar_lea.vmem %s3, %s545
      $region52: #{audio_encoder_forward.11} parent=47 // pred_fallthru
        _
    $region48: #{audio_encoder_forward.11} parent=5 // pred_fallthru
      _
  $region6: #{audio_encoder_forward.11} parent=0 // loop_footer
    %s13 = sadd.s32 1, %s9
  $region7: #{audio_encoder_forward.11} parent=0 // loop_footer_branch
    %8 = sbr.rel target = $region3
  $region8: #{audio_encoder_forward.11} parent=0 // loop_exit
    _

// kernel: audio_encoder_forward.12
$region0: #{audio_encoder_forward.12}
  #allocation0 [shape = 'u32[]', space=smem, size = 0x4, offset = 0x4, fixed_abs, tag = 'smem constant byte address 0x4 - core index']
  #allocation1 [shape = 'u32[144,128]{1,0:T(1,128)}', space=vmem, size = 0x12000, scoped, tag = 'internal scratch']
  #allocation2 [shape = 'f32[32,32]{1,0:T(8,128)}', space=vmem, size = 0x4000, scoped, tag = 'scratch operand']
  #allocation3 [shape = 'bf16[32,32]{1,0:T(8,128)(2,1)}', space=vmem, size = 0x2000, scoped, tag = 'scratch operand']
  #allocation4 [shape = 'f32[32,32]{1,0:T(8,128)}', space=vmem, size = 0x4000, scoped, tag = 'scratch operand']
  %s0 = inlined_call_operand.vmem [shape: bf16[32,32], index: 0, kind: input, shape index: {}]
  %s1 = inlined_call_operand.vmem [shape: f32[32,32], index: 1, kind: input, shape index: {}]
  %s2 = inlined_call_operand.vmem [shape: bf16[32,32], index: 2, kind: input, shape index: {}]
  %s3 = inlined_call_operand.vmem [shape: f32[1,32], index: 3, kind: input, shape index: {}]
  %s4 = inlined_call_operand.vmem [shape: f32[1,32], index: 4, kind: input, shape index: {}]
  %s5 = inlined_call_operand.vmem [shape: f32[1,32], index: 5, kind: input, shape index: {}]
  %s6 = inlined_call_operand.vmem [shape: bf16[32,128], index: 6, kind: input, shape index: {}]
  %s7 = inlined_call_operand.vmem [shape: f32[1,128], index: 7, kind: input, shape index: {}]
  %s8 = inlined_call_operand.vmem [shape: bf16[128,32], index: 8, kind: input, shape index: {}]
  %s9 = inlined_call_operand.vmem [shape: f32[1,32], index: 9, kind: input, shape index: {}]
  %s10 = inlined_call_operand.vmem [shape: f32[32,32], index: 10, kind: output, shape index: {}]
  %s11 = sld [smem:[#allocation0]]
  $region58: #{audio_encoder_forward.12} parent=0
    _
  %s13 = ssub.s32 1, %s11
  %s14 = scalar_select 0, %s13, %s11
  // Predicated region
  $region2: #{audio_encoder_forward.12} parent=0 // pred_check
    _
  $region3: #{audio_encoder_forward.12} parent=0 // pred_check_branch
    %16 = sbr.rel (0) target = $region5
  $region4: #{audio_encoder_forward.12} parent=0 // pred_region
    _
  $region5: #{audio_encoder_forward.12} parent=0 // pred_fallthru
    _
  // Predicated region
  $region6: #{audio_encoder_forward.12} parent=0 // pred_check
    _
  $region7: #{audio_encoder_forward.12} parent=0 // pred_check_branch
    %18 = sbr.rel (0) target = $region9
  $region8: #{audio_encoder_forward.12} parent=0 // pred_region
    _
  $region9: #{audio_encoder_forward.12} parent=0 // pred_fallthru
    _
  // Predicated region
  $region10: #{audio_encoder_forward.12} parent=0 // pred_check
    _
  $region11: #{audio_encoder_forward.12} parent=0 // pred_check_branch
    %20 = sbr.rel (0) target = $region13
  $region12: #{audio_encoder_forward.12} parent=0 // pred_region
    _
  $region13: #{audio_encoder_forward.12} parent=0 // pred_fallthru
    _
  // Predicated region
  $region14: #{audio_encoder_forward.12} parent=0 // pred_check
    _
  $region15: #{audio_encoder_forward.12} parent=0 // pred_check_branch
    %22 = sbr.rel (0) target = $region17
  $region16: #{audio_encoder_forward.12} parent=0 // pred_region
    _
  $region17: #{audio_encoder_forward.12} parent=0 // pred_fallthru
    _
  // Predicated region
  $region18: #{audio_encoder_forward.12} parent=0 // pred_check
    _
  $region19: #{audio_encoder_forward.12} parent=0 // pred_check_branch
    %24 = sbr.rel (0) target = $region21
  $region20: #{audio_encoder_forward.12} parent=0 // pred_region
    _
  $region21: #{audio_encoder_forward.12} parent=0 // pred_fallthru
    _
  // Predicated region
  $region22: #{audio_encoder_forward.12} parent=0 // pred_check
    _
  $region23: #{audio_encoder_forward.12} parent=0 // pred_check_branch
    %26 = sbr.rel (0) target = $region25
  $region24: #{audio_encoder_forward.12} parent=0 // pred_region
    _
  $region25: #{audio_encoder_forward.12} parent=0 // pred_fallthru
    _
  // Predicated region
  $region26: #{audio_encoder_forward.12} parent=0 // pred_check
    _
  $region27: #{audio_encoder_forward.12} parent=0 // pred_check_branch
    %28 = sbr.rel (0) target = $region29
  $region28: #{audio_encoder_forward.12} parent=0 // pred_region
    _
  $region29: #{audio_encoder_forward.12} parent=0 // pred_fallthru
    _
  // Predicated region
  $region30: #{audio_encoder_forward.12} parent=0 // pred_check
    _
  $region31: #{audio_encoder_forward.12} parent=0 // pred_check_branch
    %30 = sbr.rel (0) target = $region33
  $region32: #{audio_encoder_forward.12} parent=0 // pred_region
    _
  $region33: #{audio_encoder_forward.12} parent=0 // pred_fallthru
    _
  // Predicated region
  $region34: #{audio_encoder_forward.12} parent=0 // pred_check
    _
  $region35: #{audio_encoder_forward.12} parent=0 // pred_check_branch
    %32 = sbr.rel (0) target = $region37
  $region36: #{audio_encoder_forward.12} parent=0 // pred_region
    _
  $region37: #{audio_encoder_forward.12} parent=0 // pred_fallthru
    _
  // Predicated region
  $region38: #{audio_encoder_forward.12} parent=0 // pred_check
    _
  $region39: #{audio_encoder_forward.12} parent=0 // pred_check_branch
    %34 = sbr.rel (0) target = $region41
  $region40: #{audio_encoder_forward.12} parent=0 // pred_region
    _
  $region41: #{audio_encoder_forward.12} parent=0 // pred_fallthru
    _
  %p36 = scmp.eq.s32.totalorder 0, 0
  // Predicated region
  $region42: #{audio_encoder_forward.12} parent=0 // pred_check
    %p37 = pneg %p36
  $region43: #{audio_encoder_forward.12} parent=0 // pred_check_branch
    %39 = sbr.rel (%p37) target = $region45
  $region44: #{audio_encoder_forward.12} parent=0 // pred_region
    %v40 = vld [vmem:[%s1] sm:$0xff]
    %v41 = vld [vmem:[%s1 + $0x8] sm:$0xff]
    %v42 = vld [vmem:[%s1 + $0x10] sm:$0xff]
    %v43 = vld [vmem:[%s1 + $0x18] sm:$0xff]
    %v44 = vld [vmem:[%s0] sm:$0xf]
    %v45 = vld [vmem:[%s0 + $0x4] sm:$0xf]
    %v46 = vld [vmem:[%s0 + $0x8] sm:$0xf]
    %v47 = vld [vmem:[%s0 + $0xc] sm:$0xf]
    %v48 = vld [vmem:[%s2] sm:$0xf]
    %v49 = vld [vmem:[%s2 + $0x4] sm:$0xf]
    %v50 = vld [vmem:[%s2 + $0x8] sm:$0xf]
    %v51 = vld [vmem:[%s2 + $0xc] sm:$0xf]
    %v56 = vunpack.c.l.b16 %v44
    %v57 = vunpack.c.l.b16 %v45
    %v58 = vunpack.c.l.b16 %v46
    %v59 = vunpack.c.l.b16 %v47
    %v60 = vpack.c.b16 %v57, %v56
    %v61 = vpack.c.b16 %v59, %v58
    %v66 = vunpack.c.l.b16 %v48
    %v67 = vunpack.c.l.b16 %v49
    %v68 = vunpack.c.l.b16 %v50
    %v69 = vunpack.c.l.b16 %v51
    %v70 = vpack.c.b16 %v67, %v66
    %v71 = vpack.c.b16 %v69, %v68
    %vm74 = vcmask 261120
    %v76 = vsel %vm74, %v60, 0
    %v79 = vsel %vm74, %v61, 0
    %81 = vmatprep.subr.bf16.mxu0 0
    %82 = vmatpush1.bf16.msra.mxu0 0
    %83 = vmatprep.subr.bf16.mxu0 0
    %84 = vmatpush1.bf16.msra.mxu0 0
    %85 = vmatprep.subr.bf16.mxu0 0
    %86 = vmatpush1.bf16.msra.mxu0 0
    %87 = vmatprep.subr.bf16.mxu0 0
    %88 = vmatpush1.bf16.msra.mxu0 0
    %89 = vmatprep.subr.bf16.mxu0 0
    %90 = vmatpush1.bf16.msra.mxu0 0
    %91 = vmatprep.subr.bf16.mxu0 0
    %92 = vmatpush1.bf16.msra.mxu0 0
    %93 = vmatprep.subr.bf16.mxu0 0
    %94 = vmatpush1.bf16.msra.mxu0 %v71
    %95 = vmatprep.subr.bf16.mxu0 0
    %96 = vmatpush1.bf16.msra.mxu0 %v70
    %97 = vmatprep.subr.bf16.mxu0 0
    %98 = vmatpush2.bf16.msra.mxu0 0
    %99 = vmatprep.subr.bf16.mxu0 0
    %100 = vmatpush2.bf16.msra.mxu0 0
    %101 = vmatprep.subr.bf16.mxu0 0
    %102 = vmatpush2.bf16.msra.mxu0 0
    %103 = vmatprep.subr.bf16.mxu0 0
    %104 = vmatpush2.bf16.msra.mxu0 0
    %105 = vmatprep.subr.bf16.mxu0 0
    %106 = vmatpush2.bf16.msra.mxu0 0
    %107 = vmatprep.subr.bf16.mxu0 0
    %108 = vmatpush2.bf16.msra.mxu0 0
    %109 = vmatprep.subr.bf16.mxu0 0
    %110 = vmatpush2.bf16.msra.mxu0 0
    %111 = vmatprep.subr.bf16.mxu0 0
    %112 = vmatpush2.bf16.msra.mxu0 0
    %113 = vmatprep.mubr.bf16.mxu0 0
    %114 = vmatmul.mubr.bf16.gmra.mxu0 %v76
    %v115 = vpop.f32.mrf.mxu0
    %v116 = vadd.f32 0.0, %v115
    %v117 = vpop.f32.mrf.mxu0
    %v118 = vpop.f32.mrf.mxu0
    %v119 = vadd.f32 0.0, %v118
    %v120 = vpop.f32.mrf.mxu0
    %121 = vmatprep.mubr.bf16.mxu0 0
    %122 = vmatmul.mubr.bf16.gmra.mxu0 %v79
    %v123 = vpop.f32.mrf.mxu0
    %v124 = vadd.f32 0.0, %v123
    %v125 = vpop.f32.mrf.mxu0
    %v126 = vpop.f32.mrf.mxu0
    %v127 = vadd.f32 0.0, %v126
    %v128 = vpop.f32.mrf.mxu0
    %129 = vdwg.mxu0
    %v130 = vadd.f32 %v40, %v116
    %v131 = vadd.f32 %v41, %v119
    %v132 = vadd.f32 %v42, %v124
    %v133 = vadd.f32 %v43, %v127
    %v134 = vld [vmem:[%s3] sm:$0x1]
    %v136 = vlaneseq
    %v137 = vshrl.u32 %v136, 7
    %v138 = vsub.s32 0, %v137
    %v139 = vrot.slane %v134, %v138
    %v141 = vadd.f32 %v130, %v139
    %v142 = vadd.f32 %v131, %v139
    %v143 = vadd.f32 %v132, %v139
    %v144 = vadd.f32 %v133, %v139
    %145 = vst.msk [vmem:[#allocation2] sm:$0xff] %vm74, %v141
    %146 = vst.msk [vmem:[#allocation2 + $0x8] sm:$0xff] %vm74, %v142
    %147 = vst.msk [vmem:[#allocation2 + $0x10] sm:$0xff] %vm74, %v143
    %148 = vst.msk [vmem:[#allocation2 + $0x18] sm:$0xff] %vm74, %v144
    %v149 = vld [vmem:[%s4] sm:$0x1]
    %v150 = vld [vmem:[%s5] sm:$0x1]
    %v151 = vsel %vm74, %v141, 0.0
    %152 = vadd.xlane.f32.xlu0 %v151
    %v153 = vpop.xlane.xlu0 %152
    %v154 = vsel %vm74, %v142, 0.0
    %155 = vadd.xlane.f32.xlu0 %v154
    %v156 = vpop.xlane.xlu0 %155
    %v157 = vsel %vm74, %v143, 0.0
    %158 = vadd.xlane.f32.xlu0 %v157
    %v159 = vpop.xlane.xlu0 %158
    %v160 = vsel %vm74, %v144, 0.0
    %161 = vadd.xlane.f32.xlu0 %v160
    %v162 = vpop.xlane.xlu0 %161
    %v163 = vrcp.pop 32.0
    %v164 = vmul.f32 %v153, %v163
    %v165 = vmul.f32 %v156, %v163
    %v166 = vmul.f32 %v159, %v163
    %v167 = vmul.f32 %v162, %v163
    %v168 = vsub.f32 %v141, %v164
    %v169 = vsub.f32 %v142, %v165
    %v170 = vsub.f32 %v143, %v166
    %v171 = vsub.f32 %v144, %v167
    %v172 = vmul.f32 %v168, %v168
    %v173 = vmul.f32 %v169, %v169
    %v174 = vmul.f32 %v170, %v170
    %v175 = vmul.f32 %v171, %v171
    %v176 = vsel %vm74, %v172, 0.0
    %177 = vadd.xlane.f32.xlu0 %v176
    %v178 = vpop.xlane.xlu0 %177
    %v179 = vsel %vm74, %v173, 0.0
    %180 = vadd.xlane.f32.xlu0 %v179
    %v181 = vpop.xlane.xlu0 %180
    %v182 = vsel %vm74, %v174, 0.0
    %183 = vadd.xlane.f32.xlu0 %v182
    %v184 = vpop.xlane.xlu0 %183
    %v185 = vsel %vm74, %v175, 0.0
    %186 = vadd.xlane.f32.xlu0 %v185
    %v187 = vpop.xlane.xlu0 %186
    %v188 = vmul.f32 %v178, %v163
    %v189 = vmul.f32 %v181, %v163
    %v190 = vmul.f32 %v184, %v163
    %v191 = vmul.f32 %v187, %v163
    %v192 = vadd.f32 %v188, 1e-05
    %v193 = vadd.f32 %v189, 1e-05
    %v194 = vadd.f32 %v190, 1e-05
    %v195 = vadd.f32 %v191, 1e-05
    %v196 = vrsqrt.pop %v192
    %v197 = vrsqrt.pop %v193
    %v198 = vrsqrt.pop %v194
    %v199 = vrsqrt.pop %v195
    %v200 = vmul.f32 %v168, %v196
    %v201 = vmul.f32 %v169, %v197
    %v202 = vmul.f32 %v170, %v198
    %v203 = vmul.f32 %v171, %v199
    %v205 = vlaneseq
    %v206 = vshrl.u32 %v205, 7
    %v207 = vsub.s32 0, %v206
    %v208 = vrot.slane %v149, %v207
    %v210 = vmul.f32 %v200, %v208
    %v211 = vmul.f32 %v201, %v208
    %v212 = vmul.f32 %v202, %v208
    %v213 = vmul.f32 %v203, %v208
    %v215 = vlaneseq
    %v216 = vshrl.u32 %v215, 7
    %v217 = vsub.s32 0, %v216
    %v218 = vrot.slane %v150, %v217
    %v220 = vadd.f32 %v210, %v218
    %v221 = vadd.f32 %v211, %v218
    %v222 = vadd.f32 %v212, %v218
    %v223 = vadd.f32 %v213, %v218
    %v224 = vpack.c.bf16 %v221, %v220
    %v225 = vpack.c.bf16 %v223, %v222
    %v228 = vunpack.c.l.b16 %v224
    %v229 = vunpack.c.h.b16 %v224
    %v230 = vunpack.c.l.b16 %v225
    %v231 = vunpack.c.h.b16 %v225
    %v232 = vpack.c.b16 %v228, %v228
    %v233 = vpack.c.b16 %v229, %v229
    %v234 = vpack.c.b16 %v230, %v230
    %v235 = vpack.c.b16 %v231, %v231
    %vm240 = vcmask 257024
    %241 = vst.msk [vmem:[#allocation3] sm:$0xf] %vm240, %v232
    %242 = vst.msk [vmem:[#allocation3 + $0x4] sm:$0xf] %vm240, %v233
    %243 = vst.msk [vmem:[#allocation3 + $0x8] sm:$0xf] %vm240, %v234
    %244 = vst.msk [vmem:[#allocation3 + $0xc] sm:$0xf] %vm240, %v235
    %245 = vst.msk [vmem:[#allocation4] sm:$0xff] %vm74, 0.0
    %246 = vst.msk [vmem:[#allocation4 + $0x8] sm:$0xff] %vm74, 0.0
    %247 = vst.msk [vmem:[#allocation4 + $0x10] sm:$0xff] %vm74, 0.0
    %248 = vst.msk [vmem:[#allocation4 + $0x18] sm:$0xff] %vm74, 0.0
  $region45: #{audio_encoder_forward.12} parent=0 // pred_fallthru
    _
  %v249 = vld [vmem:[#allocation3] sm:$0xf]
  %v250 = vld [vmem:[#allocation3 + $0x4] sm:$0xf]
  %v251 = vld [vmem:[#allocation3 + $0x8] sm:$0xf]
  %v252 = vld [vmem:[#allocation3 + $0xc] sm:$0xf]
  %v253 = vld [vmem:[%s6] sm:$0xf]
  %v254 = vld [vmem:[%s6 + $0x4] sm:$0xf]
  %v255 = vld [vmem:[%s6 + $0x8] sm:$0xf]
  %v256 = vld [vmem:[%s6 + $0xc] sm:$0xf]
  %v257 = vld [vmem:[%s7] sm:$0x1]
  %v259 = vlaneseq
  %v260 = vshrl.u32 %v259, 7
  %v261 = vsub.s32 0, %v260
  %v262 = vrot.slane %v257, %v261
  %v268 = vunpack.c.l.b16 %v249
  %v269 = vunpack.c.l.b16 %v250
  %v270 = vunpack.c.l.b16 %v251
  %v271 = vunpack.c.l.b16 %v252
  %v272 = vpack.c.b16 %v269, %v268
  %v273 = vpack.c.b16 %v271, %v270
  %v278 = vunpack.c.l.b16 %v253
  %v279 = vunpack.c.l.b16 %v254
  %v280 = vunpack.c.l.b16 %v255
  %v281 = vunpack.c.l.b16 %v256
  %v282 = vpack.c.b16 %v279, %v278
  %v283 = vpack.c.b16 %v281, %v280
  %vm286 = vcmask 261120
  %v288 = vsel %vm286, %v272, 0
  %v291 = vsel %vm286, %v273, 0
  %293 = vmatprep.subr.bf16.mxu0 0
  %294 = vmatpush1.bf16.msra.mxu0 0
  %295 = vmatprep.subr.bf16.mxu0 0
  %296 = vmatpush1.bf16.msra.mxu0 0
  %297 = vmatprep.subr.bf16.mxu0 0
  %298 = vmatpush1.bf16.msra.mxu0 0
  %299 = vmatprep.subr.bf16.mxu0 0
  %300 = vmatpush1.bf16.msra.mxu0 0
  %301 = vmatprep.subr.bf16.mxu0 0
  %302 = vmatpush1.bf16.msra.mxu0 0
  %303 = vmatprep.subr.bf16.mxu0 0
  %304 = vmatpush1.bf16.msra.mxu0 0
  %305 = vmatprep.subr.bf16.mxu0 0
  %306 = vmatpush1.bf16.msra.mxu0 %v283
  %307 = vmatprep.subr.bf16.mxu0 0
  %308 = vmatpush1.bf16.msra.mxu0 %v282
  %309 = vmatprep.subr.bf16.mxu0 0
  %310 = vmatpush2.bf16.msra.mxu0 0
  %311 = vmatprep.subr.bf16.mxu0 0
  %312 = vmatpush2.bf16.msra.mxu0 0
  %313 = vmatprep.subr.bf16.mxu0 0
  %314 = vmatpush2.bf16.msra.mxu0 0
  %315 = vmatprep.subr.bf16.mxu0 0
  %316 = vmatpush2.bf16.msra.mxu0 0
  %317 = vmatprep.subr.bf16.mxu0 0
  %318 = vmatpush2.bf16.msra.mxu0 0
  %319 = vmatprep.subr.bf16.mxu0 0
  %320 = vmatpush2.bf16.msra.mxu0 0
  %321 = vmatprep.subr.bf16.mxu0 0
  %322 = vmatpush2.bf16.msra.mxu0 0
  %323 = vmatprep.subr.bf16.mxu0 0
  %324 = vmatpush2.bf16.msra.mxu0 0
  %325 = vmatprep.mubr.bf16.mxu0 0
  %326 = vmatmul.mubr.bf16.gmra.mxu0 %v288
  %v327 = vpop.f32.mrf.mxu0
  %v328 = vadd.f32 %v262, %v327
  %v329 = vpop.f32.mrf.mxu0
  %v330 = vpop.f32.mrf.mxu0
  %v331 = vadd.f32 %v262, %v330
  %v332 = vpop.f32.mrf.mxu0
  %333 = vmatprep.mubr.bf16.mxu0 0
  %334 = vmatmul.mubr.bf16.gmra.mxu0 %v291
  %v335 = vpop.f32.mrf.mxu0
  %v336 = vadd.f32 %v262, %v335
  %v337 = vpop.f32.mrf.mxu0
  %v338 = vpop.f32.mrf.mxu0
  %v339 = vadd.f32 %v262, %v338
  %v340 = vpop.f32.mrf.mxu0
  %341 = vdwg.mxu0
  %v342 = vmul.f32 %v328, 0.5
  %v343 = vmul.f32 %v331, 0.5
  %v344 = vmul.f32 %v336, 0.5
  %v345 = vmul.f32 %v339, 0.5
  %v346 = vmul.f32 %v328, 0.044715
  %v347 = vmul.f32 %v331, 0.044715
  %v348 = vmul.f32 %v336, 0.044715
  %v349 = vmul.f32 %v339, 0.044715
  %v350 = vmul.f32 %v346, %v328
  %v351 = vmul.f32 %v347, %v331
  %v352 = vmul.f32 %v348, %v336
  %v353 = vmul.f32 %v349, %v339
  %v354 = vmul.f32 %v350, %v328
  %v355 = vmul.f32 %v351, %v331
  %v356 = vmul.f32 %v352, %v336
  %v357 = vmul.f32 %v353, %v339
  %v358 = vadd.f32 %v328, %v354
  %v359 = vadd.f32 %v331, %v355
  %v360 = vadd.f32 %v336, %v356
  %v361 = vadd.f32 %v339, %v357
  %v362 = vmul.f32 %v358, 0.7978846
  %v363 = vmul.f32 %v359, 0.7978846
  %v364 = vmul.f32 %v360, 0.7978846
  %v365 = vmul.f32 %v361, 0.7978846
  %v366 = vtanh.pop %v362
  %v367 = vtanh.pop %v363
  %v368 = vtanh.pop %v364
  %v369 = vtanh.pop %v365
  %v370 = vadd.f32 %v366, 1.0
  %v371 = vadd.f32 %v367, 1.0
  %v372 = vadd.f32 %v368, 1.0
  %v373 = vadd.f32 %v369, 1.0
  %v374 = vmul.f32 %v342, %v370
  %v375 = vmul.f32 %v343, %v371
  %v376 = vmul.f32 %v344, %v372
  %v377 = vmul.f32 %v345, %v373
  %v378 = vld [vmem:[#allocation4] sm:$0xff]
  %v379 = vld [vmem:[#allocation4 + $0x8] sm:$0xff]
  %v380 = vld [vmem:[#allocation4 + $0x10] sm:$0xff]
  %v381 = vld [vmem:[#allocation4 + $0x18] sm:$0xff]
  %v382 = vpack.c.bf16 %v375, %v374
  %v383 = vpack.c.bf16 %v377, %v376
  %v384 = vld [vmem:[%s8] sm:$0xf]
  %v385 = vld [vmem:[%s8 + $0x4] sm:$0xf]
  %v386 = vld [vmem:[%s8 + $0x8] sm:$0xf]
  %v387 = vld [vmem:[%s8 + $0xc] sm:$0xf]
  %v388 = vld [vmem:[%s8 + $0x10] sm:$0xf]
  %v389 = vld [vmem:[%s8 + $0x14] sm:$0xf]
  %v390 = vld [vmem:[%s8 + $0x18] sm:$0xf]
  %v391 = vld [vmem:[%s8 + $0x1c] sm:$0xf]
  %v392 = vld [vmem:[%s8 + $0x20] sm:$0xf]
  %v393 = vld [vmem:[%s8 + $0x24] sm:$0xf]
  %v394 = vld [vmem:[%s8 + $0x28] sm:$0xf]
  %v395 = vld [vmem:[%s8 + $0x2c] sm:$0xf]
  %v396 = vld [vmem:[%s8 + $0x30] sm:$0xf]
  %v397 = vld [vmem:[%s8 + $0x34] sm:$0xf]
  %v398 = vld [vmem:[%s8 + $0x38] sm:$0xf]
  %v399 = vld [vmem:[%s8 + $0x3c] sm:$0xf]
  %v416 = vunpack.c.l.b16 %v384
  %v417 = vunpack.c.l.b16 %v385
  %v418 = vunpack.c.l.b16 %v386
  %v419 = vunpack.c.l.b16 %v387
  %v420 = vunpack.c.l.b16 %v388
  %v421 = vunpack.c.l.b16 %v389
  %v422 = vunpack.c.l.b16 %v390
  %v423 = vunpack.c.l.b16 %v391
  %v424 = vunpack.c.l.b16 %v392
  %v425 = vunpack.c.l.b16 %v393
  %v426 = vunpack.c.l.b16 %v394
  %v427 = vunpack.c.l.b16 %v395
  %v428 = vunpack.c.l.b16 %v396
  %v429 = vunpack.c.l.b16 %v397
  %v430 = vunpack.c.l.b16 %v398
  %v431 = vunpack.c.l.b16 %v399
  %v432 = vpack.c.b16 %v417, %v416
  %v433 = vpack.c.b16 %v419, %v418
  %v434 = vpack.c.b16 %v421, %v420
  %v435 = vpack.c.b16 %v423, %v422
  %v436 = vpack.c.b16 %v425, %v424
  %v437 = vpack.c.b16 %v427, %v426
  %v438 = vpack.c.b16 %v429, %v428
  %v439 = vpack.c.b16 %v431, %v430
  %448 = vmatprep.subr.bf16.mxu0 0
  %449 = vmatpush1.bf16.msra.mxu0 %v439
  %450 = vmatprep.subr.bf16.mxu0 0
  %451 = vmatpush1.bf16.msra.mxu0 %v438
  %452 = vmatprep.subr.bf16.mxu0 0
  %453 = vmatpush1.bf16.msra.mxu0 %v437
  %454 = vmatprep.subr.bf16.mxu0 0
  %455 = vmatpush1.bf16.msra.mxu0 %v436
  %456 = vmatprep.subr.bf16.mxu0 0
  %457 = vmatpush1.bf16.msra.mxu0 %v435
  %458 = vmatprep.subr.bf16.mxu0 0
  %459 = vmatpush1.bf16.msra.mxu0 %v434
  %460 = vmatprep.subr.bf16.mxu0 0
  %461 = vmatpush1.bf16.msra.mxu0 %v433
  %462 = vmatprep.subr.bf16.mxu0 0
  %463 = vmatpush1.bf16.msra.mxu0 %v432
  %464 = vmatprep.subr.bf16.mxu0 0
  %465 = vmatpush2.bf16.msra.mxu0 0
  %466 = vmatprep.subr.bf16.mxu0 0
  %467 = vmatpush2.bf16.msra.mxu0 0
  %468 = vmatprep.subr.bf16.mxu0 0
  %469 = vmatpush2.bf16.msra.mxu0 0
  %470 = vmatprep.subr.bf16.mxu0 0
  %471 = vmatpush2.bf16.msra.mxu0 0
  %472 = vmatprep.subr.bf16.mxu0 0
  %473 = vmatpush2.bf16.msra.mxu0 0
  %474 = vmatprep.subr.bf16.mxu0 0
  %475 = vmatpush2.bf16.msra.mxu0 0
  %476 = vmatprep.subr.bf16.mxu0 0
  %477 = vmatpush2.bf16.msra.mxu0 0
  %478 = vmatprep.subr.bf16.mxu0 0
  %479 = vmatpush2.bf16.msra.mxu0 0
  %480 = vmatprep.mubr.bf16.mxu0 0
  %481 = vmatmul.mubr.bf16.gmra.mxu0 %v382
  %v482 = vpop.f32.mrf.mxu0
  %v483 = vadd.f32 0.0, %v482
  %v484 = vpop.f32.mrf.mxu0
  %v485 = vpop.f32.mrf.mxu0
  %v486 = vadd.f32 0.0, %v485
  %v487 = vpop.f32.mrf.mxu0
  %488 = vmatprep.mubr.bf16.mxu0 0
  %489 = vmatmul.mubr.bf16.gmra.mxu0 %v383
  %v490 = vpop.f32.mrf.mxu0
  %v491 = vadd.f32 0.0, %v490
  %v492 = vpop.f32.mrf.mxu0
  %v493 = vpop.f32.mrf.mxu0
  %v494 = vadd.f32 0.0, %v493
  %v495 = vpop.f32.mrf.mxu0
  %496 = vdwg.mxu0
  %v497 = vadd.f32 %v378, %v483
  %v498 = vadd.f32 %v379, %v486
  %v499 = vadd.f32 %v380, %v491
  %v500 = vadd.f32 %v381, %v494
  %501 = vst.msk [vmem:[#allocation4] sm:$0xff] %vm286, %v497
  %502 = vst.msk [vmem:[#allocation4 + $0x8] sm:$0xff] %vm286, %v498
  %503 = vst.msk [vmem:[#allocation4 + $0x10] sm:$0xff] %vm286, %v499
  %504 = vst.msk [vmem:[#allocation4 + $0x18] sm:$0xff] %vm286, %v500
  // Predicated region
  $region46: #{audio_encoder_forward.12} parent=0 // pred_check
    %p505 = pneg %p36
  $region47: #{audio_encoder_forward.12} parent=0 // pred_check_branch
    %507 = sbr.rel (%p505) target = $region49
  $region48: #{audio_encoder_forward.12} parent=0 // pred_region
    %v508 = vld [vmem:[#allocation2] sm:$0xff]
    %v509 = vld [vmem:[#allocation2 + $0x8] sm:$0xff]
    %v510 = vld [vmem:[#allocation2 + $0x10] sm:$0xff]
    %v511 = vld [vmem:[#allocation2 + $0x18] sm:$0xff]
    %v512 = vld [vmem:[#allocation4] sm:$0xff]
    %v513 = vld [vmem:[#allocation4 + $0x8] sm:$0xff]
    %v514 = vld [vmem:[#allocation4 + $0x10] sm:$0xff]
    %v515 = vld [vmem:[#allocation4 + $0x18] sm:$0xff]
    %v516 = vadd.f32 %v508, %v512
    %v517 = vadd.f32 %v509, %v513
    %v518 = vadd.f32 %v510, %v514
    %v519 = vadd.f32 %v511, %v515
    %v520 = vld [vmem:[%s9] sm:$0x1]
    %v522 = vlaneseq
    %v523 = vshrl.u32 %v522, 7
    %v524 = vsub.s32 0, %v523
    %v525 = vrot.slane %v520, %v524
    %v527 = vadd.f32 %v516, %v525
    %v528 = vadd.f32 %v517, %v525
    %v529 = vadd.f32 %v518, %v525
    %v530 = vadd.f32 %v519, %v525
    %531 = vst.msk [vmem:[%s10] sm:$0xff] %vm286, %v527
    %532 = vst.msk [vmem:[%s10 + $0x8] sm:$0xff] %vm286, %v528
    %533 = vst.msk [vmem:[%s10 + $0x10] sm:$0xff] %vm286, %v529
    %534 = vst.msk [vmem:[%s10 + $0x18] sm:$0xff] %vm286, %v530
  $region49: #{audio_encoder_forward.12} parent=0 // pred_fallthru
    _
  // Predicated region
  $region50: #{audio_encoder_forward.12} parent=0 // pred_check
    _
  $region51: #{audio_encoder_forward.12} parent=0 // pred_check_branch
    %536 = sbr.rel (0) target = $region53
  $region52: #{audio_encoder_forward.12} parent=0 // pred_region
    _
  $region53: #{audio_encoder_forward.12} parent=0 // pred_fallthru
    _
  // Predicated region
  $region54: #{audio_encoder_forward.12} parent=0 // pred_check
    _
  $region55: #{audio_encoder_forward.12} parent=0 // pred_check_branch
    %538 = sbr.rel (0) target = $region57
  $region56: #{audio_encoder_forward.12} parent=0 // pred_region
    _
  $region57: #{audio_encoder_forward.12} parent=0 // pred_fallthru
    _

</llo_original>
